<compile_context>
chip_gen: v7x
topology: tpu7x:2x2x1
jax: 0.10.0
libtpu: 0.0.40
codegen_flags: <defaults>
</compile_context>

<pallas_src>
import functools
import math

import jax
import jax.numpy as jnp
from jax import lax
from jax.experimental import pallas as pl
from jax.experimental.pallas import tpu as pltpu

NP = 128  # padded lane width for pooled features / MLP (72, 120, 84, 10 -> 128)


def cnn_fused_kernel(xc_ref, t_ref, bc_ref, qe_ref, qo_ref,
                     w1_ref, b1_ref, w2_ref, b2_ref, w3_ref, b3_ref,
                     o_ref, *, hp):
    """Fused conv + ReLU + 2x2 maxpool + 3-layer MLP for one batch tile (BT images).

    xc_ref : (hc, BT, k*28) bf16   im2col rows, batch-major inside each conv row
    t_ref  : (k*28, 6*hc)   bf16   banded (Toeplitz) conv weight slab
    qe/qo  : (6*hc, 128)    bf16   exact 0/1 even/odd column-pool selectors
    w1_ref : (hp, 128, 128) bf16   FC1 row-blocks (torch flatten order absorbed)
    """
    f32 = jnp.float32
    bf16 = jnp.bfloat16

    bias = bc_ref[...]                                     # (1, 6*hc) f32
    h = jnp.zeros(o_ref.shape, f32)                        # (BT, 128) FC1 accumulator

    for ip in range(hp):
        # conv for the two rows of this pooling pair: one K = k*28 MXU matmul each
        a0 = jnp.dot(xc_ref[2 * ip], t_ref[...], preferred_element_type=f32)
        a1 = jnp.dot(xc_ref[2 * ip + 1], t_ref[...], preferred_element_type=f32)
        a0 = jnp.maximum(a0 + bias, 0.0)                   # bias + ReLU (f32, VPU)
        a1 = jnp.maximum(a1 + bias, 0.0)
        rm = jnp.maximum(a0, a1).astype(bf16)              # row pool (free elementwise max)

        # column pool: exact 0/1 selector matmuls, lane dim padded to 128
        cm = jnp.maximum(
            jnp.dot(rm, qe_ref[...], preferred_element_type=f32),
            jnp.dot(rm, qo_ref[...], preferred_element_type=f32))   # (BT, 128)

        # FC1 contribution of this pooled row (M = BT, full 128x128 tile)
        h = h + jnp.dot(cm.astype(bf16), w1_ref[ip], preferred_element_type=f32)

    h = jnp.maximum(h + b1_ref[...], 0.0)                  # FC1 bias + ReLU
    h = jnp.maximum(
        jnp.dot(h.astype(bf16), w2_ref[...], preferred_element_type=f32) + b2_ref[...],
        0.0)                                               # FC2 + ReLU
    o_ref[...] = (jnp.dot(h.astype(bf16), w3_ref[...], preferred_element_type=f32)
                  + b3_ref[...])                           # FC3 logits (padded to 128)


def _round_up(a, m):
    return (a + m - 1) // m * m


def cnn_forward(x, params, kernel_size):
    w_conv, b_conv, w1, b1, w2, b2, w3, b3 = params
    B = x.shape[0]
    k = kernel_size
    hc = 28 - k + 1            # conv output spatial size
    hp = hc // 2               # pooled spatial size
    c_out = w_conv.shape[0]
    f32, bf16 = jnp.float32, jnp.bfloat16

    # -------- batch tiling (pad batch, pick tile; 256 matches v6e/v7x MXU M) --------
    B_pad = _round_up(B, 8)
    BT = min(256, B_pad)
    B_pad = _round_up(B_pad, BT)
    grid = (B_pad // BT,)

    # -------- input im2col slab, batch-major per conv row: (hc, B_pad, k*28) bf16 ----
    xi = x.reshape(B, 28, 28).astype(bf16)
    x_col = jnp.concatenate([xi[:, di:di + hc, :] for di in range(k)], axis=-1)
    x_col = jnp.transpose(x_col, (1, 0, 2))                      # (hc, B, k*28)
    if B_pad > B:
        x_col = jnp.pad(x_col, ((0, 0), (0, B_pad - B), (0, 0)))

    # ---------------- host-side weight preprocessing (tiny, once) ----------------
    # banded conv slab: T[di*28 + p, c*hc + j] = w_conv[c, di, p - j] (0 outside band)
    pj = jnp.arange(28)[:, None] - jnp.arange(hc)[None, :]       # p - j, (28, hc)
    valid = (pj >= 0) & (pj < k)
    gat = w_conv[:, :, jnp.clip(pj, 0, k - 1)]                   # (c_out, k, 28, hc)
    gat = jnp.where(valid[None, None], gat, 0.0)
    t2 = jnp.transpose(gat, (1, 2, 0, 3)).reshape(k * 28, c_out * hc).astype(bf16)
    bias_row = jnp.repeat(b_conv, hc)[None, :].astype(f32)       # (1, c_out*hc)

    # exact 0/1 column-pool selectors, channel block-diagonal, lane-padded to 128
    j_idx, jp_idx = jnp.arange(hc), jnp.arange(hp)
    col_e = (j_idx[:, None] == 2 * jp_idx[None, :]).astype(f32)  # (hc, hp)
    col_o = (j_idx[:, None] == 2 * jp_idx[None, :] + 1).astype(f32)
    eye_c = jnp.eye(c_out, dtype=f32)
    q_even = jnp.pad(jnp.kron(eye_c, col_e),
                     ((0, 0), (0, NP - c_out * hp))).astype(bf16)  # (c_out*hc, 128)
    q_odd = jnp.pad(jnp.kron(eye_c, col_o),
                    ((0, 0), (0, NP - c_out * hp))).astype(bf16)

    # FC weights: absorb torch's (c, i, j) flatten order into FC1 row-blocks and
    # zero-pad every lane/contraction dim to 128 (padded lanes stay exactly 0).
    n1, n2, n3 = w1.shape[1], w2.shape[1], w3.shape[1]
    w1_blk = (w1.reshape(c_out, hp, hp, n1)
                .transpose(1, 0, 2, 3)
                .reshape(hp, c_out * hp, n1))
    w1_blk = jnp.pad(w1_blk,
                     ((0, 0), (0, NP - c_out * hp), (0, NP - n1))).astype(bf16)
    b1_p = jnp.pad(b1, ((0, 0), (0, NP - n1))).astype(f32)
    w2_p = jnp.pad(w2, ((0, NP - w2.shape[0]), (0, NP - n2))).astype(bf16)
    b2_p = jnp.pad(b2, ((0, 0), (0, NP - n2))).astype(f32)
    w3_p = jnp.pad(w3, ((0, NP - w3.shape[0]), (0, NP - n3))).astype(bf16)
    b3_p = jnp.pad(b3, ((0, 0), (0, NP - n3))).astype(f32)

    weights = (t2, bias_row, q_even, q_odd, w1_blk, b1_p, w2_p, b2_p, w3_p, b3_p)

    def resident(a):  # whole array VMEM-resident across the batch-tile grid
        nd = a.ndim
        return pl.BlockSpec(a.shape, lambda g, _nd=nd: (0,) * _nd)

    # scheduler hint (reviewer item): MACs * 2 per image + bytes moved
    macs_per_img = (hp * (2 * (k * 28) * (c_out * hc)      # two conv rows
                          + 2 * (c_out * hc) * NP          # pool selectors
                          + NP * NP)                       # fc1 block
                    + 2 * NP * NP)                         # fc2 + fc3
    w_bytes = sum(int(a.size) * a.dtype.itemsize for a in weights)
    cost = pl.CostEstimate(
        flops=2 * macs_per_img * B_pad,
        transcendentals=0,
        bytes_accessed=int(x_col.size) * 2 + B_pad * NP * 4 + w_bytes)

    out_pad = pl.pallas_call(
        functools.partial(cnn_fused_kernel, hp=hp),
        out_shape=jax.ShapeDtypeStruct((B_pad, NP), f32),
        grid=grid,
        in_specs=[
            pl.BlockSpec((hc, BT, k * 28), lambda g: (0, g, 0)),
            resident(t2), resident(bias_row),
            resident(q_even), resident(q_odd),
            resident(w1_blk), resident(b1_p),
            resident(w2_p), resident(b2_p),
            resident(w3_p), resident(b3_p),
        ],
        out_specs=pl.BlockSpec((BT, NP), lambda g: (g, 0)),
        compiler_params=pltpu.CompilerParams(
            dimension_semantics=("parallel",),
            vmem_limit_bytes=32 * 1024 * 1024),
        cost_estimate=cost,
    )(x_col, *weights)

    return out_pad[:B, :10]


def init_params(key, k):
    """Deterministic init mirroring PyTorch default U(-1/sqrt(fan_in), 1/sqrt(fan_in))."""
    hp = (28 - k + 1) // 2
    f = 6 * hp * hp
    ks = jax.random.split(key, 8)

    def u(kk, shape, fan_in):
        b = 1.0 / math.sqrt(float(fan_in))
        return jax.random.uniform(kk, shape, jnp.float32, -b, b)

    w_conv = u(ks[0], (6, k, k), k * k)       # conv1.weight (C_out, kh, kw), C_in = 1
    b_conv = u(ks[1], (6,), k * k)            # conv1.bias
    w1 = u(ks[2], (f, 120), f)                # fc1.weight^T  (in, out)
    b1 = u(ks[3], (1, 120), f)
    w2 = u(ks[4], (120, 84), 120)             # fc2.weight^T
    b2 = u(ks[5], (1, 84), 120)
    w3 = u(ks[6], (84, 10), 84)               # fc3.weight^T
    b3 = u(ks[7], (1, 10), 84)
    return (w_conv, b_conv, w1, b1, w2, b2, w3, b3)


def reference_forward(x, params, k):
    """Pure-JAX f32 reference of the PyTorch forward (for verification)."""
    w_conv, b_conv, w1, b1, w2, b2, w3, b3 = params
    y = lax.conv_general_dilated(
        x, w_conv[:, None, :, :], window_strides=(1, 1), padding="VALID",
        dimension_numbers=("NCHW", "OIHW", "NCHW"))
    y = jnp.maximum(y + b_conv[None, :, None, None], 0.0)
    y = lax.reduce_window(y, -jnp.inf, lax.max, (1, 1, 2, 2), (1, 1, 2, 2), "VALID")
    hp = (28 - k + 1) // 2
    y = y.reshape(x.shape[0], 6 * hp * hp)
    y = jnp.maximum(y @ w1 + b1, 0.0)
    y = jnp.maximum(y @ w2 + b2, 0.0)
    return y @ w3 + b3


if __name__ == "__main__":
    kernel_size = 5  # matches the slider default in the PyTorch script
    key = jax.random.PRNGKey(0)
    kx, kp = jax.random.split(key)
    x = jax.random.normal(kx, (2, 1, 28, 28), jnp.float32)  # batch=2, MNIST-sized
    params = init_params(kp, kernel_size)

    fwd = jax.jit(cnn_forward, static_argnums=2)
    out = jax.block_until_ready(fwd(x, params, kernel_size))

    ref = reference_forward(x, params, kernel_size)
    assert out.shape == (2, 10), out.shape
    err = float(jnp.max(jnp.abs(out - ref)))
    # bf16 MXU operands (f32 accumulation) vs. f32 reference -> relaxed tolerance.
    assert jnp.allclose(out, ref, atol=2e-2, rtol=2e-2), err
    print("KERNEL_OK")
</pallas_src>

<mosaic_0001>
module attributes {stable_mosaic.version = 11 : i64} {
  func.func @cnn_fused_kernel(%arg0: i32, %arg1: memref<24x8x140xbf16, #tpu.memory_space<vmem>>, %arg2: memref<140x144xbf16, #tpu.memory_space<vmem>>, %arg3: memref<1x144xf32, #tpu.memory_space<vmem>>, %arg4: memref<144x128xbf16, #tpu.memory_space<vmem>>, %arg5: memref<144x128xbf16, #tpu.memory_space<vmem>>, %arg6: memref<12x128x128xbf16, #tpu.memory_space<vmem>>, %arg7: memref<1x128xf32, #tpu.memory_space<vmem>>, %arg8: memref<128x128xbf16, #tpu.memory_space<vmem>>, %arg9: memref<1x128xf32, #tpu.memory_space<vmem>>, %arg10: memref<128x128xbf16, #tpu.memory_space<vmem>>, %arg11: memref<1x128xf32, #tpu.memory_space<vmem>>, %arg12: memref<8x128xf32, #tpu.memory_space<vmem>>) attributes {dimension_semantics = [#tpu.dimension_semantics<parallel>], iteration_bounds = array<i64: 1>, scalar_prefetch = 0 : i64, scratch_operands = 0 : i64, tpu.core_type = #tpu.core_type<tc>, window_params = [{transform_indices = @transform_0, window_bounds = array<i64: 24, 8, 140>}, {pipeline_mode = #tpu.pipeline_mode<synchronous>, transform_indices = @transform_1, window_bounds = array<i64: 140, 144>}, {pipeline_mode = #tpu.pipeline_mode<synchronous>, transform_indices = @transform_2, window_bounds = array<i64: 1, 144>}, {pipeline_mode = #tpu.pipeline_mode<synchronous>, transform_indices = @transform_3, window_bounds = array<i64: 144, 128>}, {pipeline_mode = #tpu.pipeline_mode<synchronous>, transform_indices = @transform_4, window_bounds = array<i64: 144, 128>}, {pipeline_mode = #tpu.pipeline_mode<synchronous>, transform_indices = @transform_5, window_bounds = array<i64: 12, 128, 128>}, {pipeline_mode = #tpu.pipeline_mode<synchronous>, transform_indices = @transform_6, window_bounds = array<i64: 1, 128>}, {pipeline_mode = #tpu.pipeline_mode<synchronous>, transform_indices = @transform_7, window_bounds = array<i64: 128, 128>}, {pipeline_mode = #tpu.pipeline_mode<synchronous>, transform_indices = @transform_8, window_bounds = array<i64: 1, 128>}, {pipeline_mode = #tpu.pipeline_mode<synchronous>, transform_indices = @transform_9, window_bounds = array<i64: 128, 128>}, {pipeline_mode = #tpu.pipeline_mode<synchronous>, transform_indices = @transform_10, window_bounds = array<i64: 1, 128>}, {transform_indices = @transform_11, window_bounds = array<i64: 8, 128>}]} {
    %c0 = arith.constant 0 : index
    %c0_0 = arith.constant 0 : index
    %0 = vector.load %arg3[%c0, %c0_0] : memref<1x144xf32, #tpu.memory_space<vmem>>, vector<1x144xf32>
    %cst = arith.constant 0.000000e+00 : f32
    %1 = vector.broadcast %cst : f32 to vector<8x128xf32>
    %c0_1 = arith.constant 0 : index
    %c0_2 = arith.constant 0 : index
    %c0_3 = arith.constant 0 : index
    %2 = vector.load %arg1[%c0_1, %c0_2, %c0_3] : memref<24x8x140xbf16, #tpu.memory_space<vmem>>, vector<1x8x140xbf16>
    %3 = vector.shape_cast %2 : vector<1x8x140xbf16> to vector<8x140xbf16>
    %c0_4 = arith.constant 0 : index
    %c0_5 = arith.constant 0 : index
    %4 = vector.load %arg2[%c0_4, %c0_5] : memref<140x144xbf16, #tpu.memory_space<vmem>>, vector<140x144xbf16>
    %cst_6 = arith.constant dense<0.000000e+00> : vector<8x144xf32>
    %5 = tpu.matmul %3, %4, %cst_6 {dimension_numbers = #tpu.dot_dimension_numbers<[1], [0], [0], [1], [0, 0, 1, 1], [], []>} : vector<8x140xbf16>, vector<140x144xbf16>, vector<8x144xf32> -> vector<8x144xf32>
    %c1 = arith.constant 1 : index
    %c0_7 = arith.constant 0 : index
    %c0_8 = arith.constant 0 : index
    %6 = vector.load %arg1[%c1, %c0_7, %c0_8] : memref<24x8x140xbf16, #tpu.memory_space<vmem>>, vector<1x8x140xbf16>
    %7 = vector.shape_cast %6 : vector<1x8x140xbf16> to vector<8x140xbf16>
    %c0_9 = arith.constant 0 : index
    %c0_10 = arith.constant 0 : index
    %8 = vector.load %arg2[%c0_9, %c0_10] : memref<140x144xbf16, #tpu.memory_space<vmem>>, vector<140x144xbf16>
    %cst_11 = arith.constant dense<0.000000e+00> : vector<8x144xf32>
    %9 = tpu.matmul %7, %8, %cst_11 {dimension_numbers = #tpu.dot_dimension_numbers<[1], [0], [0], [1], [0, 0, 1, 1], [], []>} : vector<8x140xbf16>, vector<140x144xbf16>, vector<8x144xf32> -> vector<8x144xf32>
    %10 = vector.broadcast %0 : vector<1x144xf32> to vector<8x144xf32>
    %11 = arith.addf %5, %10 : vector<8x144xf32>
    %cst_12 = arith.constant 0.000000e+00 : f32
    %12 = vector.broadcast %cst_12 : f32 to vector<8x144xf32>
    %13 = arith.maximumf %11, %12 : vector<8x144xf32>
    %14 = vector.broadcast %0 : vector<1x144xf32> to vector<8x144xf32>
    %15 = arith.addf %9, %14 : vector<8x144xf32>
    %cst_13 = arith.constant 0.000000e+00 : f32
    %16 = vector.broadcast %cst_13 : f32 to vector<8x144xf32>
    %17 = arith.maximumf %15, %16 : vector<8x144xf32>
    %18 = arith.maximumf %13, %17 : vector<8x144xf32>
    %19 = arith.truncf %18 : vector<8x144xf32> to vector<8x144xbf16>
    %c0_14 = arith.constant 0 : index
    %c0_15 = arith.constant 0 : index
    %20 = vector.load %arg4[%c0_14, %c0_15] : memref<144x128xbf16, #tpu.memory_space<vmem>>, vector<144x128xbf16>
    %cst_16 = arith.constant dense<0.000000e+00> : vector<8x128xf32>
    %21 = tpu.matmul %19, %20, %cst_16 {dimension_numbers = #tpu.dot_dimension_numbers<[1], [0], [0], [1], [0, 0, 1, 1], [], []>} : vector<8x144xbf16>, vector<144x128xbf16>, vector<8x128xf32> -> vector<8x128xf32>
    %c0_17 = arith.constant 0 : index
    %c0_18 = arith.constant 0 : index
    %22 = vector.load %arg5[%c0_17, %c0_18] : memref<144x128xbf16, #tpu.memory_space<vmem>>, vector<144x128xbf16>
    %cst_19 = arith.constant dense<0.000000e+00> : vector<8x128xf32>
    %23 = tpu.matmul %19, %22, %cst_19 {dimension_numbers = #tpu.dot_dimension_numbers<[1], [0], [0], [1], [0, 0, 1, 1], [], []>} : vector<8x144xbf16>, vector<144x128xbf16>, vector<8x128xf32> -> vector<8x128xf32>
    %24 = arith.maximumf %21, %23 : vector<8x128xf32>
    %25 = arith.truncf %24 : vector<8x128xf32> to vector<8x128xbf16>
    %c0_20 = arith.constant 0 : index
    %c0_21 = arith.constant 0 : index
    %c0_22 = arith.constant 0 : index
    %26 = vector.load %arg6[%c0_20, %c0_21, %c0_22] : memref<12x128x128xbf16, #tpu.memory_space<vmem>>, vector<1x128x128xbf16>
    %27 = vector.shape_cast %26 : vector<1x128x128xbf16> to vector<128x128xbf16>
    %cst_23 = arith.constant dense<0.000000e+00> : vector<8x128xf32>
    %28 = tpu.matmul %25, %27, %cst_23 {dimension_numbers = #tpu.dot_dimension_numbers<[1], [0], [0], [1], [0, 0, 1, 1], [], []>} : vector<8x128xbf16>, vector<128x128xbf16>, vector<8x128xf32> -> vector<8x128xf32>
    %29 = arith.addf %1, %28 : vector<8x128xf32>
    %c2 = arith.constant 2 : index
    %c0_24 = arith.constant 0 : index
    %c0_25 = arith.constant 0 : index
    %30 = vector.load %arg1[%c2, %c0_24, %c0_25] : memref<24x8x140xbf16, #tpu.memory_space<vmem>>, vector<1x8x140xbf16>
    %31 = vector.shape_cast %30 : vector<1x8x140xbf16> to vector<8x140xbf16>
    %c0_26 = arith.constant 0 : index
    %c0_27 = arith.constant 0 : index
    %32 = vector.load %arg2[%c0_26, %c0_27] : memref<140x144xbf16, #tpu.memory_space<vmem>>, vector<140x144xbf16>
    %cst_28 = arith.constant dense<0.000000e+00> : vector<8x144xf32>
    %33 = tpu.matmul %31, %32, %cst_28 {dimension_numbers = #tpu.dot_dimension_numbers<[1], [0], [0], [1], [0, 0, 1, 1], [], []>} : vector<8x140xbf16>, vector<140x144xbf16>, vector<8x144xf32> -> vector<8x144xf32>
    %c3 = arith.constant 3 : index
    %c0_29 = arith.constant 0 : index
    %c0_30 = arith.constant 0 : index
    %34 = vector.load %arg1[%c3, %c0_29, %c0_30] : memref<24x8x140xbf16, #tpu.memory_space<vmem>>, vector<1x8x140xbf16>
    %35 = vector.shape_cast %34 : vector<1x8x140xbf16> to vector<8x140xbf16>
    %c0_31 = arith.constant 0 : index
    %c0_32 = arith.constant 0 : index
    %36 = vector.load %arg2[%c0_31, %c0_32] : memref<140x144xbf16, #tpu.memory_space<vmem>>, vector<140x144xbf16>
    %cst_33 = arith.constant dense<0.000000e+00> : vector<8x144xf32>
    %37 = tpu.matmul %35, %36, %cst_33 {dimension_numbers = #tpu.dot_dimension_numbers<[1], [0], [0], [1], [0, 0, 1, 1], [], []>} : vector<8x140xbf16>, vector<140x144xbf16>, vector<8x144xf32> -> vector<8x144xf32>
    %38 = vector.broadcast %0 : vector<1x144xf32> to vector<8x144xf32>
    %39 = arith.addf %33, %38 : vector<8x144xf32>
    %cst_34 = arith.constant 0.000000e+00 : f32
    %40 = vector.broadcast %cst_34 : f32 to vector<8x144xf32>
    %41 = arith.maximumf %39, %40 : vector<8x144xf32>
    %42 = vector.broadcast %0 : vector<1x144xf32> to vector<8x144xf32>
    %43 = arith.addf %37, %42 : vector<8x144xf32>
    %cst_35 = arith.constant 0.000000e+00 : f32
    %44 = vector.broadcast %cst_35 : f32 to vector<8x144xf32>
    %45 = arith.maximumf %43, %44 : vector<8x144xf32>
    %46 = arith.maximumf %41, %45 : vector<8x144xf32>
    %47 = arith.truncf %46 : vector<8x144xf32> to vector<8x144xbf16>
    %c0_36 = arith.constant 0 : index
    %c0_37 = arith.constant 0 : index
    %48 = vector.load %arg4[%c0_36, %c0_37] : memref<144x128xbf16, #tpu.memory_space<vmem>>, vector<144x128xbf16>
    %cst_38 = arith.constant dense<0.000000e+00> : vector<8x128xf32>
    %49 = tpu.matmul %47, %48, %cst_38 {dimension_numbers = #tpu.dot_dimension_numbers<[1], [0], [0], [1], [0, 0, 1, 1], [], []>} : vector<8x144xbf16>, vector<144x128xbf16>, vector<8x128xf32> -> vector<8x128xf32>
    %c0_39 = arith.constant 0 : index
    %c0_40 = arith.constant 0 : index
    %50 = vector.load %arg5[%c0_39, %c0_40] : memref<144x128xbf16, #tpu.memory_space<vmem>>, vector<144x128xbf16>
    %cst_41 = arith.constant dense<0.000000e+00> : vector<8x128xf32>
    %51 = tpu.matmul %47, %50, %cst_41 {dimension_numbers = #tpu.dot_dimension_numbers<[1], [0], [0], [1], [0, 0, 1, 1], [], []>} : vector<8x144xbf16>, vector<144x128xbf16>, vector<8x128xf32> -> vector<8x128xf32>
    %52 = arith.maximumf %49, %51 : vector<8x128xf32>
    %53 = arith.truncf %52 : vector<8x128xf32> to vector<8x128xbf16>
    %c1_42 = arith.constant 1 : index
    %c0_43 = arith.constant 0 : index
    %c0_44 = arith.constant 0 : index
    %54 = vector.load %arg6[%c1_42, %c0_43, %c0_44] : memref<12x128x128xbf16, #tpu.memory_space<vmem>>, vector<1x128x128xbf16>
    %55 = vector.shape_cast %54 : vector<1x128x128xbf16> to vector<128x128xbf16>
    %cst_45 = arith.constant dense<0.000000e+00> : vector<8x128xf32>
    %56 = tpu.matmul %53, %55, %cst_45 {dimension_numbers = #tpu.dot_dimension_numbers<[1], [0], [0], [1], [0, 0, 1, 1], [], []>} : vector<8x128xbf16>, vector<128x128xbf16>, vector<8x128xf32> -> vector<8x128xf32>
    %57 = arith.addf %29, %56 : vector<8x128xf32>
    %c4 = arith.constant 4 : index
    %c0_46 = arith.constant 0 : index
    %c0_47 = arith.constant 0 : index
    %58 = vector.load %arg1[%c4, %c0_46, %c0_47] : memref<24x8x140xbf16, #tpu.memory_space<vmem>>, vector<1x8x140xbf16>
    %59 = vector.shape_cast %58 : vector<1x8x140xbf16> to vector<8x140xbf16>
    %c0_48 = arith.constant 0 : index
    %c0_49 = arith.constant 0 : index
    %60 = vector.load %arg2[%c0_48, %c0_49] : memref<140x144xbf16, #tpu.memory_space<vmem>>, vector<140x144xbf16>
    %cst_50 = arith.constant dense<0.000000e+00> : vector<8x144xf32>
    %61 = tpu.matmul %59, %60, %cst_50 {dimension_numbers = #tpu.dot_dimension_numbers<[1], [0], [0], [1], [0, 0, 1, 1], [], []>} : vector<8x140xbf16>, vector<140x144xbf16>, vector<8x144xf32> -> vector<8x144xf32>
    %c5 = arith.constant 5 : index
    %c0_51 = arith.constant 0 : index
    %c0_52 = arith.constant 0 : index
    %62 = vector.load %arg1[%c5, %c0_51, %c0_52] : memref<24x8x140xbf16, #tpu.memory_space<vmem>>, vector<1x8x140xbf16>
    %63 = vector.shape_cast %62 : vector<1x8x140xbf16> to vector<8x140xbf16>
    %c0_53 = arith.constant 0 : index
    %c0_54 = arith.constant 0 : index
    %64 = vector.load %arg2[%c0_53, %c0_54] : memref<140x144xbf16, #tpu.memory_space<vmem>>, vector<140x144xbf16>
    %cst_55 = arith.constant dense<0.000000e+00> : vector<8x144xf32>
    %65 = tpu.matmul %63, %64, %cst_55 {dimension_numbers = #tpu.dot_dimension_numbers<[1], [0], [0], [1], [0, 0, 1, 1], [], []>} : vector<8x140xbf16>, vector<140x144xbf16>, vector<8x144xf32> -> vector<8x144xf32>
    %66 = vector.broadcast %0 : vector<1x144xf32> to vector<8x144xf32>
    %67 = arith.addf %61, %66 : vector<8x144xf32>
    %cst_56 = arith.constant 0.000000e+00 : f32
    %68 = vector.broadcast %cst_56 : f32 to vector<8x144xf32>
    %69 = arith.maximumf %67, %68 : vector<8x144xf32>
    %70 = vector.broadcast %0 : vector<1x144xf32> to vector<8x144xf32>
    %71 = arith.addf %65, %70 : vector<8x144xf32>
    %cst_57 = arith.constant 0.000000e+00 : f32
    %72 = vector.broadcast %cst_57 : f32 to vector<8x144xf32>
    %73 = arith.maximumf %71, %72 : vector<8x144xf32>
    %74 = arith.maximumf %69, %73 : vector<8x144xf32>
    %75 = arith.truncf %74 : vector<8x144xf32> to vector<8x144xbf16>
    %c0_58 = arith.constant 0 : index
    %c0_59 = arith.constant 0 : index
    %76 = vector.load %arg4[%c0_58, %c0_59] : memref<144x128xbf16, #tpu.memory_space<vmem>>, vector<144x128xbf16>
    %cst_60 = arith.constant dense<0.000000e+00> : vector<8x128xf32>
    %77 = tpu.matmul %75, %76, %cst_60 {dimension_numbers = #tpu.dot_dimension_numbers<[1], [0], [0], [1], [0, 0, 1, 1], [], []>} : vector<8x144xbf16>, vector<144x128xbf16>, vector<8x128xf32> -> vector<8x128xf32>
    %c0_61 = arith.constant 0 : index
    %c0_62 = arith.constant 0 : index
    %78 = vector.load %arg5[%c0_61, %c0_62] : memref<144x128xbf16, #tpu.memory_space<vmem>>, vector<144x128xbf16>
    %cst_63 = arith.constant dense<0.000000e+00> : vector<8x128xf32>
    %79 = tpu.matmul %75, %78, %cst_63 {dimension_numbers = #tpu.dot_dimension_numbers<[1], [0], [0], [1], [0, 0, 1, 1], [], []>} : vector<8x144xbf16>, vector<144x128xbf16>, vector<8x128xf32> -> vector<8x128xf32>
    %80 = arith.maximumf %77, %79 : vector<8x128xf32>
    %81 = arith.truncf %80 : vector<8x128xf32> to vector<8x128xbf16>
    %c2_64 = arith.constant 2 : index
    %c0_65 = arith.constant 0 : index
    %c0_66 = arith.constant 0 : index
    %82 = vector.load %arg6[%c2_64, %c0_65, %c0_66] : memref<12x128x128xbf16, #tpu.memory_space<vmem>>, vector<1x128x128xbf16>
    %83 = vector.shape_cast %82 : vector<1x128x128xbf16> to vector<128x128xbf16>
    %cst_67 = arith.constant dense<0.000000e+00> : vector<8x128xf32>
    %84 = tpu.matmul %81, %83, %cst_67 {dimension_numbers = #tpu.dot_dimension_numbers<[1], [0], [0], [1], [0, 0, 1, 1], [], []>} : vector<8x128xbf16>, vector<128x128xbf16>, vector<8x128xf32> -> vector<8x128xf32>
    %85 = arith.addf %57, %84 : vector<8x128xf32>
    %c6 = arith.constant 6 : index
    %c0_68 = arith.constant 0 : index
    %c0_69 = arith.constant 0 : index
    %86 = vector.load %arg1[%c6, %c0_68, %c0_69] : memref<24x8x140xbf16, #tpu.memory_space<vmem>>, vector<1x8x140xbf16>
    %87 = vector.shape_cast %86 : vector<1x8x140xbf16> to vector<8x140xbf16>
    %c0_70 = arith.constant 0 : index
    %c0_71 = arith.constant 0 : index
    %88 = vector.load %arg2[%c0_70, %c0_71] : memref<140x144xbf16, #tpu.memory_space<vmem>>, vector<140x144xbf16>
    %cst_72 = arith.constant dense<0.000000e+00> : vector<8x144xf32>
    %89 = tpu.matmul %87, %88, %cst_72 {dimension_numbers = #tpu.dot_dimension_numbers<[1], [0], [0], [1], [0, 0, 1, 1], [], []>} : vector<8x140xbf16>, vector<140x144xbf16>, vector<8x144xf32> -> vector<8x144xf32>
    %c7 = arith.constant 7 : index
    %c0_73 = arith.constant 0 : index
    %c0_74 = arith.constant 0 : index
    %90 = vector.load %arg1[%c7, %c0_73, %c0_74] : memref<24x8x140xbf16, #tpu.memory_space<vmem>>, vector<1x8x140xbf16>
    %91 = vector.shape_cast %90 : vector<1x8x140xbf16> to vector<8x140xbf16>
    %c0_75 = arith.constant 0 : index
    %c0_76 = arith.constant 0 : index
    %92 = vector.load %arg2[%c0_75, %c0_76] : memref<140x144xbf16, #tpu.memory_space<vmem>>, vector<140x144xbf16>
    %cst_77 = arith.constant dense<0.000000e+00> : vector<8x144xf32>
    %93 = tpu.matmul %91, %92, %cst_77 {dimension_numbers = #tpu.dot_dimension_numbers<[1], [0], [0], [1], [0, 0, 1, 1], [], []>} : vector<8x140xbf16>, vector<140x144xbf16>, vector<8x144xf32> -> vector<8x144xf32>
    %94 = vector.broadcast %0 : vector<1x144xf32> to vector<8x144xf32>
    %95 = arith.addf %89, %94 : vector<8x144xf32>
    %cst_78 = arith.constant 0.000000e+00 : f32
    %96 = vector.broadcast %cst_78 : f32 to vector<8x144xf32>
    %97 = arith.maximumf %95, %96 : vector<8x144xf32>
    %98 = vector.broadcast %0 : vector<1x144xf32> to vector<8x144xf32>
    %99 = arith.addf %93, %98 : vector<8x144xf32>
    %cst_79 = arith.constant 0.000000e+00 : f32
    %100 = vector.broadcast %cst_79 : f32 to vector<8x144xf32>
    %101 = arith.maximumf %99, %100 : vector<8x144xf32>
    %102 = arith.maximumf %97, %101 : vector<8x144xf32>
    %103 = arith.truncf %102 : vector<8x144xf32> to vector<8x144xbf16>
    %c0_80 = arith.constant 0 : index
    %c0_81 = arith.constant 0 : index
    %104 = vector.load %arg4[%c0_80, %c0_81] : memref<144x128xbf16, #tpu.memory_space<vmem>>, vector<144x128xbf16>
    %cst_82 = arith.constant dense<0.000000e+00> : vector<8x128xf32>
    %105 = tpu.matmul %103, %104, %cst_82 {dimension_numbers = #tpu.dot_dimension_numbers<[1], [0], [0], [1], [0, 0, 1, 1], [], []>} : vector<8x144xbf16>, vector<144x128xbf16>, vector<8x128xf32> -> vector<8x128xf32>
    %c0_83 = arith.constant 0 : index
    %c0_84 = arith.constant 0 : index
    %106 = vector.load %arg5[%c0_83, %c0_84] : memref<144x128xbf16, #tpu.memory_space<vmem>>, vector<144x128xbf16>
    %cst_85 = arith.constant dense<0.000000e+00> : vector<8x128xf32>
    %107 = tpu.matmul %103, %106, %cst_85 {dimension_numbers = #tpu.dot_dimension_numbers<[1], [0], [0], [1], [0, 0, 1, 1], [], []>} : vector<8x144xbf16>, vector<144x128xbf16>, vector<8x128xf32> -> vector<8x128xf32>
    %108 = arith.maximumf %105, %107 : vector<8x128xf32>
    %109 = arith.truncf %108 : vector<8x128xf32> to vector<8x128xbf16>
    %c3_86 = arith.constant 3 : index
    %c0_87 = arith.constant 0 : index
    %c0_88 = arith.constant 0 : index
    %110 = vector.load %arg6[%c3_86, %c0_87, %c0_88] : memref<12x128x128xbf16, #tpu.memory_space<vmem>>, vector<1x128x128xbf16>
    %111 = vector.shape_cast %110 : vector<1x128x128xbf16> to vector<128x128xbf16>
    %cst_89 = arith.constant dense<0.000000e+00> : vector<8x128xf32>
    %112 = tpu.matmul %109, %111, %cst_89 {dimension_numbers = #tpu.dot_dimension_numbers<[1], [0], [0], [1], [0, 0, 1, 1], [], []>} : vector<8x128xbf16>, vector<128x128xbf16>, vector<8x128xf32> -> vector<8x128xf32>
    %113 = arith.addf %85, %112 : vector<8x128xf32>
    %c8 = arith.constant 8 : index
    %c0_90 = arith.constant 0 : index
    %c0_91 = arith.constant 0 : index
    %114 = vector.load %arg1[%c8, %c0_90, %c0_91] : memref<24x8x140xbf16, #tpu.memory_space<vmem>>, vector<1x8x140xbf16>
    %115 = vector.shape_cast %114 : vector<1x8x140xbf16> to vector<8x140xbf16>
    %c0_92 = arith.constant 0 : index
    %c0_93 = arith.constant 0 : index
    %116 = vector.load %arg2[%c0_92, %c0_93] : memref<140x144xbf16, #tpu.memory_space<vmem>>, vector<140x144xbf16>
    %cst_94 = arith.constant dense<0.000000e+00> : vector<8x144xf32>
    %117 = tpu.matmul %115, %116, %cst_94 {dimension_numbers = #tpu.dot_dimension_numbers<[1], [0], [0], [1], [0, 0, 1, 1], [], []>} : vector<8x140xbf16>, vector<140x144xbf16>, vector<8x144xf32> -> vector<8x144xf32>
    %c9 = arith.constant 9 : index
    %c0_95 = arith.constant 0 : index
    %c0_96 = arith.constant 0 : index
    %118 = vector.load %arg1[%c9, %c0_95, %c0_96] : memref<24x8x140xbf16, #tpu.memory_space<vmem>>, vector<1x8x140xbf16>
    %119 = vector.shape_cast %118 : vector<1x8x140xbf16> to vector<8x140xbf16>
    %c0_97 = arith.constant 0 : index
    %c0_98 = arith.constant 0 : index
    %120 = vector.load %arg2[%c0_97, %c0_98] : memref<140x144xbf16, #tpu.memory_space<vmem>>, vector<140x144xbf16>
    %cst_99 = arith.constant dense<0.000000e+00> : vector<8x144xf32>
    %121 = tpu.matmul %119, %120, %cst_99 {dimension_numbers = #tpu.dot_dimension_numbers<[1], [0], [0], [1], [0, 0, 1, 1], [], []>} : vector<8x140xbf16>, vector<140x144xbf16>, vector<8x144xf32> -> vector<8x144xf32>
    %122 = vector.broadcast %0 : vector<1x144xf32> to vector<8x144xf32>
    %123 = arith.addf %117, %122 : vector<8x144xf32>
    %cst_100 = arith.constant 0.000000e+00 : f32
    %124 = vector.broadcast %cst_100 : f32 to vector<8x144xf32>
    %125 = arith.maximumf %123, %124 : vector<8x144xf32>
    %126 = vector.broadcast %0 : vector<1x144xf32> to vector<8x144xf32>
    %127 = arith.addf %121, %126 : vector<8x144xf32>
    %cst_101 = arith.constant 0.000000e+00 : f32
    %128 = vector.broadcast %cst_101 : f32 to vector<8x144xf32>
    %129 = arith.maximumf %127, %128 : vector<8x144xf32>
    %130 = arith.maximumf %125, %129 : vector<8x144xf32>
    %131 = arith.truncf %130 : vector<8x144xf32> to vector<8x144xbf16>
    %c0_102 = arith.constant 0 : index
    %c0_103 = arith.constant 0 : index
    %132 = vector.load %arg4[%c0_102, %c0_103] : memref<144x128xbf16, #tpu.memory_space<vmem>>, vector<144x128xbf16>
    %cst_104 = arith.constant dense<0.000000e+00> : vector<8x128xf32>
    %133 = tpu.matmul %131, %132, %cst_104 {dimension_numbers = #tpu.dot_dimension_numbers<[1], [0], [0], [1], [0, 0, 1, 1], [], []>} : vector<8x144xbf16>, vector<144x128xbf16>, vector<8x128xf32> -> vector<8x128xf32>
    %c0_105 = arith.constant 0 : index
    %c0_106 = arith.constant 0 : index
    %134 = vector.load %arg5[%c0_105, %c0_106] : memref<144x128xbf16, #tpu.memory_space<vmem>>, vector<144x128xbf16>
    %cst_107 = arith.constant dense<0.000000e+00> : vector<8x128xf32>
    %135 = tpu.matmul %131, %134, %cst_107 {dimension_numbers = #tpu.dot_dimension_numbers<[1], [0], [0], [1], [0, 0, 1, 1], [], []>} : vector<8x144xbf16>, vector<144x128xbf16>, vector<8x128xf32> -> vector<8x128xf32>
    %136 = arith.maximumf %133, %135 : vector<8x128xf32>
    %137 = arith.truncf %136 : vector<8x128xf32> to vector<8x128xbf16>
    %c4_108 = arith.constant 4 : index
    %c0_109 = arith.constant 0 : index
    %c0_110 = arith.constant 0 : index
    %138 = vector.load %arg6[%c4_108, %c0_109, %c0_110] : memref<12x128x128xbf16, #tpu.memory_space<vmem>>, vector<1x128x128xbf16>
    %139 = vector.shape_cast %138 : vector<1x128x128xbf16> to vector<128x128xbf16>
    %cst_111 = arith.constant dense<0.000000e+00> : vector<8x128xf32>
    %140 = tpu.matmul %137, %139, %cst_111 {dimension_numbers = #tpu.dot_dimension_numbers<[1], [0], [0], [1], [0, 0, 1, 1], [], []>} : vector<8x128xbf16>, vector<128x128xbf16>, vector<8x128xf32> -> vector<8x128xf32>
    %141 = arith.addf %113, %140 : vector<8x128xf32>
    %c10 = arith.constant 10 : index
    %c0_112 = arith.constant 0 : index
    %c0_113 = arith.constant 0 : index
    %142 = vector.load %arg1[%c10, %c0_112, %c0_113] : memref<24x8x140xbf16, #tpu.memory_space<vmem>>, vector<1x8x140xbf16>
    %143 = vector.shape_cast %142 : vector<1x8x140xbf16> to vector<8x140xbf16>
    %c0_114 = arith.constant 0 : index
    %c0_115 = arith.constant 0 : index
    %144 = vector.load %arg2[%c0_114, %c0_115] : memref<140x144xbf16, #tpu.memory_space<vmem>>, vector<140x144xbf16>
    %cst_116 = arith.constant dense<0.000000e+00> : vector<8x144xf32>
    %145 = tpu.matmul %143, %144, %cst_116 {dimension_numbers = #tpu.dot_dimension_numbers<[1], [0], [0], [1], [0, 0, 1, 1], [], []>} : vector<8x140xbf16>, vector<140x144xbf16>, vector<8x144xf32> -> vector<8x144xf32>
    %c11 = arith.constant 11 : index
    %c0_117 = arith.constant 0 : index
    %c0_118 = arith.constant 0 : index
    %146 = vector.load %arg1[%c11, %c0_117, %c0_118] : memref<24x8x140xbf16, #tpu.memory_space<vmem>>, vector<1x8x140xbf16>
    %147 = vector.shape_cast %146 : vector<1x8x140xbf16> to vector<8x140xbf16>
    %c0_119 = arith.constant 0 : index
    %c0_120 = arith.constant 0 : index
    %148 = vector.load %arg2[%c0_119, %c0_120] : memref<140x144xbf16, #tpu.memory_space<vmem>>, vector<140x144xbf16>
    %cst_121 = arith.constant dense<0.000000e+00> : vector<8x144xf32>
    %149 = tpu.matmul %147, %148, %cst_121 {dimension_numbers = #tpu.dot_dimension_numbers<[1], [0], [0], [1], [0, 0, 1, 1], [], []>} : vector<8x140xbf16>, vector<140x144xbf16>, vector<8x144xf32> -> vector<8x144xf32>
    %150 = vector.broadcast %0 : vector<1x144xf32> to vector<8x144xf32>
    %151 = arith.addf %145, %150 : vector<8x144xf32>
    %cst_122 = arith.constant 0.000000e+00 : f32
    %152 = vector.broadcast %cst_122 : f32 to vector<8x144xf32>
    %153 = arith.maximumf %151, %152 : vector<8x144xf32>
    %154 = vector.broadcast %0 : vector<1x144xf32> to vector<8x144xf32>
    %155 = arith.addf %149, %154 : vector<8x144xf32>
    %cst_123 = arith.constant 0.000000e+00 : f32
    %156 = vector.broadcast %cst_123 : f32 to vector<8x144xf32>
    %157 = arith.maximumf %155, %156 : vector<8x144xf32>
    %158 = arith.maximumf %153, %157 : vector<8x144xf32>
    %159 = arith.truncf %158 : vector<8x144xf32> to vector<8x144xbf16>
    %c0_124 = arith.constant 0 : index
    %c0_125 = arith.constant 0 : index
    %160 = vector.load %arg4[%c0_124, %c0_125] : memref<144x128xbf16, #tpu.memory_space<vmem>>, vector<144x128xbf16>
    %cst_126 = arith.constant dense<0.000000e+00> : vector<8x128xf32>
    %161 = tpu.matmul %159, %160, %cst_126 {dimension_numbers = #tpu.dot_dimension_numbers<[1], [0], [0], [1], [0, 0, 1, 1], [], []>} : vector<8x144xbf16>, vector<144x128xbf16>, vector<8x128xf32> -> vector<8x128xf32>
    %c0_127 = arith.constant 0 : index
    %c0_128 = arith.constant 0 : index
    %162 = vector.load %arg5[%c0_127, %c0_128] : memref<144x128xbf16, #tpu.memory_space<vmem>>, vector<144x128xbf16>
    %cst_129 = arith.constant dense<0.000000e+00> : vector<8x128xf32>
    %163 = tpu.matmul %159, %162, %cst_129 {dimension_numbers = #tpu.dot_dimension_numbers<[1], [0], [0], [1], [0, 0, 1, 1], [], []>} : vector<8x144xbf16>, vector<144x128xbf16>, vector<8x128xf32> -> vector<8x128xf32>
    %164 = arith.maximumf %161, %163 : vector<8x128xf32>
    %165 = arith.truncf %164 : vector<8x128xf32> to vector<8x128xbf16>
    %c5_130 = arith.constant 5 : index
    %c0_131 = arith.constant 0 : index
    %c0_132 = arith.constant 0 : index
    %166 = vector.load %arg6[%c5_130, %c0_131, %c0_132] : memref<12x128x128xbf16, #tpu.memory_space<vmem>>, vector<1x128x128xbf16>
    %167 = vector.shape_cast %166 : vector<1x128x128xbf16> to vector<128x128xbf16>
    %cst_133 = arith.constant dense<0.000000e+00> : vector<8x128xf32>
    %168 = tpu.matmul %165, %167, %cst_133 {dimension_numbers = #tpu.dot_dimension_numbers<[1], [0], [0], [1], [0, 0, 1, 1], [], []>} : vector<8x128xbf16>, vector<128x128xbf16>, vector<8x128xf32> -> vector<8x128xf32>
    %169 = arith.addf %141, %168 : vector<8x128xf32>
    %c12 = arith.constant 12 : index
    %c0_134 = arith.constant 0 : index
    %c0_135 = arith.constant 0 : index
    %170 = vector.load %arg1[%c12, %c0_134, %c0_135] : memref<24x8x140xbf16, #tpu.memory_space<vmem>>, vector<1x8x140xbf16>
    %171 = vector.shape_cast %170 : vector<1x8x140xbf16> to vector<8x140xbf16>
    %c0_136 = arith.constant 0 : index
    %c0_137 = arith.constant 0 : index
    %172 = vector.load %arg2[%c0_136, %c0_137] : memref<140x144xbf16, #tpu.memory_space<vmem>>, vector<140x144xbf16>
    %cst_138 = arith.constant dense<0.000000e+00> : vector<8x144xf32>
    %173 = tpu.matmul %171, %172, %cst_138 {dimension_numbers = #tpu.dot_dimension_numbers<[1], [0], [0], [1], [0, 0, 1, 1], [], []>} : vector<8x140xbf16>, vector<140x144xbf16>, vector<8x144xf32> -> vector<8x144xf32>
    %c13 = arith.constant 13 : index
    %c0_139 = arith.constant 0 : index
    %c0_140 = arith.constant 0 : index
    %174 = vector.load %arg1[%c13, %c0_139, %c0_140] : memref<24x8x140xbf16, #tpu.memory_space<vmem>>, vector<1x8x140xbf16>
    %175 = vector.shape_cast %174 : vector<1x8x140xbf16> to vector<8x140xbf16>
    %c0_141 = arith.constant 0 : index
    %c0_142 = arith.constant 0 : index
    %176 = vector.load %arg2[%c0_141, %c0_142] : memref<140x144xbf16, #tpu.memory_space<vmem>>, vector<140x144xbf16>
    %cst_143 = arith.constant dense<0.000000e+00> : vector<8x144xf32>
    %177 = tpu.matmul %175, %176, %cst_143 {dimension_numbers = #tpu.dot_dimension_numbers<[1], [0], [0], [1], [0, 0, 1, 1], [], []>} : vector<8x140xbf16>, vector<140x144xbf16>, vector<8x144xf32> -> vector<8x144xf32>
    %178 = vector.broadcast %0 : vector<1x144xf32> to vector<8x144xf32>
    %179 = arith.addf %173, %178 : vector<8x144xf32>
    %cst_144 = arith.constant 0.000000e+00 : f32
    %180 = vector.broadcast %cst_144 : f32 to vector<8x144xf32>
    %181 = arith.maximumf %179, %180 : vector<8x144xf32>
    %182 = vector.broadcast %0 : vector<1x144xf32> to vector<8x144xf32>
    %183 = arith.addf %177, %182 : vector<8x144xf32>
    %cst_145 = arith.constant 0.000000e+00 : f32
    %184 = vector.broadcast %cst_145 : f32 to vector<8x144xf32>
    %185 = arith.maximumf %183, %184 : vector<8x144xf32>
    %186 = arith.maximumf %181, %185 : vector<8x144xf32>
    %187 = arith.truncf %186 : vector<8x144xf32> to vector<8x144xbf16>
    %c0_146 = arith.constant 0 : index
    %c0_147 = arith.constant 0 : index
    %188 = vector.load %arg4[%c0_146, %c0_147] : memref<144x128xbf16, #tpu.memory_space<vmem>>, vector<144x128xbf16>
    %cst_148 = arith.constant dense<0.000000e+00> : vector<8x128xf32>
    %189 = tpu.matmul %187, %188, %cst_148 {dimension_numbers = #tpu.dot_dimension_numbers<[1], [0], [0], [1], [0, 0, 1, 1], [], []>} : vector<8x144xbf16>, vector<144x128xbf16>, vector<8x128xf32> -> vector<8x128xf32>
    %c0_149 = arith.constant 0 : index
    %c0_150 = arith.constant 0 : index
    %190 = vector.load %arg5[%c0_149, %c0_150] : memref<144x128xbf16, #tpu.memory_space<vmem>>, vector<144x128xbf16>
    %cst_151 = arith.constant dense<0.000000e+00> : vector<8x128xf32>
    %191 = tpu.matmul %187, %190, %cst_151 {dimension_numbers = #tpu.dot_dimension_numbers<[1], [0], [0], [1], [0, 0, 1, 1], [], []>} : vector<8x144xbf16>, vector<144x128xbf16>, vector<8x128xf32> -> vector<8x128xf32>
    %192 = arith.maximumf %189, %191 : vector<8x128xf32>
    %193 = arith.truncf %192 : vector<8x128xf32> to vector<8x128xbf16>
    %c6_152 = arith.constant 6 : index
    %c0_153 = arith.constant 0 : index
    %c0_154 = arith.constant 0 : index
    %194 = vector.load %arg6[%c6_152, %c0_153, %c0_154] : memref<12x128x128xbf16, #tpu.memory_space<vmem>>, vector<1x128x128xbf16>
    %195 = vector.shape_cast %194 : vector<1x128x128xbf16> to vector<128x128xbf16>
    %cst_155 = arith.constant dense<0.000000e+00> : vector<8x128xf32>
    %196 = tpu.matmul %193, %195, %cst_155 {dimension_numbers = #tpu.dot_dimension_numbers<[1], [0], [0], [1], [0, 0, 1, 1], [], []>} : vector<8x128xbf16>, vector<128x128xbf16>, vector<8x128xf32> -> vector<8x128xf32>
    %197 = arith.addf %169, %196 : vector<8x128xf32>
    %c14 = arith.constant 14 : index
    %c0_156 = arith.constant 0 : index
    %c0_157 = arith.constant 0 : index
    %198 = vector.load %arg1[%c14, %c0_156, %c0_157] : memref<24x8x140xbf16, #tpu.memory_space<vmem>>, vector<1x8x140xbf16>
    %199 = vector.shape_cast %198 : vector<1x8x140xbf16> to vector<8x140xbf16>
    %c0_158 = arith.constant 0 : index
    %c0_159 = arith.constant 0 : index
    %200 = vector.load %arg2[%c0_158, %c0_159] : memref<140x144xbf16, #tpu.memory_space<vmem>>, vector<140x144xbf16>
    %cst_160 = arith.constant dense<0.000000e+00> : vector<8x144xf32>
    %201 = tpu.matmul %199, %200, %cst_160 {dimension_numbers = #tpu.dot_dimension_numbers<[1], [0], [0], [1], [0, 0, 1, 1], [], []>} : vector<8x140xbf16>, vector<140x144xbf16>, vector<8x144xf32> -> vector<8x144xf32>
    %c15 = arith.constant 15 : index
    %c0_161 = arith.constant 0 : index
    %c0_162 = arith.constant 0 : index
    %202 = vector.load %arg1[%c15, %c0_161, %c0_162] : memref<24x8x140xbf16, #tpu.memory_space<vmem>>, vector<1x8x140xbf16>
    %203 = vector.shape_cast %202 : vector<1x8x140xbf16> to vector<8x140xbf16>
    %c0_163 = arith.constant 0 : index
    %c0_164 = arith.constant 0 : index
    %204 = vector.load %arg2[%c0_163, %c0_164] : memref<140x144xbf16, #tpu.memory_space<vmem>>, vector<140x144xbf16>
    %cst_165 = arith.constant dense<0.000000e+00> : vector<8x144xf32>
    %205 = tpu.matmul %203, %204, %cst_165 {dimension_numbers = #tpu.dot_dimension_numbers<[1], [0], [0], [1], [0, 0, 1, 1], [], []>} : vector<8x140xbf16>, vector<140x144xbf16>, vector<8x144xf32> -> vector<8x144xf32>
    %206 = vector.broadcast %0 : vector<1x144xf32> to vector<8x144xf32>
    %207 = arith.addf %201, %206 : vector<8x144xf32>
    %cst_166 = arith.constant 0.000000e+00 : f32
    %208 = vector.broadcast %cst_166 : f32 to vector<8x144xf32>
    %209 = arith.maximumf %207, %208 : vector<8x144xf32>
    %210 = vector.broadcast %0 : vector<1x144xf32> to vector<8x144xf32>
    %211 = arith.addf %205, %210 : vector<8x144xf32>
    %cst_167 = arith.constant 0.000000e+00 : f32
    %212 = vector.broadcast %cst_167 : f32 to vector<8x144xf32>
    %213 = arith.maximumf %211, %212 : vector<8x144xf32>
    %214 = arith.maximumf %209, %213 : vector<8x144xf32>
    %215 = arith.truncf %214 : vector<8x144xf32> to vector<8x144xbf16>
    %c0_168 = arith.constant 0 : index
    %c0_169 = arith.constant 0 : index
    %216 = vector.load %arg4[%c0_168, %c0_169] : memref<144x128xbf16, #tpu.memory_space<vmem>>, vector<144x128xbf16>
    %cst_170 = arith.constant dense<0.000000e+00> : vector<8x128xf32>
    %217 = tpu.matmul %215, %216, %cst_170 {dimension_numbers = #tpu.dot_dimension_numbers<[1], [0], [0], [1], [0, 0, 1, 1], [], []>} : vector<8x144xbf16>, vector<144x128xbf16>, vector<8x128xf32> -> vector<8x128xf32>
    %c0_171 = arith.constant 0 : index
    %c0_172 = arith.constant 0 : index
    %218 = vector.load %arg5[%c0_171, %c0_172] : memref<144x128xbf16, #tpu.memory_space<vmem>>, vector<144x128xbf16>
    %cst_173 = arith.constant dense<0.000000e+00> : vector<8x128xf32>
    %219 = tpu.matmul %215, %218, %cst_173 {dimension_numbers = #tpu.dot_dimension_numbers<[1], [0], [0], [1], [0, 0, 1, 1], [], []>} : vector<8x144xbf16>, vector<144x128xbf16>, vector<8x128xf32> -> vector<8x128xf32>
    %220 = arith.maximumf %217, %219 : vector<8x128xf32>
    %221 = arith.truncf %220 : vector<8x128xf32> to vector<8x128xbf16>
    %c7_174 = arith.constant 7 : index
    %c0_175 = arith.constant 0 : index
    %c0_176 = arith.constant 0 : index
    %222 = vector.load %arg6[%c7_174, %c0_175, %c0_176] : memref<12x128x128xbf16, #tpu.memory_space<vmem>>, vector<1x128x128xbf16>
    %223 = vector.shape_cast %222 : vector<1x128x128xbf16> to vector<128x128xbf16>
    %cst_177 = arith.constant dense<0.000000e+00> : vector<8x128xf32>
    %224 = tpu.matmul %221, %223, %cst_177 {dimension_numbers = #tpu.dot_dimension_numbers<[1], [0], [0], [1], [0, 0, 1, 1], [], []>} : vector<8x128xbf16>, vector<128x128xbf16>, vector<8x128xf32> -> vector<8x128xf32>
    %225 = arith.addf %197, %224 : vector<8x128xf32>
    %c16 = arith.constant 16 : index
    %c0_178 = arith.constant 0 : index
    %c0_179 = arith.constant 0 : index
    %226 = vector.load %arg1[%c16, %c0_178, %c0_179] : memref<24x8x140xbf16, #tpu.memory_space<vmem>>, vector<1x8x140xbf16>
    %227 = vector.shape_cast %226 : vector<1x8x140xbf16> to vector<8x140xbf16>
    %c0_180 = arith.constant 0 : index
    %c0_181 = arith.constant 0 : index
    %228 = vector.load %arg2[%c0_180, %c0_181] : memref<140x144xbf16, #tpu.memory_space<vmem>>, vector<140x144xbf16>
    %cst_182 = arith.constant dense<0.000000e+00> : vector<8x144xf32>
    %229 = tpu.matmul %227, %228, %cst_182 {dimension_numbers = #tpu.dot_dimension_numbers<[1], [0], [0], [1], [0, 0, 1, 1], [], []>} : vector<8x140xbf16>, vector<140x144xbf16>, vector<8x144xf32> -> vector<8x144xf32>
    %c17 = arith.constant 17 : index
    %c0_183 = arith.constant 0 : index
    %c0_184 = arith.constant 0 : index
    %230 = vector.load %arg1[%c17, %c0_183, %c0_184] : memref<24x8x140xbf16, #tpu.memory_space<vmem>>, vector<1x8x140xbf16>
    %231 = vector.shape_cast %230 : vector<1x8x140xbf16> to vector<8x140xbf16>
    %c0_185 = arith.constant 0 : index
    %c0_186 = arith.constant 0 : index
    %232 = vector.load %arg2[%c0_185, %c0_186] : memref<140x144xbf16, #tpu.memory_space<vmem>>, vector<140x144xbf16>
    %cst_187 = arith.constant dense<0.000000e+00> : vector<8x144xf32>
    %233 = tpu.matmul %231, %232, %cst_187 {dimension_numbers = #tpu.dot_dimension_numbers<[1], [0], [0], [1], [0, 0, 1, 1], [], []>} : vector<8x140xbf16>, vector<140x144xbf16>, vector<8x144xf32> -> vector<8x144xf32>
    %234 = vector.broadcast %0 : vector<1x144xf32> to vector<8x144xf32>
    %235 = arith.addf %229, %234 : vector<8x144xf32>
    %cst_188 = arith.constant 0.000000e+00 : f32
    %236 = vector.broadcast %cst_188 : f32 to vector<8x144xf32>
    %237 = arith.maximumf %235, %236 : vector<8x144xf32>
    %238 = vector.broadcast %0 : vector<1x144xf32> to vector<8x144xf32>
    %239 = arith.addf %233, %238 : vector<8x144xf32>
    %cst_189 = arith.constant 0.000000e+00 : f32
    %240 = vector.broadcast %cst_189 : f32 to vector<8x144xf32>
    %241 = arith.maximumf %239, %240 : vector<8x144xf32>
    %242 = arith.maximumf %237, %241 : vector<8x144xf32>
    %243 = arith.truncf %242 : vector<8x144xf32> to vector<8x144xbf16>
    %c0_190 = arith.constant 0 : index
    %c0_191 = arith.constant 0 : index
    %244 = vector.load %arg4[%c0_190, %c0_191] : memref<144x128xbf16, #tpu.memory_space<vmem>>, vector<144x128xbf16>
    %cst_192 = arith.constant dense<0.000000e+00> : vector<8x128xf32>
    %245 = tpu.matmul %243, %244, %cst_192 {dimension_numbers = #tpu.dot_dimension_numbers<[1], [0], [0], [1], [0, 0, 1, 1], [], []>} : vector<8x144xbf16>, vector<144x128xbf16>, vector<8x128xf32> -> vector<8x128xf32>
    %c0_193 = arith.constant 0 : index
    %c0_194 = arith.constant 0 : index
    %246 = vector.load %arg5[%c0_193, %c0_194] : memref<144x128xbf16, #tpu.memory_space<vmem>>, vector<144x128xbf16>
    %cst_195 = arith.constant dense<0.000000e+00> : vector<8x128xf32>
    %247 = tpu.matmul %243, %246, %cst_195 {dimension_numbers = #tpu.dot_dimension_numbers<[1], [0], [0], [1], [0, 0, 1, 1], [], []>} : vector<8x144xbf16>, vector<144x128xbf16>, vector<8x128xf32> -> vector<8x128xf32>
    %248 = arith.maximumf %245, %247 : vector<8x128xf32>
    %249 = arith.truncf %248 : vector<8x128xf32> to vector<8x128xbf16>
    %c8_196 = arith.constant 8 : index
    %c0_197 = arith.constant 0 : index
    %c0_198 = arith.constant 0 : index
    %250 = vector.load %arg6[%c8_196, %c0_197, %c0_198] : memref<12x128x128xbf16, #tpu.memory_space<vmem>>, vector<1x128x128xbf16>
    %251 = vector.shape_cast %250 : vector<1x128x128xbf16> to vector<128x128xbf16>
    %cst_199 = arith.constant dense<0.000000e+00> : vector<8x128xf32>
    %252 = tpu.matmul %249, %251, %cst_199 {dimension_numbers = #tpu.dot_dimension_numbers<[1], [0], [0], [1], [0, 0, 1, 1], [], []>} : vector<8x128xbf16>, vector<128x128xbf16>, vector<8x128xf32> -> vector<8x128xf32>
    %253 = arith.addf %225, %252 : vector<8x128xf32>
    %c18 = arith.constant 18 : index
    %c0_200 = arith.constant 0 : index
    %c0_201 = arith.constant 0 : index
    %254 = vector.load %arg1[%c18, %c0_200, %c0_201] : memref<24x8x140xbf16, #tpu.memory_space<vmem>>, vector<1x8x140xbf16>
    %255 = vector.shape_cast %254 : vector<1x8x140xbf16> to vector<8x140xbf16>
    %c0_202 = arith.constant 0 : index
    %c0_203 = arith.constant 0 : index
    %256 = vector.load %arg2[%c0_202, %c0_203] : memref<140x144xbf16, #tpu.memory_space<vmem>>, vector<140x144xbf16>
    %cst_204 = arith.constant dense<0.000000e+00> : vector<8x144xf32>
    %257 = tpu.matmul %255, %256, %cst_204 {dimension_numbers = #tpu.dot_dimension_numbers<[1], [0], [0], [1], [0, 0, 1, 1], [], []>} : vector<8x140xbf16>, vector<140x144xbf16>, vector<8x144xf32> -> vector<8x144xf32>
    %c19 = arith.constant 19 : index
    %c0_205 = arith.constant 0 : index
    %c0_206 = arith.constant 0 : index
    %258 = vector.load %arg1[%c19, %c0_205, %c0_206] : memref<24x8x140xbf16, #tpu.memory_space<vmem>>, vector<1x8x140xbf16>
    %259 = vector.shape_cast %258 : vector<1x8x140xbf16> to vector<8x140xbf16>
    %c0_207 = arith.constant 0 : index
    %c0_208 = arith.constant 0 : index
    %260 = vector.load %arg2[%c0_207, %c0_208] : memref<140x144xbf16, #tpu.memory_space<vmem>>, vector<140x144xbf16>
    %cst_209 = arith.constant dense<0.000000e+00> : vector<8x144xf32>
    %261 = tpu.matmul %259, %260, %cst_209 {dimension_numbers = #tpu.dot_dimension_numbers<[1], [0], [0], [1], [0, 0, 1, 1], [], []>} : vector<8x140xbf16>, vector<140x144xbf16>, vector<8x144xf32> -> vector<8x144xf32>
    %262 = vector.broadcast %0 : vector<1x144xf32> to vector<8x144xf32>
    %263 = arith.addf %257, %262 : vector<8x144xf32>
    %cst_210 = arith.constant 0.000000e+00 : f32
    %264 = vector.broadcast %cst_210 : f32 to vector<8x144xf32>
    %265 = arith.maximumf %263, %264 : vector<8x144xf32>
    %266 = vector.broadcast %0 : vector<1x144xf32> to vector<8x144xf32>
    %267 = arith.addf %261, %266 : vector<8x144xf32>
    %cst_211 = arith.constant 0.000000e+00 : f32
    %268 = vector.broadcast %cst_211 : f32 to vector<8x144xf32>
    %269 = arith.maximumf %267, %268 : vector<8x144xf32>
    %270 = arith.maximumf %265, %269 : vector<8x144xf32>
    %271 = arith.truncf %270 : vector<8x144xf32> to vector<8x144xbf16>
    %c0_212 = arith.constant 0 : index
    %c0_213 = arith.constant 0 : index
    %272 = vector.load %arg4[%c0_212, %c0_213] : memref<144x128xbf16, #tpu.memory_space<vmem>>, vector<144x128xbf16>
    %cst_214 = arith.constant dense<0.000000e+00> : vector<8x128xf32>
    %273 = tpu.matmul %271, %272, %cst_214 {dimension_numbers = #tpu.dot_dimension_numbers<[1], [0], [0], [1], [0, 0, 1, 1], [], []>} : vector<8x144xbf16>, vector<144x128xbf16>, vector<8x128xf32> -> vector<8x128xf32>
    %c0_215 = arith.constant 0 : index
    %c0_216 = arith.constant 0 : index
    %274 = vector.load %arg5[%c0_215, %c0_216] : memref<144x128xbf16, #tpu.memory_space<vmem>>, vector<144x128xbf16>
    %cst_217 = arith.constant dense<0.000000e+00> : vector<8x128xf32>
    %275 = tpu.matmul %271, %274, %cst_217 {dimension_numbers = #tpu.dot_dimension_numbers<[1], [0], [0], [1], [0, 0, 1, 1], [], []>} : vector<8x144xbf16>, vector<144x128xbf16>, vector<8x128xf32> -> vector<8x128xf32>
    %276 = arith.maximumf %273, %275 : vector<8x128xf32>
    %277 = arith.truncf %276 : vector<8x128xf32> to vector<8x128xbf16>
    %c9_218 = arith.constant 9 : index
    %c0_219 = arith.constant 0 : index
    %c0_220 = arith.constant 0 : index
    %278 = vector.load %arg6[%c9_218, %c0_219, %c0_220] : memref<12x128x128xbf16, #tpu.memory_space<vmem>>, vector<1x128x128xbf16>
    %279 = vector.shape_cast %278 : vector<1x128x128xbf16> to vector<128x128xbf16>
    %cst_221 = arith.constant dense<0.000000e+00> : vector<8x128xf32>
    %280 = tpu.matmul %277, %279, %cst_221 {dimension_numbers = #tpu.dot_dimension_numbers<[1], [0], [0], [1], [0, 0, 1, 1], [], []>} : vector<8x128xbf16>, vector<128x128xbf16>, vector<8x128xf32> -> vector<8x128xf32>
    %281 = arith.addf %253, %280 : vector<8x128xf32>
    %c20 = arith.constant 20 : index
    %c0_222 = arith.constant 0 : index
    %c0_223 = arith.constant 0 : index
    %282 = vector.load %arg1[%c20, %c0_222, %c0_223] : memref<24x8x140xbf16, #tpu.memory_space<vmem>>, vector<1x8x140xbf16>
    %283 = vector.shape_cast %282 : vector<1x8x140xbf16> to vector<8x140xbf16>
    %c0_224 = arith.constant 0 : index
    %c0_225 = arith.constant 0 : index
    %284 = vector.load %arg2[%c0_224, %c0_225] : memref<140x144xbf16, #tpu.memory_space<vmem>>, vector<140x144xbf16>
    %cst_226 = arith.constant dense<0.000000e+00> : vector<8x144xf32>
    %285 = tpu.matmul %283, %284, %cst_226 {dimension_numbers = #tpu.dot_dimension_numbers<[1], [0], [0], [1], [0, 0, 1, 1], [], []>} : vector<8x140xbf16>, vector<140x144xbf16>, vector<8x144xf32> -> vector<8x144xf32>
    %c21 = arith.constant 21 : index
    %c0_227 = arith.constant 0 : index
    %c0_228 = arith.constant 0 : index
    %286 = vector.load %arg1[%c21, %c0_227, %c0_228] : memref<24x8x140xbf16, #tpu.memory_space<vmem>>, vector<1x8x140xbf16>
    %287 = vector.shape_cast %286 : vector<1x8x140xbf16> to vector<8x140xbf16>
    %c0_229 = arith.constant 0 : index
    %c0_230 = arith.constant 0 : index
    %288 = vector.load %arg2[%c0_229, %c0_230] : memref<140x144xbf16, #tpu.memory_space<vmem>>, vector<140x144xbf16>
    %cst_231 = arith.constant dense<0.000000e+00> : vector<8x144xf32>
    %289 = tpu.matmul %287, %288, %cst_231 {dimension_numbers = #tpu.dot_dimension_numbers<[1], [0], [0], [1], [0, 0, 1, 1], [], []>} : vector<8x140xbf16>, vector<140x144xbf16>, vector<8x144xf32> -> vector<8x144xf32>
    %290 = vector.broadcast %0 : vector<1x144xf32> to vector<8x144xf32>
    %291 = arith.addf %285, %290 : vector<8x144xf32>
    %cst_232 = arith.constant 0.000000e+00 : f32
    %292 = vector.broadcast %cst_232 : f32 to vector<8x144xf32>
    %293 = arith.maximumf %291, %292 : vector<8x144xf32>
    %294 = vector.broadcast %0 : vector<1x144xf32> to vector<8x144xf32>
    %295 = arith.addf %289, %294 : vector<8x144xf32>
    %cst_233 = arith.constant 0.000000e+00 : f32
    %296 = vector.broadcast %cst_233 : f32 to vector<8x144xf32>
    %297 = arith.maximumf %295, %296 : vector<8x144xf32>
    %298 = arith.maximumf %293, %297 : vector<8x144xf32>
    %299 = arith.truncf %298 : vector<8x144xf32> to vector<8x144xbf16>
    %c0_234 = arith.constant 0 : index
    %c0_235 = arith.constant 0 : index
    %300 = vector.load %arg4[%c0_234, %c0_235] : memref<144x128xbf16, #tpu.memory_space<vmem>>, vector<144x128xbf16>
    %cst_236 = arith.constant dense<0.000000e+00> : vector<8x128xf32>
    %301 = tpu.matmul %299, %300, %cst_236 {dimension_numbers = #tpu.dot_dimension_numbers<[1], [0], [0], [1], [0, 0, 1, 1], [], []>} : vector<8x144xbf16>, vector<144x128xbf16>, vector<8x128xf32> -> vector<8x128xf32>
    %c0_237 = arith.constant 0 : index
    %c0_238 = arith.constant 0 : index
    %302 = vector.load %arg5[%c0_237, %c0_238] : memref<144x128xbf16, #tpu.memory_space<vmem>>, vector<144x128xbf16>
    %cst_239 = arith.constant dense<0.000000e+00> : vector<8x128xf32>
    %303 = tpu.matmul %299, %302, %cst_239 {dimension_numbers = #tpu.dot_dimension_numbers<[1], [0], [0], [1], [0, 0, 1, 1], [], []>} : vector<8x144xbf16>, vector<144x128xbf16>, vector<8x128xf32> -> vector<8x128xf32>
    %304 = arith.maximumf %301, %303 : vector<8x128xf32>
    %305 = arith.truncf %304 : vector<8x128xf32> to vector<8x128xbf16>
    %c10_240 = arith.constant 10 : index
    %c0_241 = arith.constant 0 : index
    %c0_242 = arith.constant 0 : index
    %306 = vector.load %arg6[%c10_240, %c0_241, %c0_242] : memref<12x128x128xbf16, #tpu.memory_space<vmem>>, vector<1x128x128xbf16>
    %307 = vector.shape_cast %306 : vector<1x128x128xbf16> to vector<128x128xbf16>
    %cst_243 = arith.constant dense<0.000000e+00> : vector<8x128xf32>
    %308 = tpu.matmul %305, %307, %cst_243 {dimension_numbers = #tpu.dot_dimension_numbers<[1], [0], [0], [1], [0, 0, 1, 1], [], []>} : vector<8x128xbf16>, vector<128x128xbf16>, vector<8x128xf32> -> vector<8x128xf32>
    %309 = arith.addf %281, %308 : vector<8x128xf32>
    %c22 = arith.constant 22 : index
    %c0_244 = arith.constant 0 : index
    %c0_245 = arith.constant 0 : index
    %310 = vector.load %arg1[%c22, %c0_244, %c0_245] : memref<24x8x140xbf16, #tpu.memory_space<vmem>>, vector<1x8x140xbf16>
    %311 = vector.shape_cast %310 : vector<1x8x140xbf16> to vector<8x140xbf16>
    %c0_246 = arith.constant 0 : index
    %c0_247 = arith.constant 0 : index
    %312 = vector.load %arg2[%c0_246, %c0_247] : memref<140x144xbf16, #tpu.memory_space<vmem>>, vector<140x144xbf16>
    %cst_248 = arith.constant dense<0.000000e+00> : vector<8x144xf32>
    %313 = tpu.matmul %311, %312, %cst_248 {dimension_numbers = #tpu.dot_dimension_numbers<[1], [0], [0], [1], [0, 0, 1, 1], [], []>} : vector<8x140xbf16>, vector<140x144xbf16>, vector<8x144xf32> -> vector<8x144xf32>
    %c23 = arith.constant 23 : index
    %c0_249 = arith.constant 0 : index
    %c0_250 = arith.constant 0 : index
    %314 = vector.load %arg1[%c23, %c0_249, %c0_250] : memref<24x8x140xbf16, #tpu.memory_space<vmem>>, vector<1x8x140xbf16>
    %315 = vector.shape_cast %314 : vector<1x8x140xbf16> to vector<8x140xbf16>
    %c0_251 = arith.constant 0 : index
    %c0_252 = arith.constant 0 : index
    %316 = vector.load %arg2[%c0_251, %c0_252] : memref<140x144xbf16, #tpu.memory_space<vmem>>, vector<140x144xbf16>
    %cst_253 = arith.constant dense<0.000000e+00> : vector<8x144xf32>
    %317 = tpu.matmul %315, %316, %cst_253 {dimension_numbers = #tpu.dot_dimension_numbers<[1], [0], [0], [1], [0, 0, 1, 1], [], []>} : vector<8x140xbf16>, vector<140x144xbf16>, vector<8x144xf32> -> vector<8x144xf32>
    %318 = vector.broadcast %0 : vector<1x144xf32> to vector<8x144xf32>
    %319 = arith.addf %313, %318 : vector<8x144xf32>
    %cst_254 = arith.constant 0.000000e+00 : f32
    %320 = vector.broadcast %cst_254 : f32 to vector<8x144xf32>
    %321 = arith.maximumf %319, %320 : vector<8x144xf32>
    %322 = vector.broadcast %0 : vector<1x144xf32> to vector<8x144xf32>
    %323 = arith.addf %317, %322 : vector<8x144xf32>
    %cst_255 = arith.constant 0.000000e+00 : f32
    %324 = vector.broadcast %cst_255 : f32 to vector<8x144xf32>
    %325 = arith.maximumf %323, %324 : vector<8x144xf32>
    %326 = arith.maximumf %321, %325 : vector<8x144xf32>
    %327 = arith.truncf %326 : vector<8x144xf32> to vector<8x144xbf16>
    %c0_256 = arith.constant 0 : index
    %c0_257 = arith.constant 0 : index
    %328 = vector.load %arg4[%c0_256, %c0_257] : memref<144x128xbf16, #tpu.memory_space<vmem>>, vector<144x128xbf16>
    %cst_258 = arith.constant dense<0.000000e+00> : vector<8x128xf32>
    %329 = tpu.matmul %327, %328, %cst_258 {dimension_numbers = #tpu.dot_dimension_numbers<[1], [0], [0], [1], [0, 0, 1, 1], [], []>} : vector<8x144xbf16>, vector<144x128xbf16>, vector<8x128xf32> -> vector<8x128xf32>
    %c0_259 = arith.constant 0 : index
    %c0_260 = arith.constant 0 : index
    %330 = vector.load %arg5[%c0_259, %c0_260] : memref<144x128xbf16, #tpu.memory_space<vmem>>, vector<144x128xbf16>
    %cst_261 = arith.constant dense<0.000000e+00> : vector<8x128xf32>
    %331 = tpu.matmul %327, %330, %cst_261 {dimension_numbers = #tpu.dot_dimension_numbers<[1], [0], [0], [1], [0, 0, 1, 1], [], []>} : vector<8x144xbf16>, vector<144x128xbf16>, vector<8x128xf32> -> vector<8x128xf32>
    %332 = arith.maximumf %329, %331 : vector<8x128xf32>
    %333 = arith.truncf %332 : vector<8x128xf32> to vector<8x128xbf16>
    %c11_262 = arith.constant 11 : index
    %c0_263 = arith.constant 0 : index
    %c0_264 = arith.constant 0 : index
    %334 = vector.load %arg6[%c11_262, %c0_263, %c0_264] : memref<12x128x128xbf16, #tpu.memory_space<vmem>>, vector<1x128x128xbf16>
    %335 = vector.shape_cast %334 : vector<1x128x128xbf16> to vector<128x128xbf16>
    %cst_265 = arith.constant dense<0.000000e+00> : vector<8x128xf32>
    %336 = tpu.matmul %333, %335, %cst_265 {dimension_numbers = #tpu.dot_dimension_numbers<[1], [0], [0], [1], [0, 0, 1, 1], [], []>} : vector<8x128xbf16>, vector<128x128xbf16>, vector<8x128xf32> -> vector<8x128xf32>
    %337 = arith.addf %309, %336 : vector<8x128xf32>
    %c0_266 = arith.constant 0 : index
    %c0_267 = arith.constant 0 : index
    %338 = vector.load %arg7[%c0_266, %c0_267] : memref<1x128xf32, #tpu.memory_space<vmem>>, vector<1x128xf32>
    %339 = vector.broadcast %338 : vector<1x128xf32> to vector<8x128xf32>
    %340 = arith.addf %337, %339 : vector<8x128xf32>
    %cst_268 = arith.constant 0.000000e+00 : f32
    %341 = vector.broadcast %cst_268 : f32 to vector<8x128xf32>
    %342 = arith.maximumf %340, %341 : vector<8x128xf32>
    %343 = arith.truncf %342 : vector<8x128xf32> to vector<8x128xbf16>
    %c0_269 = arith.constant 0 : index
    %c0_270 = arith.constant 0 : index
    %344 = vector.load %arg8[%c0_269, %c0_270] : memref<128x128xbf16, #tpu.memory_space<vmem>>, vector<128x128xbf16>
    %cst_271 = arith.constant dense<0.000000e+00> : vector<8x128xf32>
    %345 = tpu.matmul %343, %344, %cst_271 {dimension_numbers = #tpu.dot_dimension_numbers<[1], [0], [0], [1], [0, 0, 1, 1], [], []>} : vector<8x128xbf16>, vector<128x128xbf16>, vector<8x128xf32> -> vector<8x128xf32>
    %c0_272 = arith.constant 0 : index
    %c0_273 = arith.constant 0 : index
    %346 = vector.load %arg9[%c0_272, %c0_273] : memref<1x128xf32, #tpu.memory_space<vmem>>, vector<1x128xf32>
    %347 = vector.broadcast %346 : vector<1x128xf32> to vector<8x128xf32>
    %348 = arith.addf %345, %347 : vector<8x128xf32>
    %cst_274 = arith.constant 0.000000e+00 : f32
    %349 = vector.broadcast %cst_274 : f32 to vector<8x128xf32>
    %350 = arith.maximumf %348, %349 : vector<8x128xf32>
    %351 = arith.truncf %350 : vector<8x128xf32> to vector<8x128xbf16>
    %c0_275 = arith.constant 0 : index
    %c0_276 = arith.constant 0 : index
    %352 = vector.load %arg10[%c0_275, %c0_276] : memref<128x128xbf16, #tpu.memory_space<vmem>>, vector<128x128xbf16>
    %cst_277 = arith.constant dense<0.000000e+00> : vector<8x128xf32>
    %353 = tpu.matmul %351, %352, %cst_277 {dimension_numbers = #tpu.dot_dimension_numbers<[1], [0], [0], [1], [0, 0, 1, 1], [], []>} : vector<8x128xbf16>, vector<128x128xbf16>, vector<8x128xf32> -> vector<8x128xf32>
    %c0_278 = arith.constant 0 : index
    %c0_279 = arith.constant 0 : index
    %354 = vector.load %arg11[%c0_278, %c0_279] : memref<1x128xf32, #tpu.memory_space<vmem>>, vector<1x128xf32>
    %355 = vector.broadcast %354 : vector<1x128xf32> to vector<8x128xf32>
    %356 = arith.addf %353, %355 : vector<8x128xf32>
    %c0_280 = arith.constant 0 : index
    %c0_281 = arith.constant 0 : index
    %357 = vector.load %arg12[%c0_280, %c0_281] : memref<8x128xf32, #tpu.memory_space<vmem>>, vector<8x128xf32>
    tpu.vector_store %arg12[%c0_280, %c0_281], %356 {strides = array<i32>} : memref<8x128xf32, #tpu.memory_space<vmem>>, vector<8x128xf32>,
    return
  }
  func.func @transform_0(%arg0: i32) -> (i32, i32, i32) {
    %c0_i32 = arith.constant 0 : i32
    %c0_i32_0 = arith.constant 0 : i32
    %c0_i32_1 = arith.constant 0 : i32
    return %c0_i32, %arg0, %c0_i32_0 : i32, i32, i32
  }
  func.func @transform_1(%arg0: i32) -> (i32, i32) {
    %c0_i32 = arith.constant 0 : i32
    %c0_i32_0 = arith.constant 0 : i32
    %c0_i32_1 = arith.constant 0 : i32
    return %c0_i32, %c0_i32_0 : i32, i32
  }
  func.func @transform_2(%arg0: i32) -> (i32, i32) {
    %c0_i32 = arith.constant 0 : i32
    %c0_i32_0 = arith.constant 0 : i32
    %c0_i32_1 = arith.constant 0 : i32
    return %c0_i32, %c0_i32_0 : i32, i32
  }
  func.func @transform_3(%arg0: i32) -> (i32, i32) {
    %c0_i32 = arith.constant 0 : i32
    %c0_i32_0 = arith.constant 0 : i32
    %c0_i32_1 = arith.constant 0 : i32
    return %c0_i32, %c0_i32_0 : i32, i32
  }
  func.func @transform_4(%arg0: i32) -> (i32, i32) {
    %c0_i32 = arith.constant 0 : i32
    %c0_i32_0 = arith.constant 0 : i32
    %c0_i32_1 = arith.constant 0 : i32
    return %c0_i32, %c0_i32_0 : i32, i32
  }
  func.func @transform_5(%arg0: i32) -> (i32, i32, i32) {
    %c0_i32 = arith.constant 0 : i32
    %c0_i32_0 = arith.constant 0 : i32
    %c0_i32_1 = arith.constant 0 : i32
    %c0_i32_2 = arith.constant 0 : i32
    return %c0_i32, %c0_i32_0, %c0_i32_1 : i32, i32, i32
  }
  func.func @transform_6(%arg0: i32) -> (i32, i32) {
    %c0_i32 = arith.constant 0 : i32
    %c0_i32_0 = arith.constant 0 : i32
    %c0_i32_1 = arith.constant 0 : i32
    return %c0_i32, %c0_i32_0 : i32, i32
  }
  func.func @transform_7(%arg0: i32) -> (i32, i32) {
    %c0_i32 = arith.constant 0 : i32
    %c0_i32_0 = arith.constant 0 : i32
    %c0_i32_1 = arith.constant 0 : i32
    return %c0_i32, %c0_i32_0 : i32, i32
  }
  func.func @transform_8(%arg0: i32) -> (i32, i32) {
    %c0_i32 = arith.constant 0 : i32
    %c0_i32_0 = arith.constant 0 : i32
    %c0_i32_1 = arith.constant 0 : i32
    return %c0_i32, %c0_i32_0 : i32, i32
  }
  func.func @transform_9(%arg0: i32) -> (i32, i32) {
    %c0_i32 = arith.constant 0 : i32
    %c0_i32_0 = arith.constant 0 : i32
    %c0_i32_1 = arith.constant 0 : i32
    return %c0_i32, %c0_i32_0 : i32, i32
  }
  func.func @transform_10(%arg0: i32) -> (i32, i32) {
    %c0_i32 = arith.constant 0 : i32
    %c0_i32_0 = arith.constant 0 : i32
    %c0_i32_1 = arith.constant 0 : i32
    return %c0_i32, %c0_i32_0 : i32, i32
  }
  func.func @transform_11(%arg0: i32) -> (i32, i32) {
    %c0_i32 = arith.constant 0 : i32
    %c0_i32_0 = arith.constant 0 : i32
    return %arg0, %c0_i32 : i32, i32
  }
}

</mosaic_0001>

<llo_original>
// kernel: cnn_forward.1
$region0: #{cnn_forward.1}
  #allocation0 [shape = 'u32[]', space=smem, size = 0x4, offset = 0x4, fixed_abs, tag = 'smem constant byte address 0x4 - core index']
  #allocation1 [shape = 'u32[144,128]{1,0:T(1,128)}', space=vmem, size = 0x12000, scoped, tag = 'internal scratch']
  %s0 = inlined_call_operand.vmem [shape: bf16[24,8,140], index: 0, kind: input, shape index: {}]
  %s1 = inlined_call_operand.vmem [shape: bf16[140,144], index: 1, kind: input, shape index: {}]
  %s2 = inlined_call_operand.vmem [shape: f32[1,144], index: 2, kind: input, shape index: {}]
  %s3 = inlined_call_operand.vmem [shape: bf16[144,128], index: 3, kind: input, shape index: {}]
  %s4 = inlined_call_operand.vmem [shape: bf16[144,128], index: 4, kind: input, shape index: {}]
  %s5 = inlined_call_operand.vmem [shape: bf16[12,128,128], index: 5, kind: input, shape index: {}]
  %s6 = inlined_call_operand.vmem [shape: f32[1,128], index: 6, kind: input, shape index: {}]
  %s7 = inlined_call_operand.vmem [shape: bf16[128,128], index: 7, kind: input, shape index: {}]
  %s8 = inlined_call_operand.vmem [shape: f32[1,128], index: 8, kind: input, shape index: {}]
  %s9 = inlined_call_operand.vmem [shape: bf16[128,128], index: 9, kind: input, shape index: {}]
  %s10 = inlined_call_operand.vmem [shape: f32[1,128], index: 10, kind: input, shape index: {}]
  %s11 = inlined_call_operand.vmem [shape: f32[8,128], index: 11, kind: output, shape index: {}]
  %s12 = sld [smem:[#allocation0]]
  $region54: #{cnn_forward.1} parent=0
    _
  %s14 = ssub.s32 1, %s12
  %s15 = scalar_select 0, %s14, %s12
  // Predicated region
  $region2: #{cnn_forward.1} parent=0 // pred_check
    _
  $region3: #{cnn_forward.1} parent=0 // pred_check_branch
    %17 = sbr.rel (0) target = $region5
  $region4: #{cnn_forward.1} parent=0 // pred_region
    _
  $region5: #{cnn_forward.1} parent=0 // pred_fallthru
    _
  // Predicated region
  $region6: #{cnn_forward.1} parent=0 // pred_check
    _
  $region7: #{cnn_forward.1} parent=0 // pred_check_branch
    %19 = sbr.rel (0) target = $region9
  $region8: #{cnn_forward.1} parent=0 // pred_region
    _
  $region9: #{cnn_forward.1} parent=0 // pred_fallthru
    _
  // Predicated region
  $region10: #{cnn_forward.1} parent=0 // pred_check
    _
  $region11: #{cnn_forward.1} parent=0 // pred_check_branch
    %21 = sbr.rel (0) target = $region13
  $region12: #{cnn_forward.1} parent=0 // pred_region
    _
  $region13: #{cnn_forward.1} parent=0 // pred_fallthru
    _
  // Predicated region
  $region14: #{cnn_forward.1} parent=0 // pred_check
    _
  $region15: #{cnn_forward.1} parent=0 // pred_check_branch
    %23 = sbr.rel (0) target = $region17
  $region16: #{cnn_forward.1} parent=0 // pred_region
    _
  $region17: #{cnn_forward.1} parent=0 // pred_fallthru
    _
  // Predicated region
  $region18: #{cnn_forward.1} parent=0 // pred_check
    _
  $region19: #{cnn_forward.1} parent=0 // pred_check_branch
    %25 = sbr.rel (0) target = $region21
  $region20: #{cnn_forward.1} parent=0 // pred_region
    _
  $region21: #{cnn_forward.1} parent=0 // pred_fallthru
    _
  // Predicated region
  $region22: #{cnn_forward.1} parent=0 // pred_check
    _
  $region23: #{cnn_forward.1} parent=0 // pred_check_branch
    %27 = sbr.rel (0) target = $region25
  $region24: #{cnn_forward.1} parent=0 // pred_region
    _
  $region25: #{cnn_forward.1} parent=0 // pred_fallthru
    _
  // Predicated region
  $region26: #{cnn_forward.1} parent=0 // pred_check
    _
  $region27: #{cnn_forward.1} parent=0 // pred_check_branch
    %29 = sbr.rel (0) target = $region29
  $region28: #{cnn_forward.1} parent=0 // pred_region
    _
  $region29: #{cnn_forward.1} parent=0 // pred_fallthru
    _
  // Predicated region
  $region30: #{cnn_forward.1} parent=0 // pred_check
    _
  $region31: #{cnn_forward.1} parent=0 // pred_check_branch
    %31 = sbr.rel (0) target = $region33
  $region32: #{cnn_forward.1} parent=0 // pred_region
    _
  $region33: #{cnn_forward.1} parent=0 // pred_fallthru
    _
  // Predicated region
  $region34: #{cnn_forward.1} parent=0 // pred_check
    _
  $region35: #{cnn_forward.1} parent=0 // pred_check_branch
    %33 = sbr.rel (0) target = $region37
  $region36: #{cnn_forward.1} parent=0 // pred_region
    _
  $region37: #{cnn_forward.1} parent=0 // pred_fallthru
    _
  // Predicated region
  $region38: #{cnn_forward.1} parent=0 // pred_check
    _
  $region39: #{cnn_forward.1} parent=0 // pred_check_branch
    %35 = sbr.rel (0) target = $region41
  $region40: #{cnn_forward.1} parent=0 // pred_region
    _
  $region41: #{cnn_forward.1} parent=0 // pred_fallthru
    _
  // Predicated region
  $region42: #{cnn_forward.1} parent=0 // pred_check
    _
  $region43: #{cnn_forward.1} parent=0 // pred_check_branch
    %37 = sbr.rel (0) target = $region45
  $region44: #{cnn_forward.1} parent=0 // pred_region
    _
  $region45: #{cnn_forward.1} parent=0 // pred_fallthru
    _
  %v39 = vld [vmem:[%s2] sm:$0x3]
  %v40 = vld [vmem:[%s0] sm:$0xff]
  %v41 = vld [vmem:[%s1] sm:$0xff]
  %v42 = vld [vmem:[%s1 + $0x8] sm:$0xff]
  %v43 = vld [vmem:[%s1 + $0x10] sm:$0xff]
  %v44 = vld [vmem:[%s1 + $0x18] sm:$0xff]
  %v45 = vld [vmem:[%s1 + $0x20] sm:$0xff]
  %v46 = vld [vmem:[%s1 + $0x28] sm:$0xff]
  %v47 = vld [vmem:[%s1 + $0x30] sm:$0xff]
  %v48 = vld [vmem:[%s1 + $0x38] sm:$0xff]
  %v49 = vld [vmem:[%s1 + $0x40] sm:$0xff]
  %v50 = vld [vmem:[%s1 + $0x48] sm:$0xff]
  %v51 = vld [vmem:[%s1 + $0x50] sm:$0xff]
  %v52 = vld [vmem:[%s1 + $0x58] sm:$0xff]
  %v53 = vld [vmem:[%s1 + $0x60] sm:$0xff]
  %v54 = vld [vmem:[%s1 + $0x68] sm:$0xff]
  %v55 = vld [vmem:[%s1 + $0x70] sm:$0xff]
  %v56 = vld [vmem:[%s1 + $0x78] sm:$0xff]
  %v57 = vld [vmem:[%s1 + $0x80] sm:$0xff]
  %v58 = vld [vmem:[%s1 + $0x88] sm:$0x33]
  %s59 = scalar_lea.vmem %s0, 8
  %v60 = vld [vmem:[%s59] sm:$0xff]
  %v62 = vlaneseq
  %v63 = vshrl.u32 %v62, 7
  %v64 = vsub.s32 0, %v63
  %v65 = vrot.slane %v39, %v64
  %v66 = vlaneseq
  %v67 = vshrl.u32 %v66, 7
  %v68 = vsub.s32 1, %v67
  %v69 = vrot.slane %v39, %v68
  %v73 = vunpack.c.l.b16 %v40
  %v74 = vunpack.c.h.b16 %v40
  %v75 = vpack.c.b16 %v73, %v73
  %v76 = vpack.c.b16 %v74, %v74
  %v96 = vunpack.c.l.b16 %v41
  %v97 = vunpack.c.h.b16 %v41
  %v98 = vunpack.c.l.b16 %v42
  %v99 = vunpack.c.h.b16 %v42
  %v100 = vunpack.c.l.b16 %v43
  %v101 = vunpack.c.h.b16 %v43
  %v102 = vunpack.c.l.b16 %v44
  %v103 = vunpack.c.h.b16 %v44
  %v104 = vunpack.c.l.b16 %v45
  %v105 = vunpack.c.h.b16 %v45
  %v106 = vunpack.c.l.b16 %v46
  %v107 = vunpack.c.h.b16 %v46
  %v108 = vunpack.c.l.b16 %v47
  %v109 = vunpack.c.h.b16 %v47
  %v110 = vunpack.c.l.b16 %v48
  %v111 = vunpack.c.h.b16 %v48
  %v112 = vunpack.c.l.b16 %v49
  %v113 = vunpack.c.h.b16 %v49
  %v114 = vunpack.c.l.b16 %v50
  %v115 = vunpack.c.h.b16 %v50
  %v116 = vunpack.c.l.b16 %v51
  %v117 = vunpack.c.h.b16 %v51
  %v118 = vunpack.c.l.b16 %v52
  %v119 = vunpack.c.h.b16 %v52
  %v120 = vunpack.c.l.b16 %v53
  %v121 = vunpack.c.h.b16 %v53
  %v122 = vunpack.c.l.b16 %v54
  %v123 = vunpack.c.h.b16 %v54
  %v124 = vunpack.c.l.b16 %v55
  %v125 = vunpack.c.h.b16 %v55
  %v126 = vunpack.c.l.b16 %v56
  %v127 = vunpack.c.h.b16 %v56
  %v128 = vunpack.c.l.b16 %v57
  %v129 = vunpack.c.h.b16 %v57
  %v130 = vunpack.c.l.b16 %v58
  %v131 = vunpack.c.h.b16 %v58
  %v132 = vpack.c.b16 %v98, %v96
  %v133 = vpack.c.b16 %v99, %v97
  %v134 = vpack.c.b16 %v102, %v100
  %v135 = vpack.c.b16 %v103, %v101
  %v136 = vpack.c.b16 %v106, %v104
  %v137 = vpack.c.b16 %v107, %v105
  %v138 = vpack.c.b16 %v110, %v108
  %v139 = vpack.c.b16 %v111, %v109
  %v140 = vpack.c.b16 %v114, %v112
  %v141 = vpack.c.b16 %v115, %v113
  %v142 = vpack.c.b16 %v118, %v116
  %v143 = vpack.c.b16 %v119, %v117
  %v144 = vpack.c.b16 %v122, %v120
  %v145 = vpack.c.b16 %v123, %v121
  %v146 = vpack.c.b16 %v126, %v124
  %v147 = vpack.c.b16 %v127, %v125
  %v148 = vpack.c.b16 %v130, %v128
  %v149 = vpack.c.b16 %v131, %v129
  %vm166 = vcmask 97280
  %v168 = vsel %vm166, %v76, 0
  %vm170 = vcmask 1045504
  %v172 = vsel %vm170, %v148, 0
  %v175 = vsel %vm170, %v149, 0
  %177 = vmatprep.subr.bf16.mxu0 %v133
  %178 = vmatpush1.bf16.msra.mxu0 %v132
  %179 = vmatprep.subr.bf16.mxu0 %v135
  %180 = vmatpush1.bf16.msra.mxu0 %v134
  %181 = vmatprep.subr.bf16.mxu0 %v137
  %182 = vmatpush1.bf16.msra.mxu0 %v136
  %183 = vmatprep.subr.bf16.mxu0 %v139
  %184 = vmatpush1.bf16.msra.mxu0 %v138
  %185 = vmatprep.subr.bf16.mxu0 %v141
  %186 = vmatpush1.bf16.msra.mxu0 %v140
  %187 = vmatprep.subr.bf16.mxu0 %v143
  %188 = vmatpush1.bf16.msra.mxu0 %v142
  %189 = vmatprep.subr.bf16.mxu0 %v145
  %190 = vmatpush1.bf16.msra.mxu0 %v144
  %191 = vmatprep.subr.bf16.mxu0 %v147
  %192 = vmatpush1.bf16.msra.mxu0 %v146
  %193 = vmatprep.subr.bf16.mxu0 %v175
  %194 = vmatpush1.bf16.msra.mxu0 %v172
  %195 = vmatprep.subr.bf16.mxu0 0
  %196 = vmatpush1.bf16.msra.mxu0 0
  %197 = vmatprep.subr.bf16.mxu0 0
  %198 = vmatpush1.bf16.msra.mxu0 0
  %199 = vmatprep.subr.bf16.mxu0 0
  %200 = vmatpush1.bf16.msra.mxu0 0
  %201 = vmatprep.subr.bf16.mxu0 0
  %202 = vmatpush1.bf16.msra.mxu0 0
  %203 = vmatprep.subr.bf16.mxu0 0
  %204 = vmatpush1.bf16.msra.mxu0 0
  %205 = vmatprep.subr.bf16.mxu0 0
  %206 = vmatpush1.bf16.msra.mxu0 0
  %207 = vmatprep.subr.bf16.mxu0 0
  %208 = vmatpush1.bf16.msra.mxu0 0
  %209 = vmatprep.mubr.bf16.mxu0 %v168
  %210 = vmatmul.mubr.bf16.gmra.mrb[0].mxu0 %v75
  %v211 = vpop.f32.mrb[0].mxu0
  %v212 = vadd.f32 %v65, %v211
  %v213 = vpop.f32.mrb[0].mxu0
  %v214 = vadd.f32 %v69, %v213
  %v215 = vpop.f32.mrb[0].mxu0
  %v216 = vpop.f32.mrb[0].mxu0
  %217 = vdwg.mxu0
  %v218 = vmax.f32 %v212, 0.0
  %v219 = vmax.f32 %v214, 0.0
  %v221 = vunpack.c.l.b16 %v60
  %v222 = vunpack.c.h.b16 %v60
  %v223 = vpack.c.b16 %v221, %v221
  %v224 = vpack.c.b16 %v222, %v222
  %v227 = vsel %vm166, %v224, 0
  %229 = vmatprep.subr.bf16.mxu0 %v133
  %230 = vmatpush1.bf16.msra.mxu0 %v132
  %231 = vmatprep.subr.bf16.mxu0 %v135
  %232 = vmatpush1.bf16.msra.mxu0 %v134
  %233 = vmatprep.subr.bf16.mxu0 %v137
  %234 = vmatpush1.bf16.msra.mxu0 %v136
  %235 = vmatprep.subr.bf16.mxu0 %v139
  %236 = vmatpush1.bf16.msra.mxu0 %v138
  %237 = vmatprep.subr.bf16.mxu0 %v141
  %238 = vmatpush1.bf16.msra.mxu0 %v140
  %239 = vmatprep.subr.bf16.mxu0 %v143
  %240 = vmatpush1.bf16.msra.mxu0 %v142
  %241 = vmatprep.subr.bf16.mxu0 %v145
  %242 = vmatpush1.bf16.msra.mxu0 %v144
  %243 = vmatprep.subr.bf16.mxu0 %v147
  %244 = vmatpush1.bf16.msra.mxu0 %v146
  %245 = vmatprep.subr.bf16.mxu0 %v175
  %246 = vmatpush1.bf16.msra.mxu0 %v172
  %247 = vmatprep.subr.bf16.mxu0 0
  %248 = vmatpush1.bf16.msra.mxu0 0
  %249 = vmatprep.subr.bf16.mxu0 0
  %250 = vmatpush1.bf16.msra.mxu0 0
  %251 = vmatprep.subr.bf16.mxu0 0
  %252 = vmatpush1.bf16.msra.mxu0 0
  %253 = vmatprep.subr.bf16.mxu0 0
  %254 = vmatpush1.bf16.msra.mxu0 0
  %255 = vmatprep.subr.bf16.mxu0 0
  %256 = vmatpush1.bf16.msra.mxu0 0
  %257 = vmatprep.subr.bf16.mxu0 0
  %258 = vmatpush1.bf16.msra.mxu0 0
  %259 = vmatprep.subr.bf16.mxu0 0
  %260 = vmatpush1.bf16.msra.mxu0 0
  %261 = vmatprep.mubr.bf16.mxu0 %v227
  %262 = vmatmul.mubr.bf16.gmra.mrb[0].mxu0 %v223
  %v263 = vpop.f32.mrb[0].mxu0
  %v264 = vadd.f32 %v65, %v263
  %v265 = vpop.f32.mrb[0].mxu0
  %v266 = vadd.f32 %v69, %v265
  %v267 = vpop.f32.mrb[0].mxu0
  %v268 = vpop.f32.mrb[0].mxu0
  %269 = vdwg.mxu0
  %v270 = vmax.f32 %v264, 0.0
  %v271 = vmax.f32 %v266, 0.0
  %v272 = vmax.f32 %v218, %v270
  %v273 = vmax.f32 %v219, %v271
  %v274 = vpack.c.bf16 %v272, %v272
  %v275 = vpack.c.bf16 %v273, %v273
  %v276 = vld [vmem:[%s3] sm:$0xf]
  %v277 = vld [vmem:[%s3 + $0x4] sm:$0xf]
  %v278 = vld [vmem:[%s3 + $0x8] sm:$0xf]
  %v279 = vld [vmem:[%s3 + $0xc] sm:$0xf]
  %v280 = vld [vmem:[%s3 + $0x10] sm:$0xf]
  %v281 = vld [vmem:[%s3 + $0x14] sm:$0xf]
  %v282 = vld [vmem:[%s3 + $0x18] sm:$0xf]
  %v283 = vld [vmem:[%s3 + $0x1c] sm:$0xf]
  %v284 = vld [vmem:[%s3 + $0x20] sm:$0xf]
  %v285 = vld [vmem:[%s3 + $0x24] sm:$0xf]
  %v286 = vld [vmem:[%s3 + $0x28] sm:$0xf]
  %v287 = vld [vmem:[%s3 + $0x2c] sm:$0xf]
  %v288 = vld [vmem:[%s3 + $0x30] sm:$0xf]
  %v289 = vld [vmem:[%s3 + $0x34] sm:$0xf]
  %v290 = vld [vmem:[%s3 + $0x38] sm:$0xf]
  %v291 = vld [vmem:[%s3 + $0x3c] sm:$0xf]
  %v292 = vld [vmem:[%s3 + $0x40] sm:$0xf]
  %v293 = vld [vmem:[%s3 + $0x44] sm:$0xf]
  %v312 = vunpack.c.l.b16 %v276
  %v313 = vunpack.c.l.b16 %v277
  %v314 = vunpack.c.l.b16 %v278
  %v315 = vunpack.c.l.b16 %v279
  %v316 = vunpack.c.l.b16 %v280
  %v317 = vunpack.c.l.b16 %v281
  %v318 = vunpack.c.l.b16 %v282
  %v319 = vunpack.c.l.b16 %v283
  %v320 = vunpack.c.l.b16 %v284
  %v321 = vunpack.c.l.b16 %v285
  %v322 = vunpack.c.l.b16 %v286
  %v323 = vunpack.c.l.b16 %v287
  %v324 = vunpack.c.l.b16 %v288
  %v325 = vunpack.c.l.b16 %v289
  %v326 = vunpack.c.l.b16 %v290
  %v327 = vunpack.c.l.b16 %v291
  %v328 = vunpack.c.l.b16 %v292
  %v329 = vunpack.c.l.b16 %v293
  %v330 = vpack.c.b16 %v313, %v312
  %v331 = vpack.c.b16 %v315, %v314
  %v332 = vpack.c.b16 %v317, %v316
  %v333 = vpack.c.b16 %v319, %v318
  %v334 = vpack.c.b16 %v321, %v320
  %v335 = vpack.c.b16 %v323, %v322
  %v336 = vpack.c.b16 %v325, %v324
  %v337 = vpack.c.b16 %v327, %v326
  %v338 = vpack.c.b16 %v329, %v328
  %vm348 = vcmask 130048
  %v350 = vsel %vm348, %v275, 0
  %352 = vmatprep.subr.bf16.mxu0 0
  %353 = vmatpush1.bf16.msra.mxu0 %v330
  %354 = vmatprep.subr.bf16.mxu0 0
  %355 = vmatpush1.bf16.msra.mxu0 %v331
  %356 = vmatprep.subr.bf16.mxu0 0
  %357 = vmatpush1.bf16.msra.mxu0 %v332
  %358 = vmatprep.subr.bf16.mxu0 0
  %359 = vmatpush1.bf16.msra.mxu0 %v333
  %360 = vmatprep.subr.bf16.mxu0 0
  %361 = vmatpush1.bf16.msra.mxu0 %v334
  %362 = vmatprep.subr.bf16.mxu0 0
  %363 = vmatpush1.bf16.msra.mxu0 %v335
  %364 = vmatprep.subr.bf16.mxu0 0
  %365 = vmatpush1.bf16.msra.mxu0 %v336
  %366 = vmatprep.subr.bf16.mxu0 0
  %367 = vmatpush1.bf16.msra.mxu0 %v337
  %368 = vmatprep.subr.bf16.mxu0 0
  %369 = vmatpush1.bf16.msra.mxu0 %v338
  %370 = vmatprep.subr.bf16.mxu0 0
  %371 = vmatpush1.bf16.msra.mxu0 0
  %372 = vmatprep.subr.bf16.mxu0 0
  %373 = vmatpush1.bf16.msra.mxu0 0
  %374 = vmatprep.subr.bf16.mxu0 0
  %375 = vmatpush1.bf16.msra.mxu0 0
  %376 = vmatprep.subr.bf16.mxu0 0
  %377 = vmatpush1.bf16.msra.mxu0 0
  %378 = vmatprep.subr.bf16.mxu0 0
  %379 = vmatpush1.bf16.msra.mxu0 0
  %380 = vmatprep.subr.bf16.mxu0 0
  %381 = vmatpush1.bf16.msra.mxu0 0
  %382 = vmatprep.subr.bf16.mxu0 0
  %383 = vmatpush1.bf16.msra.mxu0 0
  %384 = vmatprep.mubr.bf16.mxu0 %v350
  %385 = vmatmul.mubr.bf16.gmra.mrb[0].mxu0 %v274
  %v386 = vpop.f32.mrb[0].mxu0
  %v387 = vadd.f32 0.0, %v386
  %v388 = vpop.f32.mrb[0].mxu0
  %v389 = vpop.f32.mrb[0].mxu0
  %v390 = vpop.f32.mrb[0].mxu0
  %391 = vdwg.mxu0
  %v392 = vld [vmem:[%s4] sm:$0xf]
  %v393 = vld [vmem:[%s4 + $0x4] sm:$0xf]
  %v394 = vld [vmem:[%s4 + $0x8] sm:$0xf]
  %v395 = vld [vmem:[%s4 + $0xc] sm:$0xf]
  %v396 = vld [vmem:[%s4 + $0x10] sm:$0xf]
  %v397 = vld [vmem:[%s4 + $0x14] sm:$0xf]
  %v398 = vld [vmem:[%s4 + $0x18] sm:$0xf]
  %v399 = vld [vmem:[%s4 + $0x1c] sm:$0xf]
  %v400 = vld [vmem:[%s4 + $0x20] sm:$0xf]
  %v401 = vld [vmem:[%s4 + $0x24] sm:$0xf]
  %v402 = vld [vmem:[%s4 + $0x28] sm:$0xf]
  %v403 = vld [vmem:[%s4 + $0x2c] sm:$0xf]
  %v404 = vld [vmem:[%s4 + $0x30] sm:$0xf]
  %v405 = vld [vmem:[%s4 + $0x34] sm:$0xf]
  %v406 = vld [vmem:[%s4 + $0x38] sm:$0xf]
  %v407 = vld [vmem:[%s4 + $0x3c] sm:$0xf]
  %v408 = vld [vmem:[%s4 + $0x40] sm:$0xf]
  %v409 = vld [vmem:[%s4 + $0x44] sm:$0xf]
  %v428 = vunpack.c.l.b16 %v392
  %v429 = vunpack.c.l.b16 %v393
  %v430 = vunpack.c.l.b16 %v394
  %v431 = vunpack.c.l.b16 %v395
  %v432 = vunpack.c.l.b16 %v396
  %v433 = vunpack.c.l.b16 %v397
  %v434 = vunpack.c.l.b16 %v398
  %v435 = vunpack.c.l.b16 %v399
  %v436 = vunpack.c.l.b16 %v400
  %v437 = vunpack.c.l.b16 %v401
  %v438 = vunpack.c.l.b16 %v402
  %v439 = vunpack.c.l.b16 %v403
  %v440 = vunpack.c.l.b16 %v404
  %v441 = vunpack.c.l.b16 %v405
  %v442 = vunpack.c.l.b16 %v406
  %v443 = vunpack.c.l.b16 %v407
  %v444 = vunpack.c.l.b16 %v408
  %v445 = vunpack.c.l.b16 %v409
  %v446 = vpack.c.b16 %v429, %v428
  %v447 = vpack.c.b16 %v431, %v430
  %v448 = vpack.c.b16 %v433, %v432
  %v449 = vpack.c.b16 %v435, %v434
  %v450 = vpack.c.b16 %v437, %v436
  %v451 = vpack.c.b16 %v439, %v438
  %v452 = vpack.c.b16 %v441, %v440
  %v453 = vpack.c.b16 %v443, %v442
  %v454 = vpack.c.b16 %v445, %v444
  %464 = vmatprep.subr.bf16.mxu0 0
  %465 = vmatpush1.bf16.msra.mxu0 %v446
  %466 = vmatprep.subr.bf16.mxu0 0
  %467 = vmatpush1.bf16.msra.mxu0 %v447
  %468 = vmatprep.subr.bf16.mxu0 0
  %469 = vmatpush1.bf16.msra.mxu0 %v448
  %470 = vmatprep.subr.bf16.mxu0 0
  %471 = vmatpush1.bf16.msra.mxu0 %v449
  %472 = vmatprep.subr.bf16.mxu0 0
  %473 = vmatpush1.bf16.msra.mxu0 %v450
  %474 = vmatprep.subr.bf16.mxu0 0
  %475 = vmatpush1.bf16.msra.mxu0 %v451
  %476 = vmatprep.subr.bf16.mxu0 0
  %477 = vmatpush1.bf16.msra.mxu0 %v452
  %478 = vmatprep.subr.bf16.mxu0 0
  %479 = vmatpush1.bf16.msra.mxu0 %v453
  %480 = vmatprep.subr.bf16.mxu0 0
  %481 = vmatpush1.bf16.msra.mxu0 %v454
  %482 = vmatprep.subr.bf16.mxu0 0
  %483 = vmatpush1.bf16.msra.mxu0 0
  %484 = vmatprep.subr.bf16.mxu0 0
  %485 = vmatpush1.bf16.msra.mxu0 0
  %486 = vmatprep.subr.bf16.mxu0 0
  %487 = vmatpush1.bf16.msra.mxu0 0
  %488 = vmatprep.subr.bf16.mxu0 0
  %489 = vmatpush1.bf16.msra.mxu0 0
  %490 = vmatprep.subr.bf16.mxu0 0
  %491 = vmatpush1.bf16.msra.mxu0 0
  %492 = vmatprep.subr.bf16.mxu0 0
  %493 = vmatpush1.bf16.msra.mxu0 0
  %494 = vmatprep.subr.bf16.mxu0 0
  %495 = vmatpush1.bf16.msra.mxu0 0
  %496 = vmatprep.mubr.bf16.mxu0 %v350
  %497 = vmatmul.mubr.bf16.gmra.mrb[0].mxu0 %v274
  %v498 = vpop.f32.mrb[0].mxu0
  %v499 = vadd.f32 0.0, %v498
  %v500 = vpop.f32.mrb[0].mxu0
  %v501 = vpop.f32.mrb[0].mxu0
  %v502 = vpop.f32.mrb[0].mxu0
  %503 = vdwg.mxu0
  %v504 = vmax.f32 %v387, %v499
  %v505 = vpack.c.bf16 %v504, %v504
  %v506 = vld [vmem:[%s5] sm:$0xf]
  %v507 = vld [vmem:[%s5 + $0x4] sm:$0xf]
  %v508 = vld [vmem:[%s5 + $0x8] sm:$0xf]
  %v509 = vld [vmem:[%s5 + $0xc] sm:$0xf]
  %v510 = vld [vmem:[%s5 + $0x10] sm:$0xf]
  %v511 = vld [vmem:[%s5 + $0x14] sm:$0xf]
  %v512 = vld [vmem:[%s5 + $0x18] sm:$0xf]
  %v513 = vld [vmem:[%s5 + $0x1c] sm:$0xf]
  %v514 = vld [vmem:[%s5 + $0x20] sm:$0xf]
  %v515 = vld [vmem:[%s5 + $0x24] sm:$0xf]
  %v516 = vld [vmem:[%s5 + $0x28] sm:$0xf]
  %v517 = vld [vmem:[%s5 + $0x2c] sm:$0xf]
  %v518 = vld [vmem:[%s5 + $0x30] sm:$0xf]
  %v519 = vld [vmem:[%s5 + $0x34] sm:$0xf]
  %v520 = vld [vmem:[%s5 + $0x38] sm:$0xf]
  %v521 = vld [vmem:[%s5 + $0x3c] sm:$0xf]
  %s522 = scalar_lea.vmem %s0, 16
  %v523 = vld [vmem:[%s522] sm:$0xff]
  %s524 = scalar_lea.vmem %s0, 24
  %v525 = vld [vmem:[%s524] sm:$0xff]
  %v527 = vunpack.c.l.b16 %v523
  %v528 = vunpack.c.h.b16 %v523
  %v529 = vpack.c.b16 %v527, %v527
  %v530 = vpack.c.b16 %v528, %v528
  %v533 = vsel %vm166, %v530, 0
  %535 = vmatprep.subr.bf16.mxu0 %v133
  %536 = vmatpush1.bf16.msra.mxu0 %v132
  %537 = vmatprep.subr.bf16.mxu0 %v135
  %538 = vmatpush1.bf16.msra.mxu0 %v134
  %539 = vmatprep.subr.bf16.mxu0 %v137
  %540 = vmatpush1.bf16.msra.mxu0 %v136
  %541 = vmatprep.subr.bf16.mxu0 %v139
  %542 = vmatpush1.bf16.msra.mxu0 %v138
  %543 = vmatprep.subr.bf16.mxu0 %v141
  %544 = vmatpush1.bf16.msra.mxu0 %v140
  %545 = vmatprep.subr.bf16.mxu0 %v143
  %546 = vmatpush1.bf16.msra.mxu0 %v142
  %547 = vmatprep.subr.bf16.mxu0 %v145
  %548 = vmatpush1.bf16.msra.mxu0 %v144
  %549 = vmatprep.subr.bf16.mxu0 %v147
  %550 = vmatpush1.bf16.msra.mxu0 %v146
  %551 = vmatprep.subr.bf16.mxu0 %v175
  %552 = vmatpush1.bf16.msra.mxu0 %v172
  %553 = vmatprep.subr.bf16.mxu0 0
  %554 = vmatpush1.bf16.msra.mxu0 0
  %555 = vmatprep.subr.bf16.mxu0 0
  %556 = vmatpush1.bf16.msra.mxu0 0
  %557 = vmatprep.subr.bf16.mxu0 0
  %558 = vmatpush1.bf16.msra.mxu0 0
  %559 = vmatprep.subr.bf16.mxu0 0
  %560 = vmatpush1.bf16.msra.mxu0 0
  %561 = vmatprep.subr.bf16.mxu0 0
  %562 = vmatpush1.bf16.msra.mxu0 0
  %563 = vmatprep.subr.bf16.mxu0 0
  %564 = vmatpush1.bf16.msra.mxu0 0
  %565 = vmatprep.subr.bf16.mxu0 0
  %566 = vmatpush1.bf16.msra.mxu0 0
  %567 = vmatprep.mubr.bf16.mxu0 %v533
  %568 = vmatmul.mubr.bf16.gmra.mrb[0].mxu0 %v529
  %v569 = vpop.f32.mrb[0].mxu0
  %v570 = vadd.f32 %v65, %v569
  %v571 = vpop.f32.mrb[0].mxu0
  %v572 = vadd.f32 %v69, %v571
  %v573 = vpop.f32.mrb[0].mxu0
  %v574 = vpop.f32.mrb[0].mxu0
  %575 = vdwg.mxu0
  %v576 = vmax.f32 %v570, 0.0
  %v577 = vmax.f32 %v572, 0.0
  %v579 = vunpack.c.l.b16 %v525
  %v580 = vunpack.c.h.b16 %v525
  %v581 = vpack.c.b16 %v579, %v579
  %v582 = vpack.c.b16 %v580, %v580
  %v585 = vsel %vm166, %v582, 0
  %587 = vmatprep.subr.bf16.mxu0 %v133
  %588 = vmatpush1.bf16.msra.mxu0 %v132
  %589 = vmatprep.subr.bf16.mxu0 %v135
  %590 = vmatpush1.bf16.msra.mxu0 %v134
  %591 = vmatprep.subr.bf16.mxu0 %v137
  %592 = vmatpush1.bf16.msra.mxu0 %v136
  %593 = vmatprep.subr.bf16.mxu0 %v139
  %594 = vmatpush1.bf16.msra.mxu0 %v138
  %595 = vmatprep.subr.bf16.mxu0 %v141
  %596 = vmatpush1.bf16.msra.mxu0 %v140
  %597 = vmatprep.subr.bf16.mxu0 %v143
  %598 = vmatpush1.bf16.msra.mxu0 %v142
  %599 = vmatprep.subr.bf16.mxu0 %v145
  %600 = vmatpush1.bf16.msra.mxu0 %v144
  %601 = vmatprep.subr.bf16.mxu0 %v147
  %602 = vmatpush1.bf16.msra.mxu0 %v146
  %603 = vmatprep.subr.bf16.mxu0 %v175
  %604 = vmatpush1.bf16.msra.mxu0 %v172
  %605 = vmatprep.subr.bf16.mxu0 0
  %606 = vmatpush1.bf16.msra.mxu0 0
  %607 = vmatprep.subr.bf16.mxu0 0
  %608 = vmatpush1.bf16.msra.mxu0 0
  %609 = vmatprep.subr.bf16.mxu0 0
  %610 = vmatpush1.bf16.msra.mxu0 0
  %611 = vmatprep.subr.bf16.mxu0 0
  %612 = vmatpush1.bf16.msra.mxu0 0
  %613 = vmatprep.subr.bf16.mxu0 0
  %614 = vmatpush1.bf16.msra.mxu0 0
  %615 = vmatprep.subr.bf16.mxu0 0
  %616 = vmatpush1.bf16.msra.mxu0 0
  %617 = vmatprep.subr.bf16.mxu0 0
  %618 = vmatpush1.bf16.msra.mxu0 0
  %619 = vmatprep.mubr.bf16.mxu0 %v585
  %620 = vmatmul.mubr.bf16.gmra.mrb[0].mxu0 %v581
  %v621 = vpop.f32.mrb[0].mxu0
  %v622 = vadd.f32 %v65, %v621
  %v623 = vpop.f32.mrb[0].mxu0
  %v624 = vadd.f32 %v69, %v623
  %v625 = vpop.f32.mrb[0].mxu0
  %v626 = vpop.f32.mrb[0].mxu0
  %627 = vdwg.mxu0
  %v628 = vmax.f32 %v622, 0.0
  %v629 = vmax.f32 %v624, 0.0
  %v630 = vmax.f32 %v576, %v628
  %v631 = vmax.f32 %v577, %v629
  %v632 = vpack.c.bf16 %v630, %v630
  %v633 = vpack.c.bf16 %v631, %v631
  %v635 = vsel %vm348, %v633, 0
  %637 = vmatprep.subr.bf16.mxu0 0
  %638 = vmatpush1.bf16.msra.mxu0 %v330
  %639 = vmatprep.subr.bf16.mxu0 0
  %640 = vmatpush1.bf16.msra.mxu0 %v331
  %641 = vmatprep.subr.bf16.mxu0 0
  %642 = vmatpush1.bf16.msra.mxu0 %v332
  %643 = vmatprep.subr.bf16.mxu0 0
  %644 = vmatpush1.bf16.msra.mxu0 %v333
  %645 = vmatprep.subr.bf16.mxu0 0
  %646 = vmatpush1.bf16.msra.mxu0 %v334
  %647 = vmatprep.subr.bf16.mxu0 0
  %648 = vmatpush1.bf16.msra.mxu0 %v335
  %649 = vmatprep.subr.bf16.mxu0 0
  %650 = vmatpush1.bf16.msra.mxu0 %v336
  %651 = vmatprep.subr.bf16.mxu0 0
  %652 = vmatpush1.bf16.msra.mxu0 %v337
  %653 = vmatprep.subr.bf16.mxu0 0
  %654 = vmatpush1.bf16.msra.mxu0 %v338
  %655 = vmatprep.subr.bf16.mxu0 0
  %656 = vmatpush1.bf16.msra.mxu0 0
  %657 = vmatprep.subr.bf16.mxu0 0
  %658 = vmatpush1.bf16.msra.mxu0 0
  %659 = vmatprep.subr.bf16.mxu0 0
  %660 = vmatpush1.bf16.msra.mxu0 0
  %661 = vmatprep.subr.bf16.mxu0 0
  %662 = vmatpush1.bf16.msra.mxu0 0
  %663 = vmatprep.subr.bf16.mxu0 0
  %664 = vmatpush1.bf16.msra.mxu0 0
  %665 = vmatprep.subr.bf16.mxu0 0
  %666 = vmatpush1.bf16.msra.mxu0 0
  %667 = vmatprep.subr.bf16.mxu0 0
  %668 = vmatpush1.bf16.msra.mxu0 0
  %669 = vmatprep.mubr.bf16.mxu0 %v635
  %670 = vmatmul.mubr.bf16.gmra.mrb[0].mxu0 %v632
  %v671 = vpop.f32.mrb[0].mxu0
  %v672 = vadd.f32 0.0, %v671
  %v673 = vpop.f32.mrb[0].mxu0
  %v674 = vpop.f32.mrb[0].mxu0
  %v675 = vpop.f32.mrb[0].mxu0
  %676 = vdwg.mxu0
  %677 = vmatprep.subr.bf16.mxu0 0
  %678 = vmatpush1.bf16.msra.mxu0 %v446
  %679 = vmatprep.subr.bf16.mxu0 0
  %680 = vmatpush1.bf16.msra.mxu0 %v447
  %681 = vmatprep.subr.bf16.mxu0 0
  %682 = vmatpush1.bf16.msra.mxu0 %v448
  %683 = vmatprep.subr.bf16.mxu0 0
  %684 = vmatpush1.bf16.msra.mxu0 %v449
  %685 = vmatprep.subr.bf16.mxu0 0
  %686 = vmatpush1.bf16.msra.mxu0 %v450
  %687 = vmatprep.subr.bf16.mxu0 0
  %688 = vmatpush1.bf16.msra.mxu0 %v451
  %689 = vmatprep.subr.bf16.mxu0 0
  %690 = vmatpush1.bf16.msra.mxu0 %v452
  %691 = vmatprep.subr.bf16.mxu0 0
  %692 = vmatpush1.bf16.msra.mxu0 %v453
  %693 = vmatprep.subr.bf16.mxu0 0
  %694 = vmatpush1.bf16.msra.mxu0 %v454
  %695 = vmatprep.subr.bf16.mxu0 0
  %696 = vmatpush1.bf16.msra.mxu0 0
  %697 = vmatprep.subr.bf16.mxu0 0
  %698 = vmatpush1.bf16.msra.mxu0 0
  %699 = vmatprep.subr.bf16.mxu0 0
  %700 = vmatpush1.bf16.msra.mxu0 0
  %701 = vmatprep.subr.bf16.mxu0 0
  %702 = vmatpush1.bf16.msra.mxu0 0
  %703 = vmatprep.subr.bf16.mxu0 0
  %704 = vmatpush1.bf16.msra.mxu0 0
  %705 = vmatprep.subr.bf16.mxu0 0
  %706 = vmatpush1.bf16.msra.mxu0 0
  %707 = vmatprep.subr.bf16.mxu0 0
  %708 = vmatpush1.bf16.msra.mxu0 0
  %709 = vmatprep.mubr.bf16.mxu0 %v635
  %710 = vmatmul.mubr.bf16.gmra.mrb[0].mxu0 %v632
  %v711 = vpop.f32.mrb[0].mxu0
  %v712 = vadd.f32 0.0, %v711
  %v713 = vpop.f32.mrb[0].mxu0
  %v714 = vpop.f32.mrb[0].mxu0
  %v715 = vpop.f32.mrb[0].mxu0
  %716 = vdwg.mxu0
  %v717 = vmax.f32 %v672, %v712
  %v718 = vpack.c.bf16 %v717, %v717
  %s719 = scalar_lea.vmem %s5, 64
  %v720 = vld [vmem:[%s719] sm:$0xf]
  %v721 = vld [vmem:[%s719 + $0x4] sm:$0xf]
  %v722 = vld [vmem:[%s719 + $0x8] sm:$0xf]
  %v723 = vld [vmem:[%s719 + $0xc] sm:$0xf]
  %v724 = vld [vmem:[%s719 + $0x10] sm:$0xf]
  %v725 = vld [vmem:[%s719 + $0x14] sm:$0xf]
  %v726 = vld [vmem:[%s719 + $0x18] sm:$0xf]
  %v727 = vld [vmem:[%s719 + $0x1c] sm:$0xf]
  %v728 = vld [vmem:[%s719 + $0x20] sm:$0xf]
  %v729 = vld [vmem:[%s719 + $0x24] sm:$0xf]
  %v730 = vld [vmem:[%s719 + $0x28] sm:$0xf]
  %v731 = vld [vmem:[%s719 + $0x2c] sm:$0xf]
  %v732 = vld [vmem:[%s719 + $0x30] sm:$0xf]
  %v733 = vld [vmem:[%s719 + $0x34] sm:$0xf]
  %v734 = vld [vmem:[%s719 + $0x38] sm:$0xf]
  %v735 = vld [vmem:[%s719 + $0x3c] sm:$0xf]
  %v752 = vunpack.c.l.b16 %v720
  %v753 = vunpack.c.l.b16 %v721
  %v754 = vunpack.c.l.b16 %v722
  %v755 = vunpack.c.l.b16 %v723
  %v756 = vunpack.c.l.b16 %v724
  %v757 = vunpack.c.l.b16 %v725
  %v758 = vunpack.c.l.b16 %v726
  %v759 = vunpack.c.l.b16 %v727
  %v760 = vunpack.c.l.b16 %v728
  %v761 = vunpack.c.l.b16 %v729
  %v762 = vunpack.c.l.b16 %v730
  %v763 = vunpack.c.l.b16 %v731
  %v764 = vunpack.c.l.b16 %v732
  %v765 = vunpack.c.l.b16 %v733
  %v766 = vunpack.c.l.b16 %v734
  %v767 = vunpack.c.l.b16 %v735
  %v768 = vpack.c.b16 %v753, %v752
  %v769 = vpack.c.b16 %v755, %v754
  %v770 = vpack.c.b16 %v757, %v756
  %v771 = vpack.c.b16 %v759, %v758
  %v772 = vpack.c.b16 %v761, %v760
  %v773 = vpack.c.b16 %v763, %v762
  %v774 = vpack.c.b16 %v765, %v764
  %v775 = vpack.c.b16 %v767, %v766
  %784 = vmatprep.subr.bf16.mxu0 0
  %785 = vmatpush1.bf16.msra.mxu0 %v768
  %786 = vmatprep.subr.bf16.mxu0 0
  %787 = vmatpush1.bf16.msra.mxu0 %v769
  %788 = vmatprep.subr.bf16.mxu0 0
  %789 = vmatpush1.bf16.msra.mxu0 %v770
  %790 = vmatprep.subr.bf16.mxu0 0
  %791 = vmatpush1.bf16.msra.mxu0 %v771
  %792 = vmatprep.subr.bf16.mxu0 0
  %793 = vmatpush1.bf16.msra.mxu0 %v772
  %794 = vmatprep.subr.bf16.mxu0 0
  %795 = vmatpush1.bf16.msra.mxu0 %v773
  %796 = vmatprep.subr.bf16.mxu0 0
  %797 = vmatpush1.bf16.msra.mxu0 %v774
  %798 = vmatprep.subr.bf16.mxu0 0
  %799 = vmatpush1.bf16.msra.mxu0 %v775
  %800 = vmatprep.subr.bf16.mxu0 0
  %801 = vmatpush1.bf16.msra.mxu0 0
  %802 = vmatprep.subr.bf16.mxu0 0
  %803 = vmatpush1.bf16.msra.mxu0 0
  %804 = vmatprep.subr.bf16.mxu0 0
  %805 = vmatpush1.bf16.msra.mxu0 0
  %806 = vmatprep.subr.bf16.mxu0 0
  %807 = vmatpush1.bf16.msra.mxu0 0
  %808 = vmatprep.subr.bf16.mxu0 0
  %809 = vmatpush1.bf16.msra.mxu0 0
  %810 = vmatprep.subr.bf16.mxu0 0
  %811 = vmatpush1.bf16.msra.mxu0 0
  %812 = vmatprep.subr.bf16.mxu0 0
  %813 = vmatpush1.bf16.msra.mxu0 0
  %814 = vmatprep.subr.bf16.mxu0 0
  %815 = vmatpush1.bf16.msra.mxu0 0
  %816 = vmatprep.mubr.bf16.mxu0 0
  %817 = vmatmul.mubr.bf16.gmra.mrb[0].mxu0 %v718
  %v818 = vpop.f32.mrb[0].mxu0
  %v819 = vadd.f32 0.0, %v818
  %v820 = vpop.f32.mrb[0].mxu0
  %v821 = vpop.f32.mrb[0].mxu0
  %v822 = vpop.f32.mrb[0].mxu0
  %823 = vdwg.mxu0
  %v840 = vunpack.c.l.b16 %v506
  %v841 = vunpack.c.l.b16 %v507
  %v842 = vunpack.c.l.b16 %v508
  %v843 = vunpack.c.l.b16 %v509
  %v844 = vunpack.c.l.b16 %v510
  %v845 = vunpack.c.l.b16 %v511
  %v846 = vunpack.c.l.b16 %v512
  %v847 = vunpack.c.l.b16 %v513
  %v848 = vunpack.c.l.b16 %v514
  %v849 = vunpack.c.l.b16 %v515
  %v850 = vunpack.c.l.b16 %v516
  %v851 = vunpack.c.l.b16 %v517
  %v852 = vunpack.c.l.b16 %v518
  %v853 = vunpack.c.l.b16 %v519
  %v854 = vunpack.c.l.b16 %v520
  %v855 = vunpack.c.l.b16 %v521
  %v856 = vpack.c.b16 %v841, %v840
  %v857 = vpack.c.b16 %v843, %v842
  %v858 = vpack.c.b16 %v845, %v844
  %v859 = vpack.c.b16 %v847, %v846
  %v860 = vpack.c.b16 %v849, %v848
  %v861 = vpack.c.b16 %v851, %v850
  %v862 = vpack.c.b16 %v853, %v852
  %v863 = vpack.c.b16 %v855, %v854
  %872 = vmatprep.subr.bf16.mxu0 0
  %873 = vmatpush1.bf16.msra.mxu0 %v856
  %874 = vmatprep.subr.bf16.mxu0 0
  %875 = vmatpush1.bf16.msra.mxu0 %v857
  %876 = vmatprep.subr.bf16.mxu0 0
  %877 = vmatpush1.bf16.msra.mxu0 %v858
  %878 = vmatprep.subr.bf16.mxu0 0
  %879 = vmatpush1.bf16.msra.mxu0 %v859
  %880 = vmatprep.subr.bf16.mxu0 0
  %881 = vmatpush1.bf16.msra.mxu0 %v860
  %882 = vmatprep.subr.bf16.mxu0 0
  %883 = vmatpush1.bf16.msra.mxu0 %v861
  %884 = vmatprep.subr.bf16.mxu0 0
  %885 = vmatpush1.bf16.msra.mxu0 %v862
  %886 = vmatprep.subr.bf16.mxu0 0
  %887 = vmatpush1.bf16.msra.mxu0 %v863
  %888 = vmatprep.subr.bf16.mxu0 0
  %889 = vmatpush1.bf16.msra.mxu0 0
  %890 = vmatprep.subr.bf16.mxu0 0
  %891 = vmatpush1.bf16.msra.mxu0 0
  %892 = vmatprep.subr.bf16.mxu0 0
  %893 = vmatpush1.bf16.msra.mxu0 0
  %894 = vmatprep.subr.bf16.mxu0 0
  %895 = vmatpush1.bf16.msra.mxu0 0
  %896 = vmatprep.subr.bf16.mxu0 0
  %897 = vmatpush1.bf16.msra.mxu0 0
  %898 = vmatprep.subr.bf16.mxu0 0
  %899 = vmatpush1.bf16.msra.mxu0 0
  %900 = vmatprep.subr.bf16.mxu0 0
  %901 = vmatpush1.bf16.msra.mxu0 0
  %902 = vmatprep.subr.bf16.mxu0 0
  %903 = vmatpush1.bf16.msra.mxu0 0
  %904 = vmatprep.mubr.bf16.mxu0 0
  %905 = vmatmul.mubr.bf16.gmra.mrb[0].mxu0 %v505
  %v906 = vpop.f32.mrb[0].mxu0
  %v907 = vadd.f32 %v819, %v906
  %v908 = vpop.f32.mrb[0].mxu0
  %v909 = vpop.f32.mrb[0].mxu0
  %v910 = vpop.f32.mrb[0].mxu0
  %911 = vdwg.mxu0
  %s912 = scalar_lea.vmem %s0, 32
  %v913 = vld [vmem:[%s912] sm:$0xff]
  %s914 = scalar_lea.vmem %s0, 40
  %v915 = vld [vmem:[%s914] sm:$0xff]
  %v917 = vunpack.c.l.b16 %v913
  %v918 = vunpack.c.h.b16 %v913
  %v919 = vpack.c.b16 %v917, %v917
  %v920 = vpack.c.b16 %v918, %v918
  %v923 = vsel %vm166, %v920, 0
  %925 = vmatprep.subr.bf16.mxu0 %v133
  %926 = vmatpush1.bf16.msra.mxu0 %v132
  %927 = vmatprep.subr.bf16.mxu0 %v135
  %928 = vmatpush1.bf16.msra.mxu0 %v134
  %929 = vmatprep.subr.bf16.mxu0 %v137
  %930 = vmatpush1.bf16.msra.mxu0 %v136
  %931 = vmatprep.subr.bf16.mxu0 %v139
  %932 = vmatpush1.bf16.msra.mxu0 %v138
  %933 = vmatprep.subr.bf16.mxu0 %v141
  %934 = vmatpush1.bf16.msra.mxu0 %v140
  %935 = vmatprep.subr.bf16.mxu0 %v143
  %936 = vmatpush1.bf16.msra.mxu0 %v142
  %937 = vmatprep.subr.bf16.mxu0 %v145
  %938 = vmatpush1.bf16.msra.mxu0 %v144
  %939 = vmatprep.subr.bf16.mxu0 %v147
  %940 = vmatpush1.bf16.msra.mxu0 %v146
  %941 = vmatprep.subr.bf16.mxu0 %v175
  %942 = vmatpush1.bf16.msra.mxu0 %v172
  %943 = vmatprep.subr.bf16.mxu0 0
  %944 = vmatpush1.bf16.msra.mxu0 0
  %945 = vmatprep.subr.bf16.mxu0 0
  %946 = vmatpush1.bf16.msra.mxu0 0
  %947 = vmatprep.subr.bf16.mxu0 0
  %948 = vmatpush1.bf16.msra.mxu0 0
  %949 = vmatprep.subr.bf16.mxu0 0
  %950 = vmatpush1.bf16.msra.mxu0 0
  %951 = vmatprep.subr.bf16.mxu0 0
  %952 = vmatpush1.bf16.msra.mxu0 0
  %953 = vmatprep.subr.bf16.mxu0 0
  %954 = vmatpush1.bf16.msra.mxu0 0
  %955 = vmatprep.subr.bf16.mxu0 0
  %956 = vmatpush1.bf16.msra.mxu0 0
  %957 = vmatprep.mubr.bf16.mxu0 %v923
  %958 = vmatmul.mubr.bf16.gmra.mrb[0].mxu0 %v919
  %v959 = vpop.f32.mrb[0].mxu0
  %v960 = vadd.f32 %v65, %v959
  %v961 = vpop.f32.mrb[0].mxu0
  %v962 = vadd.f32 %v69, %v961
  %v963 = vpop.f32.mrb[0].mxu0
  %v964 = vpop.f32.mrb[0].mxu0
  %965 = vdwg.mxu0
  %v966 = vmax.f32 %v960, 0.0
  %v967 = vmax.f32 %v962, 0.0
  %v969 = vunpack.c.l.b16 %v915
  %v970 = vunpack.c.h.b16 %v915
  %v971 = vpack.c.b16 %v969, %v969
  %v972 = vpack.c.b16 %v970, %v970
  %v975 = vsel %vm166, %v972, 0
  %977 = vmatprep.subr.bf16.mxu0 %v133
  %978 = vmatpush1.bf16.msra.mxu0 %v132
  %979 = vmatprep.subr.bf16.mxu0 %v135
  %980 = vmatpush1.bf16.msra.mxu0 %v134
  %981 = vmatprep.subr.bf16.mxu0 %v137
  %982 = vmatpush1.bf16.msra.mxu0 %v136
  %983 = vmatprep.subr.bf16.mxu0 %v139
  %984 = vmatpush1.bf16.msra.mxu0 %v138
  %985 = vmatprep.subr.bf16.mxu0 %v141
  %986 = vmatpush1.bf16.msra.mxu0 %v140
  %987 = vmatprep.subr.bf16.mxu0 %v143
  %988 = vmatpush1.bf16.msra.mxu0 %v142
  %989 = vmatprep.subr.bf16.mxu0 %v145
  %990 = vmatpush1.bf16.msra.mxu0 %v144
  %991 = vmatprep.subr.bf16.mxu0 %v147
  %992 = vmatpush1.bf16.msra.mxu0 %v146
  %993 = vmatprep.subr.bf16.mxu0 %v175
  %994 = vmatpush1.bf16.msra.mxu0 %v172
  %995 = vmatprep.subr.bf16.mxu0 0
  %996 = vmatpush1.bf16.msra.mxu0 0
  %997 = vmatprep.subr.bf16.mxu0 0
  %998 = vmatpush1.bf16.msra.mxu0 0
  %999 = vmatprep.subr.bf16.mxu0 0
  %1000 = vmatpush1.bf16.msra.mxu0 0
  %1001 = vmatprep.subr.bf16.mxu0 0
  %1002 = vmatpush1.bf16.msra.mxu0 0
  %1003 = vmatprep.subr.bf16.mxu0 0
  %1004 = vmatpush1.bf16.msra.mxu0 0
  %1005 = vmatprep.subr.bf16.mxu0 0
  %1006 = vmatpush1.bf16.msra.mxu0 0
  %1007 = vmatprep.subr.bf16.mxu0 0
  %1008 = vmatpush1.bf16.msra.mxu0 0
  %1009 = vmatprep.mubr.bf16.mxu0 %v975
  %1010 = vmatmul.mubr.bf16.gmra.mrb[0].mxu0 %v971
  %v1011 = vpop.f32.mrb[0].mxu0
  %v1012 = vadd.f32 %v65, %v1011
  %v1013 = vpop.f32.mrb[0].mxu0
  %v1014 = vadd.f32 %v69, %v1013
  %v1015 = vpop.f32.mrb[0].mxu0
  %v1016 = vpop.f32.mrb[0].mxu0
  %1017 = vdwg.mxu0
  %v1018 = vmax.f32 %v1012, 0.0
  %v1019 = vmax.f32 %v1014, 0.0
  %v1020 = vmax.f32 %v966, %v1018
  %v1021 = vmax.f32 %v967, %v1019
  %v1022 = vpack.c.bf16 %v1020, %v1020
  %v1023 = vpack.c.bf16 %v1021, %v1021
  %v1025 = vsel %vm348, %v1023, 0
  %1027 = vmatprep.subr.bf16.mxu0 0
  %1028 = vmatpush1.bf16.msra.mxu0 %v330
  %1029 = vmatprep.subr.bf16.mxu0 0
  %1030 = vmatpush1.bf16.msra.mxu0 %v331
  %1031 = vmatprep.subr.bf16.mxu0 0
  %1032 = vmatpush1.bf16.msra.mxu0 %v332
  %1033 = vmatprep.subr.bf16.mxu0 0
  %1034 = vmatpush1.bf16.msra.mxu0 %v333
  %1035 = vmatprep.subr.bf16.mxu0 0
  %1036 = vmatpush1.bf16.msra.mxu0 %v334
  %1037 = vmatprep.subr.bf16.mxu0 0
  %1038 = vmatpush1.bf16.msra.mxu0 %v335
  %1039 = vmatprep.subr.bf16.mxu0 0
  %1040 = vmatpush1.bf16.msra.mxu0 %v336
  %1041 = vmatprep.subr.bf16.mxu0 0
  %1042 = vmatpush1.bf16.msra.mxu0 %v337
  %1043 = vmatprep.subr.bf16.mxu0 0
  %1044 = vmatpush1.bf16.msra.mxu0 %v338
  %1045 = vmatprep.subr.bf16.mxu0 0
  %1046 = vmatpush1.bf16.msra.mxu0 0
  %1047 = vmatprep.subr.bf16.mxu0 0
  %1048 = vmatpush1.bf16.msra.mxu0 0
  %1049 = vmatprep.subr.bf16.mxu0 0
  %1050 = vmatpush1.bf16.msra.mxu0 0
  %1051 = vmatprep.subr.bf16.mxu0 0
  %1052 = vmatpush1.bf16.msra.mxu0 0
  %1053 = vmatprep.subr.bf16.mxu0 0
  %1054 = vmatpush1.bf16.msra.mxu0 0
  %1055 = vmatprep.subr.bf16.mxu0 0
  %1056 = vmatpush1.bf16.msra.mxu0 0
  %1057 = vmatprep.subr.bf16.mxu0 0
  %1058 = vmatpush1.bf16.msra.mxu0 0
  %1059 = vmatprep.mubr.bf16.mxu0 %v1025
  %1060 = vmatmul.mubr.bf16.gmra.mrb[0].mxu0 %v1022
  %v1061 = vpop.f32.mrb[0].mxu0
  %v1062 = vadd.f32 0.0, %v1061
  %v1063 = vpop.f32.mrb[0].mxu0
  %v1064 = vpop.f32.mrb[0].mxu0
  %v1065 = vpop.f32.mrb[0].mxu0
  %1066 = vdwg.mxu0
  %1067 = vmatprep.subr.bf16.mxu0 0
  %1068 = vmatpush1.bf16.msra.mxu0 %v446
  %1069 = vmatprep.subr.bf16.mxu0 0
  %1070 = vmatpush1.bf16.msra.mxu0 %v447
  %1071 = vmatprep.subr.bf16.mxu0 0
  %1072 = vmatpush1.bf16.msra.mxu0 %v448
  %1073 = vmatprep.subr.bf16.mxu0 0
  %1074 = vmatpush1.bf16.msra.mxu0 %v449
  %1075 = vmatprep.subr.bf16.mxu0 0
  %1076 = vmatpush1.bf16.msra.mxu0 %v450
  %1077 = vmatprep.subr.bf16.mxu0 0
  %1078 = vmatpush1.bf16.msra.mxu0 %v451
  %1079 = vmatprep.subr.bf16.mxu0 0
  %1080 = vmatpush1.bf16.msra.mxu0 %v452
  %1081 = vmatprep.subr.bf16.mxu0 0
  %1082 = vmatpush1.bf16.msra.mxu0 %v453
  %1083 = vmatprep.subr.bf16.mxu0 0
  %1084 = vmatpush1.bf16.msra.mxu0 %v454
  %1085 = vmatprep.subr.bf16.mxu0 0
  %1086 = vmatpush1.bf16.msra.mxu0 0
  %1087 = vmatprep.subr.bf16.mxu0 0
  %1088 = vmatpush1.bf16.msra.mxu0 0
  %1089 = vmatprep.subr.bf16.mxu0 0
  %1090 = vmatpush1.bf16.msra.mxu0 0
  %1091 = vmatprep.subr.bf16.mxu0 0
  %1092 = vmatpush1.bf16.msra.mxu0 0
  %1093 = vmatprep.subr.bf16.mxu0 0
  %1094 = vmatpush1.bf16.msra.mxu0 0
  %1095 = vmatprep.subr.bf16.mxu0 0
  %1096 = vmatpush1.bf16.msra.mxu0 0
  %1097 = vmatprep.subr.bf16.mxu0 0
  %1098 = vmatpush1.bf16.msra.mxu0 0
  %1099 = vmatprep.mubr.bf16.mxu0 %v1025
  %1100 = vmatmul.mubr.bf16.gmra.mrb[0].mxu0 %v1022
  %v1101 = vpop.f32.mrb[0].mxu0
  %v1102 = vadd.f32 0.0, %v1101
  %v1103 = vpop.f32.mrb[0].mxu0
  %v1104 = vpop.f32.mrb[0].mxu0
  %v1105 = vpop.f32.mrb[0].mxu0
  %1106 = vdwg.mxu0
  %v1107 = vmax.f32 %v1062, %v1102
  %v1108 = vpack.c.bf16 %v1107, %v1107
  %s1109 = scalar_lea.vmem %s5, 128
  %v1110 = vld [vmem:[%s1109] sm:$0xf]
  %v1111 = vld [vmem:[%s1109 + $0x4] sm:$0xf]
  %v1112 = vld [vmem:[%s1109 + $0x8] sm:$0xf]
  %v1113 = vld [vmem:[%s1109 + $0xc] sm:$0xf]
  %v1114 = vld [vmem:[%s1109 + $0x10] sm:$0xf]
  %v1115 = vld [vmem:[%s1109 + $0x14] sm:$0xf]
  %v1116 = vld [vmem:[%s1109 + $0x18] sm:$0xf]
  %v1117 = vld [vmem:[%s1109 + $0x1c] sm:$0xf]
  %v1118 = vld [vmem:[%s1109 + $0x20] sm:$0xf]
  %v1119 = vld [vmem:[%s1109 + $0x24] sm:$0xf]
  %v1120 = vld [vmem:[%s1109 + $0x28] sm:$0xf]
  %v1121 = vld [vmem:[%s1109 + $0x2c] sm:$0xf]
  %v1122 = vld [vmem:[%s1109 + $0x30] sm:$0xf]
  %v1123 = vld [vmem:[%s1109 + $0x34] sm:$0xf]
  %v1124 = vld [vmem:[%s1109 + $0x38] sm:$0xf]
  %v1125 = vld [vmem:[%s1109 + $0x3c] sm:$0xf]
  %v1142 = vunpack.c.l.b16 %v1110
  %v1143 = vunpack.c.l.b16 %v1111
  %v1144 = vunpack.c.l.b16 %v1112
  %v1145 = vunpack.c.l.b16 %v1113
  %v1146 = vunpack.c.l.b16 %v1114
  %v1147 = vunpack.c.l.b16 %v1115
  %v1148 = vunpack.c.l.b16 %v1116
  %v1149 = vunpack.c.l.b16 %v1117
  %v1150 = vunpack.c.l.b16 %v1118
  %v1151 = vunpack.c.l.b16 %v1119
  %v1152 = vunpack.c.l.b16 %v1120
  %v1153 = vunpack.c.l.b16 %v1121
  %v1154 = vunpack.c.l.b16 %v1122
  %v1155 = vunpack.c.l.b16 %v1123
  %v1156 = vunpack.c.l.b16 %v1124
  %v1157 = vunpack.c.l.b16 %v1125
  %v1158 = vpack.c.b16 %v1143, %v1142
  %v1159 = vpack.c.b16 %v1145, %v1144
  %v1160 = vpack.c.b16 %v1147, %v1146
  %v1161 = vpack.c.b16 %v1149, %v1148
  %v1162 = vpack.c.b16 %v1151, %v1150
  %v1163 = vpack.c.b16 %v1153, %v1152
  %v1164 = vpack.c.b16 %v1155, %v1154
  %v1165 = vpack.c.b16 %v1157, %v1156
  %1174 = vmatprep.subr.bf16.mxu0 0
  %1175 = vmatpush1.bf16.msra.mxu0 %v1158
  %1176 = vmatprep.subr.bf16.mxu0 0
  %1177 = vmatpush1.bf16.msra.mxu0 %v1159
  %1178 = vmatprep.subr.bf16.mxu0 0
  %1179 = vmatpush1.bf16.msra.mxu0 %v1160
  %1180 = vmatprep.subr.bf16.mxu0 0
  %1181 = vmatpush1.bf16.msra.mxu0 %v1161
  %1182 = vmatprep.subr.bf16.mxu0 0
  %1183 = vmatpush1.bf16.msra.mxu0 %v1162
  %1184 = vmatprep.subr.bf16.mxu0 0
  %1185 = vmatpush1.bf16.msra.mxu0 %v1163
  %1186 = vmatprep.subr.bf16.mxu0 0
  %1187 = vmatpush1.bf16.msra.mxu0 %v1164
  %1188 = vmatprep.subr.bf16.mxu0 0
  %1189 = vmatpush1.bf16.msra.mxu0 %v1165
  %1190 = vmatprep.subr.bf16.mxu0 0
  %1191 = vmatpush1.bf16.msra.mxu0 0
  %1192 = vmatprep.subr.bf16.mxu0 0
  %1193 = vmatpush1.bf16.msra.mxu0 0
  %1194 = vmatprep.subr.bf16.mxu0 0
  %1195 = vmatpush1.bf16.msra.mxu0 0
  %1196 = vmatprep.subr.bf16.mxu0 0
  %1197 = vmatpush1.bf16.msra.mxu0 0
  %1198 = vmatprep.subr.bf16.mxu0 0
  %1199 = vmatpush1.bf16.msra.mxu0 0
  %1200 = vmatprep.subr.bf16.mxu0 0
  %1201 = vmatpush1.bf16.msra.mxu0 0
  %1202 = vmatprep.subr.bf16.mxu0 0
  %1203 = vmatpush1.bf16.msra.mxu0 0
  %1204 = vmatprep.subr.bf16.mxu0 0
  %1205 = vmatpush1.bf16.msra.mxu0 0
  %1206 = vmatprep.mubr.bf16.mxu0 0
  %1207 = vmatmul.mubr.bf16.gmra.mrb[0].mxu0 %v1108
  %v1208 = vpop.f32.mrb[0].mxu0
  %v1209 = vadd.f32 0.0, %v1208
  %v1210 = vpop.f32.mrb[0].mxu0
  %v1211 = vpop.f32.mrb[0].mxu0
  %v1212 = vpop.f32.mrb[0].mxu0
  %1213 = vdwg.mxu0
  %v1214 = vadd.f32 %v907, %v1209
  %s1215 = scalar_lea.vmem %s0, 48
  %v1216 = vld [vmem:[%s1215] sm:$0xff]
  %s1217 = scalar_lea.vmem %s0, 56
  %v1218 = vld [vmem:[%s1217] sm:$0xff]
  %v1220 = vunpack.c.l.b16 %v1216
  %v1221 = vunpack.c.h.b16 %v1216
  %v1222 = vpack.c.b16 %v1220, %v1220
  %v1223 = vpack.c.b16 %v1221, %v1221
  %v1226 = vsel %vm166, %v1223, 0
  %1228 = vmatprep.subr.bf16.mxu0 %v133
  %1229 = vmatpush1.bf16.msra.mxu0 %v132
  %1230 = vmatprep.subr.bf16.mxu0 %v135
  %1231 = vmatpush1.bf16.msra.mxu0 %v134
  %1232 = vmatprep.subr.bf16.mxu0 %v137
  %1233 = vmatpush1.bf16.msra.mxu0 %v136
  %1234 = vmatprep.subr.bf16.mxu0 %v139
  %1235 = vmatpush1.bf16.msra.mxu0 %v138
  %1236 = vmatprep.subr.bf16.mxu0 %v141
  %1237 = vmatpush1.bf16.msra.mxu0 %v140
  %1238 = vmatprep.subr.bf16.mxu0 %v143
  %1239 = vmatpush1.bf16.msra.mxu0 %v142
  %1240 = vmatprep.subr.bf16.mxu0 %v145
  %1241 = vmatpush1.bf16.msra.mxu0 %v144
  %1242 = vmatprep.subr.bf16.mxu0 %v147
  %1243 = vmatpush1.bf16.msra.mxu0 %v146
  %1244 = vmatprep.subr.bf16.mxu0 %v175
  %1245 = vmatpush1.bf16.msra.mxu0 %v172
  %1246 = vmatprep.subr.bf16.mxu0 0
  %1247 = vmatpush1.bf16.msra.mxu0 0
  %1248 = vmatprep.subr.bf16.mxu0 0
  %1249 = vmatpush1.bf16.msra.mxu0 0
  %1250 = vmatprep.subr.bf16.mxu0 0
  %1251 = vmatpush1.bf16.msra.mxu0 0
  %1252 = vmatprep.subr.bf16.mxu0 0
  %1253 = vmatpush1.bf16.msra.mxu0 0
  %1254 = vmatprep.subr.bf16.mxu0 0
  %1255 = vmatpush1.bf16.msra.mxu0 0
  %1256 = vmatprep.subr.bf16.mxu0 0
  %1257 = vmatpush1.bf16.msra.mxu0 0
  %1258 = vmatprep.subr.bf16.mxu0 0
  %1259 = vmatpush1.bf16.msra.mxu0 0
  %1260 = vmatprep.mubr.bf16.mxu0 %v1226
  %1261 = vmatmul.mubr.bf16.gmra.mrb[0].mxu0 %v1222
  %v1262 = vpop.f32.mrb[0].mxu0
  %v1263 = vadd.f32 %v65, %v1262
  %v1264 = vpop.f32.mrb[0].mxu0
  %v1265 = vadd.f32 %v69, %v1264
  %v1266 = vpop.f32.mrb[0].mxu0
  %v1267 = vpop.f32.mrb[0].mxu0
  %1268 = vdwg.mxu0
  %v1269 = vmax.f32 %v1263, 0.0
  %v1270 = vmax.f32 %v1265, 0.0
  %v1272 = vunpack.c.l.b16 %v1218
  %v1273 = vunpack.c.h.b16 %v1218
  %v1274 = vpack.c.b16 %v1272, %v1272
  %v1275 = vpack.c.b16 %v1273, %v1273
  %v1278 = vsel %vm166, %v1275, 0
  %1280 = vmatprep.subr.bf16.mxu0 %v133
  %1281 = vmatpush1.bf16.msra.mxu0 %v132
  %1282 = vmatprep.subr.bf16.mxu0 %v135
  %1283 = vmatpush1.bf16.msra.mxu0 %v134
  %1284 = vmatprep.subr.bf16.mxu0 %v137
  %1285 = vmatpush1.bf16.msra.mxu0 %v136
  %1286 = vmatprep.subr.bf16.mxu0 %v139
  %1287 = vmatpush1.bf16.msra.mxu0 %v138
  %1288 = vmatprep.subr.bf16.mxu0 %v141
  %1289 = vmatpush1.bf16.msra.mxu0 %v140
  %1290 = vmatprep.subr.bf16.mxu0 %v143
  %1291 = vmatpush1.bf16.msra.mxu0 %v142
  %1292 = vmatprep.subr.bf16.mxu0 %v145
  %1293 = vmatpush1.bf16.msra.mxu0 %v144
  %1294 = vmatprep.subr.bf16.mxu0 %v147
  %1295 = vmatpush1.bf16.msra.mxu0 %v146
  %1296 = vmatprep.subr.bf16.mxu0 %v175
  %1297 = vmatpush1.bf16.msra.mxu0 %v172
  %1298 = vmatprep.subr.bf16.mxu0 0
  %1299 = vmatpush1.bf16.msra.mxu0 0
  %1300 = vmatprep.subr.bf16.mxu0 0
  %1301 = vmatpush1.bf16.msra.mxu0 0
  %1302 = vmatprep.subr.bf16.mxu0 0
  %1303 = vmatpush1.bf16.msra.mxu0 0
  %1304 = vmatprep.subr.bf16.mxu0 0
  %1305 = vmatpush1.bf16.msra.mxu0 0
  %1306 = vmatprep.subr.bf16.mxu0 0
  %1307 = vmatpush1.bf16.msra.mxu0 0
  %1308 = vmatprep.subr.bf16.mxu0 0
  %1309 = vmatpush1.bf16.msra.mxu0 0
  %1310 = vmatprep.subr.bf16.mxu0 0
  %1311 = vmatpush1.bf16.msra.mxu0 0
  %1312 = vmatprep.mubr.bf16.mxu0 %v1278
  %1313 = vmatmul.mubr.bf16.gmra.mrb[0].mxu0 %v1274
  %v1314 = vpop.f32.mrb[0].mxu0
  %v1315 = vadd.f32 %v65, %v1314
  %v1316 = vpop.f32.mrb[0].mxu0
  %v1317 = vadd.f32 %v69, %v1316
  %v1318 = vpop.f32.mrb[0].mxu0
  %v1319 = vpop.f32.mrb[0].mxu0
  %1320 = vdwg.mxu0
  %v1321 = vmax.f32 %v1315, 0.0
  %v1322 = vmax.f32 %v1317, 0.0
  %v1323 = vmax.f32 %v1269, %v1321
  %v1324 = vmax.f32 %v1270, %v1322
  %v1325 = vpack.c.bf16 %v1323, %v1323
  %v1326 = vpack.c.bf16 %v1324, %v1324
  %v1328 = vsel %vm348, %v1326, 0
  %1330 = vmatprep.subr.bf16.mxu0 0
  %1331 = vmatpush1.bf16.msra.mxu0 %v330
  %1332 = vmatprep.subr.bf16.mxu0 0
  %1333 = vmatpush1.bf16.msra.mxu0 %v331
  %1334 = vmatprep.subr.bf16.mxu0 0
  %1335 = vmatpush1.bf16.msra.mxu0 %v332
  %1336 = vmatprep.subr.bf16.mxu0 0
  %1337 = vmatpush1.bf16.msra.mxu0 %v333
  %1338 = vmatprep.subr.bf16.mxu0 0
  %1339 = vmatpush1.bf16.msra.mxu0 %v334
  %1340 = vmatprep.subr.bf16.mxu0 0
  %1341 = vmatpush1.bf16.msra.mxu0 %v335
  %1342 = vmatprep.subr.bf16.mxu0 0
  %1343 = vmatpush1.bf16.msra.mxu0 %v336
  %1344 = vmatprep.subr.bf16.mxu0 0
  %1345 = vmatpush1.bf16.msra.mxu0 %v337
  %1346 = vmatprep.subr.bf16.mxu0 0
  %1347 = vmatpush1.bf16.msra.mxu0 %v338
  %1348 = vmatprep.subr.bf16.mxu0 0
  %1349 = vmatpush1.bf16.msra.mxu0 0
  %1350 = vmatprep.subr.bf16.mxu0 0
  %1351 = vmatpush1.bf16.msra.mxu0 0
  %1352 = vmatprep.subr.bf16.mxu0 0
  %1353 = vmatpush1.bf16.msra.mxu0 0
  %1354 = vmatprep.subr.bf16.mxu0 0
  %1355 = vmatpush1.bf16.msra.mxu0 0
  %1356 = vmatprep.subr.bf16.mxu0 0
  %1357 = vmatpush1.bf16.msra.mxu0 0
  %1358 = vmatprep.subr.bf16.mxu0 0
  %1359 = vmatpush1.bf16.msra.mxu0 0
  %1360 = vmatprep.subr.bf16.mxu0 0
  %1361 = vmatpush1.bf16.msra.mxu0 0
  %1362 = vmatprep.mubr.bf16.mxu0 %v1328
  %1363 = vmatmul.mubr.bf16.gmra.mrb[0].mxu0 %v1325
  %v1364 = vpop.f32.mrb[0].mxu0
  %v1365 = vadd.f32 0.0, %v1364
  %v1366 = vpop.f32.mrb[0].mxu0
  %v1367 = vpop.f32.mrb[0].mxu0
  %v1368 = vpop.f32.mrb[0].mxu0
  %1369 = vdwg.mxu0
  %1370 = vmatprep.subr.bf16.mxu0 0
  %1371 = vmatpush1.bf16.msra.mxu0 %v446
  %1372 = vmatprep.subr.bf16.mxu0 0
  %1373 = vmatpush1.bf16.msra.mxu0 %v447
  %1374 = vmatprep.subr.bf16.mxu0 0
  %1375 = vmatpush1.bf16.msra.mxu0 %v448
  %1376 = vmatprep.subr.bf16.mxu0 0
  %1377 = vmatpush1.bf16.msra.mxu0 %v449
  %1378 = vmatprep.subr.bf16.mxu0 0
  %1379 = vmatpush1.bf16.msra.mxu0 %v450
  %1380 = vmatprep.subr.bf16.mxu0 0
  %1381 = vmatpush1.bf16.msra.mxu0 %v451
  %1382 = vmatprep.subr.bf16.mxu0 0
  %1383 = vmatpush1.bf16.msra.mxu0 %v452
  %1384 = vmatprep.subr.bf16.mxu0 0
  %1385 = vmatpush1.bf16.msra.mxu0 %v453
  %1386 = vmatprep.subr.bf16.mxu0 0
  %1387 = vmatpush1.bf16.msra.mxu0 %v454
  %1388 = vmatprep.subr.bf16.mxu0 0
  %1389 = vmatpush1.bf16.msra.mxu0 0
  %1390 = vmatprep.subr.bf16.mxu0 0
  %1391 = vmatpush1.bf16.msra.mxu0 0
  %1392 = vmatprep.subr.bf16.mxu0 0
  %1393 = vmatpush1.bf16.msra.mxu0 0
  %1394 = vmatprep.subr.bf16.mxu0 0
  %1395 = vmatpush1.bf16.msra.mxu0 0
  %1396 = vmatprep.subr.bf16.mxu0 0
  %1397 = vmatpush1.bf16.msra.mxu0 0
  %1398 = vmatprep.subr.bf16.mxu0 0
  %1399 = vmatpush1.bf16.msra.mxu0 0
  %1400 = vmatprep.subr.bf16.mxu0 0
  %1401 = vmatpush1.bf16.msra.mxu0 0
  %1402 = vmatprep.mubr.bf16.mxu0 %v1328
  %1403 = vmatmul.mubr.bf16.gmra.mrb[0].mxu0 %v1325
  %v1404 = vpop.f32.mrb[0].mxu0
  %v1405 = vadd.f32 0.0, %v1404
  %v1406 = vpop.f32.mrb[0].mxu0
  %v1407 = vpop.f32.mrb[0].mxu0
  %v1408 = vpop.f32.mrb[0].mxu0
  %1409 = vdwg.mxu0
  %v1410 = vmax.f32 %v1365, %v1405
  %v1411 = vpack.c.bf16 %v1410, %v1410
  %s1412 = scalar_lea.vmem %s5, 192
  %v1413 = vld [vmem:[%s1412] sm:$0xf]
  %v1414 = vld [vmem:[%s1412 + $0x4] sm:$0xf]
  %v1415 = vld [vmem:[%s1412 + $0x8] sm:$0xf]
  %v1416 = vld [vmem:[%s1412 + $0xc] sm:$0xf]
  %v1417 = vld [vmem:[%s1412 + $0x10] sm:$0xf]
  %v1418 = vld [vmem:[%s1412 + $0x14] sm:$0xf]
  %v1419 = vld [vmem:[%s1412 + $0x18] sm:$0xf]
  %v1420 = vld [vmem:[%s1412 + $0x1c] sm:$0xf]
  %v1421 = vld [vmem:[%s1412 + $0x20] sm:$0xf]
  %v1422 = vld [vmem:[%s1412 + $0x24] sm:$0xf]
  %v1423 = vld [vmem:[%s1412 + $0x28] sm:$0xf]
  %v1424 = vld [vmem:[%s1412 + $0x2c] sm:$0xf]
  %v1425 = vld [vmem:[%s1412 + $0x30] sm:$0xf]
  %v1426 = vld [vmem:[%s1412 + $0x34] sm:$0xf]
  %v1427 = vld [vmem:[%s1412 + $0x38] sm:$0xf]
  %v1428 = vld [vmem:[%s1412 + $0x3c] sm:$0xf]
  %v1445 = vunpack.c.l.b16 %v1413
  %v1446 = vunpack.c.l.b16 %v1414
  %v1447 = vunpack.c.l.b16 %v1415
  %v1448 = vunpack.c.l.b16 %v1416
  %v1449 = vunpack.c.l.b16 %v1417
  %v1450 = vunpack.c.l.b16 %v1418
  %v1451 = vunpack.c.l.b16 %v1419
  %v1452 = vunpack.c.l.b16 %v1420
  %v1453 = vunpack.c.l.b16 %v1421
  %v1454 = vunpack.c.l.b16 %v1422
  %v1455 = vunpack.c.l.b16 %v1423
  %v1456 = vunpack.c.l.b16 %v1424
  %v1457 = vunpack.c.l.b16 %v1425
  %v1458 = vunpack.c.l.b16 %v1426
  %v1459 = vunpack.c.l.b16 %v1427
  %v1460 = vunpack.c.l.b16 %v1428
  %v1461 = vpack.c.b16 %v1446, %v1445
  %v1462 = vpack.c.b16 %v1448, %v1447
  %v1463 = vpack.c.b16 %v1450, %v1449
  %v1464 = vpack.c.b16 %v1452, %v1451
  %v1465 = vpack.c.b16 %v1454, %v1453
  %v1466 = vpack.c.b16 %v1456, %v1455
  %v1467 = vpack.c.b16 %v1458, %v1457
  %v1468 = vpack.c.b16 %v1460, %v1459
  %1477 = vmatprep.subr.bf16.mxu0 0
  %1478 = vmatpush1.bf16.msra.mxu0 %v1461
  %1479 = vmatprep.subr.bf16.mxu0 0
  %1480 = vmatpush1.bf16.msra.mxu0 %v1462
  %1481 = vmatprep.subr.bf16.mxu0 0
  %1482 = vmatpush1.bf16.msra.mxu0 %v1463
  %1483 = vmatprep.subr.bf16.mxu0 0
  %1484 = vmatpush1.bf16.msra.mxu0 %v1464
  %1485 = vmatprep.subr.bf16.mxu0 0
  %1486 = vmatpush1.bf16.msra.mxu0 %v1465
  %1487 = vmatprep.subr.bf16.mxu0 0
  %1488 = vmatpush1.bf16.msra.mxu0 %v1466
  %1489 = vmatprep.subr.bf16.mxu0 0
  %1490 = vmatpush1.bf16.msra.mxu0 %v1467
  %1491 = vmatprep.subr.bf16.mxu0 0
  %1492 = vmatpush1.bf16.msra.mxu0 %v1468
  %1493 = vmatprep.subr.bf16.mxu0 0
  %1494 = vmatpush1.bf16.msra.mxu0 0
  %1495 = vmatprep.subr.bf16.mxu0 0
  %1496 = vmatpush1.bf16.msra.mxu0 0
  %1497 = vmatprep.subr.bf16.mxu0 0
  %1498 = vmatpush1.bf16.msra.mxu0 0
  %1499 = vmatprep.subr.bf16.mxu0 0
  %1500 = vmatpush1.bf16.msra.mxu0 0
  %1501 = vmatprep.subr.bf16.mxu0 0
  %1502 = vmatpush1.bf16.msra.mxu0 0
  %1503 = vmatprep.subr.bf16.mxu0 0
  %1504 = vmatpush1.bf16.msra.mxu0 0
  %1505 = vmatprep.subr.bf16.mxu0 0
  %1506 = vmatpush1.bf16.msra.mxu0 0
  %1507 = vmatprep.subr.bf16.mxu0 0
  %1508 = vmatpush1.bf16.msra.mxu0 0
  %1509 = vmatprep.mubr.bf16.mxu0 0
  %1510 = vmatmul.mubr.bf16.gmra.mrb[0].mxu0 %v1411
  %v1511 = vpop.f32.mrb[0].mxu0
  %v1512 = vadd.f32 0.0, %v1511
  %v1513 = vpop.f32.mrb[0].mxu0
  %v1514 = vpop.f32.mrb[0].mxu0
  %v1515 = vpop.f32.mrb[0].mxu0
  %1516 = vdwg.mxu0
  %v1517 = vadd.f32 %v1214, %v1512
  %s1518 = scalar_lea.vmem %s0, 64
  %v1519 = vld [vmem:[%s1518] sm:$0xff]
  %s1520 = scalar_lea.vmem %s0, 72
  %v1521 = vld [vmem:[%s1520] sm:$0xff]
  %v1523 = vunpack.c.l.b16 %v1519
  %v1524 = vunpack.c.h.b16 %v1519
  %v1525 = vpack.c.b16 %v1523, %v1523
  %v1526 = vpack.c.b16 %v1524, %v1524
  %v1529 = vsel %vm166, %v1526, 0
  %1531 = vmatprep.subr.bf16.mxu0 %v133
  %1532 = vmatpush1.bf16.msra.mxu0 %v132
  %1533 = vmatprep.subr.bf16.mxu0 %v135
  %1534 = vmatpush1.bf16.msra.mxu0 %v134
  %1535 = vmatprep.subr.bf16.mxu0 %v137
  %1536 = vmatpush1.bf16.msra.mxu0 %v136
  %1537 = vmatprep.subr.bf16.mxu0 %v139
  %1538 = vmatpush1.bf16.msra.mxu0 %v138
  %1539 = vmatprep.subr.bf16.mxu0 %v141
  %1540 = vmatpush1.bf16.msra.mxu0 %v140
  %1541 = vmatprep.subr.bf16.mxu0 %v143
  %1542 = vmatpush1.bf16.msra.mxu0 %v142
  %1543 = vmatprep.subr.bf16.mxu0 %v145
  %1544 = vmatpush1.bf16.msra.mxu0 %v144
  %1545 = vmatprep.subr.bf16.mxu0 %v147
  %1546 = vmatpush1.bf16.msra.mxu0 %v146
  %1547 = vmatprep.subr.bf16.mxu0 %v175
  %1548 = vmatpush1.bf16.msra.mxu0 %v172
  %1549 = vmatprep.subr.bf16.mxu0 0
  %1550 = vmatpush1.bf16.msra.mxu0 0
  %1551 = vmatprep.subr.bf16.mxu0 0
  %1552 = vmatpush1.bf16.msra.mxu0 0
  %1553 = vmatprep.subr.bf16.mxu0 0
  %1554 = vmatpush1.bf16.msra.mxu0 0
  %1555 = vmatprep.subr.bf16.mxu0 0
  %1556 = vmatpush1.bf16.msra.mxu0 0
  %1557 = vmatprep.subr.bf16.mxu0 0
  %1558 = vmatpush1.bf16.msra.mxu0 0
  %1559 = vmatprep.subr.bf16.mxu0 0
  %1560 = vmatpush1.bf16.msra.mxu0 0
  %1561 = vmatprep.subr.bf16.mxu0 0
  %1562 = vmatpush1.bf16.msra.mxu0 0
  %1563 = vmatprep.mubr.bf16.mxu0 %v1529
  %1564 = vmatmul.mubr.bf16.gmra.mrb[0].mxu0 %v1525
  %v1565 = vpop.f32.mrb[0].mxu0
  %v1566 = vadd.f32 %v65, %v1565
  %v1567 = vpop.f32.mrb[0].mxu0
  %v1568 = vadd.f32 %v69, %v1567
  %v1569 = vpop.f32.mrb[0].mxu0
  %v1570 = vpop.f32.mrb[0].mxu0
  %1571 = vdwg.mxu0
  %v1572 = vmax.f32 %v1566, 0.0
  %v1573 = vmax.f32 %v1568, 0.0
  %v1575 = vunpack.c.l.b16 %v1521
  %v1576 = vunpack.c.h.b16 %v1521
  %v1577 = vpack.c.b16 %v1575, %v1575
  %v1578 = vpack.c.b16 %v1576, %v1576
  %v1581 = vsel %vm166, %v1578, 0
  %1583 = vmatprep.subr.bf16.mxu0 %v133
  %1584 = vmatpush1.bf16.msra.mxu0 %v132
  %1585 = vmatprep.subr.bf16.mxu0 %v135
  %1586 = vmatpush1.bf16.msra.mxu0 %v134
  %1587 = vmatprep.subr.bf16.mxu0 %v137
  %1588 = vmatpush1.bf16.msra.mxu0 %v136
  %1589 = vmatprep.subr.bf16.mxu0 %v139
  %1590 = vmatpush1.bf16.msra.mxu0 %v138
  %1591 = vmatprep.subr.bf16.mxu0 %v141
  %1592 = vmatpush1.bf16.msra.mxu0 %v140
  %1593 = vmatprep.subr.bf16.mxu0 %v143
  %1594 = vmatpush1.bf16.msra.mxu0 %v142
  %1595 = vmatprep.subr.bf16.mxu0 %v145
  %1596 = vmatpush1.bf16.msra.mxu0 %v144
  %1597 = vmatprep.subr.bf16.mxu0 %v147
  %1598 = vmatpush1.bf16.msra.mxu0 %v146
  %1599 = vmatprep.subr.bf16.mxu0 %v175
  %1600 = vmatpush1.bf16.msra.mxu0 %v172
  %1601 = vmatprep.subr.bf16.mxu0 0
  %1602 = vmatpush1.bf16.msra.mxu0 0
  %1603 = vmatprep.subr.bf16.mxu0 0
  %1604 = vmatpush1.bf16.msra.mxu0 0
  %1605 = vmatprep.subr.bf16.mxu0 0
  %1606 = vmatpush1.bf16.msra.mxu0 0
  %1607 = vmatprep.subr.bf16.mxu0 0
  %1608 = vmatpush1.bf16.msra.mxu0 0
  %1609 = vmatprep.subr.bf16.mxu0 0
  %1610 = vmatpush1.bf16.msra.mxu0 0
  %1611 = vmatprep.subr.bf16.mxu0 0
  %1612 = vmatpush1.bf16.msra.mxu0 0
  %1613 = vmatprep.subr.bf16.mxu0 0
  %1614 = vmatpush1.bf16.msra.mxu0 0
  %1615 = vmatprep.mubr.bf16.mxu0 %v1581
  %1616 = vmatmul.mubr.bf16.gmra.mrb[0].mxu0 %v1577
  %v1617 = vpop.f32.mrb[0].mxu0
  %v1618 = vadd.f32 %v65, %v1617
  %v1619 = vpop.f32.mrb[0].mxu0
  %v1620 = vadd.f32 %v69, %v1619
  %v1621 = vpop.f32.mrb[0].mxu0
  %v1622 = vpop.f32.mrb[0].mxu0
  %1623 = vdwg.mxu0
  %v1624 = vmax.f32 %v1618, 0.0
  %v1625 = vmax.f32 %v1620, 0.0
  %v1626 = vmax.f32 %v1572, %v1624
  %v1627 = vmax.f32 %v1573, %v1625
  %v1628 = vpack.c.bf16 %v1626, %v1626
  %v1629 = vpack.c.bf16 %v1627, %v1627
  %v1631 = vsel %vm348, %v1629, 0
  %1633 = vmatprep.subr.bf16.mxu0 0
  %1634 = vmatpush1.bf16.msra.mxu0 %v330
  %1635 = vmatprep.subr.bf16.mxu0 0
  %1636 = vmatpush1.bf16.msra.mxu0 %v331
  %1637 = vmatprep.subr.bf16.mxu0 0
  %1638 = vmatpush1.bf16.msra.mxu0 %v332
  %1639 = vmatprep.subr.bf16.mxu0 0
  %1640 = vmatpush1.bf16.msra.mxu0 %v333
  %1641 = vmatprep.subr.bf16.mxu0 0
  %1642 = vmatpush1.bf16.msra.mxu0 %v334
  %1643 = vmatprep.subr.bf16.mxu0 0
  %1644 = vmatpush1.bf16.msra.mxu0 %v335
  %1645 = vmatprep.subr.bf16.mxu0 0
  %1646 = vmatpush1.bf16.msra.mxu0 %v336
  %1647 = vmatprep.subr.bf16.mxu0 0
  %1648 = vmatpush1.bf16.msra.mxu0 %v337
  %1649 = vmatprep.subr.bf16.mxu0 0
  %1650 = vmatpush1.bf16.msra.mxu0 %v338
  %1651 = vmatprep.subr.bf16.mxu0 0
  %1652 = vmatpush1.bf16.msra.mxu0 0
  %1653 = vmatprep.subr.bf16.mxu0 0
  %1654 = vmatpush1.bf16.msra.mxu0 0
  %1655 = vmatprep.subr.bf16.mxu0 0
  %1656 = vmatpush1.bf16.msra.mxu0 0
  %1657 = vmatprep.subr.bf16.mxu0 0
  %1658 = vmatpush1.bf16.msra.mxu0 0
  %1659 = vmatprep.subr.bf16.mxu0 0
  %1660 = vmatpush1.bf16.msra.mxu0 0
  %1661 = vmatprep.subr.bf16.mxu0 0
  %1662 = vmatpush1.bf16.msra.mxu0 0
  %1663 = vmatprep.subr.bf16.mxu0 0
  %1664 = vmatpush1.bf16.msra.mxu0 0
  %1665 = vmatprep.mubr.bf16.mxu0 %v1631
  %1666 = vmatmul.mubr.bf16.gmra.mrb[0].mxu0 %v1628
  %v1667 = vpop.f32.mrb[0].mxu0
  %v1668 = vadd.f32 0.0, %v1667
  %v1669 = vpop.f32.mrb[0].mxu0
  %v1670 = vpop.f32.mrb[0].mxu0
  %v1671 = vpop.f32.mrb[0].mxu0
  %1672 = vdwg.mxu0
  %1673 = vmatprep.subr.bf16.mxu0 0
  %1674 = vmatpush1.bf16.msra.mxu0 %v446
  %1675 = vmatprep.subr.bf16.mxu0 0
  %1676 = vmatpush1.bf16.msra.mxu0 %v447
  %1677 = vmatprep.subr.bf16.mxu0 0
  %1678 = vmatpush1.bf16.msra.mxu0 %v448
  %1679 = vmatprep.subr.bf16.mxu0 0
  %1680 = vmatpush1.bf16.msra.mxu0 %v449
  %1681 = vmatprep.subr.bf16.mxu0 0
  %1682 = vmatpush1.bf16.msra.mxu0 %v450
  %1683 = vmatprep.subr.bf16.mxu0 0
  %1684 = vmatpush1.bf16.msra.mxu0 %v451
  %1685 = vmatprep.subr.bf16.mxu0 0
  %1686 = vmatpush1.bf16.msra.mxu0 %v452
  %1687 = vmatprep.subr.bf16.mxu0 0
  %1688 = vmatpush1.bf16.msra.mxu0 %v453
  %1689 = vmatprep.subr.bf16.mxu0 0
  %1690 = vmatpush1.bf16.msra.mxu0 %v454
  %1691 = vmatprep.subr.bf16.mxu0 0
  %1692 = vmatpush1.bf16.msra.mxu0 0
  %1693 = vmatprep.subr.bf16.mxu0 0
  %1694 = vmatpush1.bf16.msra.mxu0 0
  %1695 = vmatprep.subr.bf16.mxu0 0
  %1696 = vmatpush1.bf16.msra.mxu0 0
  %1697 = vmatprep.subr.bf16.mxu0 0
  %1698 = vmatpush1.bf16.msra.mxu0 0
  %1699 = vmatprep.subr.bf16.mxu0 0
  %1700 = vmatpush1.bf16.msra.mxu0 0
  %1701 = vmatprep.subr.bf16.mxu0 0
  %1702 = vmatpush1.bf16.msra.mxu0 0
  %1703 = vmatprep.subr.bf16.mxu0 0
  %1704 = vmatpush1.bf16.msra.mxu0 0
  %1705 = vmatprep.mubr.bf16.mxu0 %v1631
  %1706 = vmatmul.mubr.bf16.gmra.mrb[0].mxu0 %v1628
  %v1707 = vpop.f32.mrb[0].mxu0
  %v1708 = vadd.f32 0.0, %v1707
  %v1709 = vpop.f32.mrb[0].mxu0
  %v1710 = vpop.f32.mrb[0].mxu0
  %v1711 = vpop.f32.mrb[0].mxu0
  %1712 = vdwg.mxu0
  %v1713 = vmax.f32 %v1668, %v1708
  %v1714 = vpack.c.bf16 %v1713, %v1713
  %s1715 = scalar_lea.vmem %s5, 256
  %v1716 = vld [vmem:[%s1715] sm:$0xf]
  %v1717 = vld [vmem:[%s1715 + $0x4] sm:$0xf]
  %v1718 = vld [vmem:[%s1715 + $0x8] sm:$0xf]
  %v1719 = vld [vmem:[%s1715 + $0xc] sm:$0xf]
  %v1720 = vld [vmem:[%s1715 + $0x10] sm:$0xf]
  %v1721 = vld [vmem:[%s1715 + $0x14] sm:$0xf]
  %v1722 = vld [vmem:[%s1715 + $0x18] sm:$0xf]
  %v1723 = vld [vmem:[%s1715 + $0x1c] sm:$0xf]
  %v1724 = vld [vmem:[%s1715 + $0x20] sm:$0xf]
  %v1725 = vld [vmem:[%s1715 + $0x24] sm:$0xf]
  %v1726 = vld [vmem:[%s1715 + $0x28] sm:$0xf]
  %v1727 = vld [vmem:[%s1715 + $0x2c] sm:$0xf]
  %v1728 = vld [vmem:[%s1715 + $0x30] sm:$0xf]
  %v1729 = vld [vmem:[%s1715 + $0x34] sm:$0xf]
  %v1730 = vld [vmem:[%s1715 + $0x38] sm:$0xf]
  %v1731 = vld [vmem:[%s1715 + $0x3c] sm:$0xf]
  %v1748 = vunpack.c.l.b16 %v1716
  %v1749 = vunpack.c.l.b16 %v1717
  %v1750 = vunpack.c.l.b16 %v1718
  %v1751 = vunpack.c.l.b16 %v1719
  %v1752 = vunpack.c.l.b16 %v1720
  %v1753 = vunpack.c.l.b16 %v1721
  %v1754 = vunpack.c.l.b16 %v1722
  %v1755 = vunpack.c.l.b16 %v1723
  %v1756 = vunpack.c.l.b16 %v1724
  %v1757 = vunpack.c.l.b16 %v1725
  %v1758 = vunpack.c.l.b16 %v1726
  %v1759 = vunpack.c.l.b16 %v1727
  %v1760 = vunpack.c.l.b16 %v1728
  %v1761 = vunpack.c.l.b16 %v1729
  %v1762 = vunpack.c.l.b16 %v1730
  %v1763 = vunpack.c.l.b16 %v1731
  %v1764 = vpack.c.b16 %v1749, %v1748
  %v1765 = vpack.c.b16 %v1751, %v1750
  %v1766 = vpack.c.b16 %v1753, %v1752
  %v1767 = vpack.c.b16 %v1755, %v1754
  %v1768 = vpack.c.b16 %v1757, %v1756
  %v1769 = vpack.c.b16 %v1759, %v1758
  %v1770 = vpack.c.b16 %v1761, %v1760
  %v1771 = vpack.c.b16 %v1763, %v1762
  %1780 = vmatprep.subr.bf16.mxu0 0
  %1781 = vmatpush1.bf16.msra.mxu0 %v1764
  %1782 = vmatprep.subr.bf16.mxu0 0
  %1783 = vmatpush1.bf16.msra.mxu0 %v1765
  %1784 = vmatprep.subr.bf16.mxu0 0
  %1785 = vmatpush1.bf16.msra.mxu0 %v1766
  %1786 = vmatprep.subr.bf16.mxu0 0
  %1787 = vmatpush1.bf16.msra.mxu0 %v1767
  %1788 = vmatprep.subr.bf16.mxu0 0
  %1789 = vmatpush1.bf16.msra.mxu0 %v1768
  %1790 = vmatprep.subr.bf16.mxu0 0
  %1791 = vmatpush1.bf16.msra.mxu0 %v1769
  %1792 = vmatprep.subr.bf16.mxu0 0
  %1793 = vmatpush1.bf16.msra.mxu0 %v1770
  %1794 = vmatprep.subr.bf16.mxu0 0
  %1795 = vmatpush1.bf16.msra.mxu0 %v1771
  %1796 = vmatprep.subr.bf16.mxu0 0
  %1797 = vmatpush1.bf16.msra.mxu0 0
  %1798 = vmatprep.subr.bf16.mxu0 0
  %1799 = vmatpush1.bf16.msra.mxu0 0
  %1800 = vmatprep.subr.bf16.mxu0 0
  %1801 = vmatpush1.bf16.msra.mxu0 0
  %1802 = vmatprep.subr.bf16.mxu0 0
  %1803 = vmatpush1.bf16.msra.mxu0 0
  %1804 = vmatprep.subr.bf16.mxu0 0
  %1805 = vmatpush1.bf16.msra.mxu0 0
  %1806 = vmatprep.subr.bf16.mxu0 0
  %1807 = vmatpush1.bf16.msra.mxu0 0
  %1808 = vmatprep.subr.bf16.mxu0 0
  %1809 = vmatpush1.bf16.msra.mxu0 0
  %1810 = vmatprep.subr.bf16.mxu0 0
  %1811 = vmatpush1.bf16.msra.mxu0 0
  %1812 = vmatprep.mubr.bf16.mxu0 0
  %1813 = vmatmul.mubr.bf16.gmra.mrb[0].mxu0 %v1714
  %v1814 = vpop.f32.mrb[0].mxu0
  %v1815 = vadd.f32 0.0, %v1814
  %v1816 = vpop.f32.mrb[0].mxu0
  %v1817 = vpop.f32.mrb[0].mxu0
  %v1818 = vpop.f32.mrb[0].mxu0
  %1819 = vdwg.mxu0
  %v1820 = vadd.f32 %v1517, %v1815
  %s1821 = scalar_lea.vmem %s0, 80
  %v1822 = vld [vmem:[%s1821] sm:$0xff]
  %s1823 = scalar_lea.vmem %s0, 88
  %v1824 = vld [vmem:[%s1823] sm:$0xff]
  %v1826 = vunpack.c.l.b16 %v1822
  %v1827 = vunpack.c.h.b16 %v1822
  %v1828 = vpack.c.b16 %v1826, %v1826
  %v1829 = vpack.c.b16 %v1827, %v1827
  %v1832 = vsel %vm166, %v1829, 0
  %1834 = vmatprep.subr.bf16.mxu0 %v133
  %1835 = vmatpush1.bf16.msra.mxu0 %v132
  %1836 = vmatprep.subr.bf16.mxu0 %v135
  %1837 = vmatpush1.bf16.msra.mxu0 %v134
  %1838 = vmatprep.subr.bf16.mxu0 %v137
  %1839 = vmatpush1.bf16.msra.mxu0 %v136
  %1840 = vmatprep.subr.bf16.mxu0 %v139
  %1841 = vmatpush1.bf16.msra.mxu0 %v138
  %1842 = vmatprep.subr.bf16.mxu0 %v141
  %1843 = vmatpush1.bf16.msra.mxu0 %v140
  %1844 = vmatprep.subr.bf16.mxu0 %v143
  %1845 = vmatpush1.bf16.msra.mxu0 %v142
  %1846 = vmatprep.subr.bf16.mxu0 %v145
  %1847 = vmatpush1.bf16.msra.mxu0 %v144
  %1848 = vmatprep.subr.bf16.mxu0 %v147
  %1849 = vmatpush1.bf16.msra.mxu0 %v146
  %1850 = vmatprep.subr.bf16.mxu0 %v175
  %1851 = vmatpush1.bf16.msra.mxu0 %v172
  %1852 = vmatprep.subr.bf16.mxu0 0
  %1853 = vmatpush1.bf16.msra.mxu0 0
  %1854 = vmatprep.subr.bf16.mxu0 0
  %1855 = vmatpush1.bf16.msra.mxu0 0
  %1856 = vmatprep.subr.bf16.mxu0 0
  %1857 = vmatpush1.bf16.msra.mxu0 0
  %1858 = vmatprep.subr.bf16.mxu0 0
  %1859 = vmatpush1.bf16.msra.mxu0 0
  %1860 = vmatprep.subr.bf16.mxu0 0
  %1861 = vmatpush1.bf16.msra.mxu0 0
  %1862 = vmatprep.subr.bf16.mxu0 0
  %1863 = vmatpush1.bf16.msra.mxu0 0
  %1864 = vmatprep.subr.bf16.mxu0 0
  %1865 = vmatpush1.bf16.msra.mxu0 0
  %1866 = vmatprep.mubr.bf16.mxu0 %v1832
  %1867 = vmatmul.mubr.bf16.gmra.mrb[0].mxu0 %v1828
  %v1868 = vpop.f32.mrb[0].mxu0
  %v1869 = vadd.f32 %v65, %v1868
  %v1870 = vpop.f32.mrb[0].mxu0
  %v1871 = vadd.f32 %v69, %v1870
  %v1872 = vpop.f32.mrb[0].mxu0
  %v1873 = vpop.f32.mrb[0].mxu0
  %1874 = vdwg.mxu0
  %v1875 = vmax.f32 %v1869, 0.0
  %v1876 = vmax.f32 %v1871, 0.0
  %v1878 = vunpack.c.l.b16 %v1824
  %v1879 = vunpack.c.h.b16 %v1824
  %v1880 = vpack.c.b16 %v1878, %v1878
  %v1881 = vpack.c.b16 %v1879, %v1879
  %v1884 = vsel %vm166, %v1881, 0
  %1886 = vmatprep.subr.bf16.mxu0 %v133
  %1887 = vmatpush1.bf16.msra.mxu0 %v132
  %1888 = vmatprep.subr.bf16.mxu0 %v135
  %1889 = vmatpush1.bf16.msra.mxu0 %v134
  %1890 = vmatprep.subr.bf16.mxu0 %v137
  %1891 = vmatpush1.bf16.msra.mxu0 %v136
  %1892 = vmatprep.subr.bf16.mxu0 %v139
  %1893 = vmatpush1.bf16.msra.mxu0 %v138
  %1894 = vmatprep.subr.bf16.mxu0 %v141
  %1895 = vmatpush1.bf16.msra.mxu0 %v140
  %1896 = vmatprep.subr.bf16.mxu0 %v143
  %1897 = vmatpush1.bf16.msra.mxu0 %v142
  %1898 = vmatprep.subr.bf16.mxu0 %v145
  %1899 = vmatpush1.bf16.msra.mxu0 %v144
  %1900 = vmatprep.subr.bf16.mxu0 %v147
  %1901 = vmatpush1.bf16.msra.mxu0 %v146
  %1902 = vmatprep.subr.bf16.mxu0 %v175
  %1903 = vmatpush1.bf16.msra.mxu0 %v172
  %1904 = vmatprep.subr.bf16.mxu0 0
  %1905 = vmatpush1.bf16.msra.mxu0 0
  %1906 = vmatprep.subr.bf16.mxu0 0
  %1907 = vmatpush1.bf16.msra.mxu0 0
  %1908 = vmatprep.subr.bf16.mxu0 0
  %1909 = vmatpush1.bf16.msra.mxu0 0
  %1910 = vmatprep.subr.bf16.mxu0 0
  %1911 = vmatpush1.bf16.msra.mxu0 0
  %1912 = vmatprep.subr.bf16.mxu0 0
  %1913 = vmatpush1.bf16.msra.mxu0 0
  %1914 = vmatprep.subr.bf16.mxu0 0
  %1915 = vmatpush1.bf16.msra.mxu0 0
  %1916 = vmatprep.subr.bf16.mxu0 0
  %1917 = vmatpush1.bf16.msra.mxu0 0
  %1918 = vmatprep.mubr.bf16.mxu0 %v1884
  %1919 = vmatmul.mubr.bf16.gmra.mrb[0].mxu0 %v1880
  %v1920 = vpop.f32.mrb[0].mxu0
  %v1921 = vadd.f32 %v65, %v1920
  %v1922 = vpop.f32.mrb[0].mxu0
  %v1923 = vadd.f32 %v69, %v1922
  %v1924 = vpop.f32.mrb[0].mxu0
  %v1925 = vpop.f32.mrb[0].mxu0
  %1926 = vdwg.mxu0
  %v1927 = vmax.f32 %v1921, 0.0
  %v1928 = vmax.f32 %v1923, 0.0
  %v1929 = vmax.f32 %v1875, %v1927
  %v1930 = vmax.f32 %v1876, %v1928
  %v1931 = vpack.c.bf16 %v1929, %v1929
  %v1932 = vpack.c.bf16 %v1930, %v1930
  %v1934 = vsel %vm348, %v1932, 0
  %1936 = vmatprep.subr.bf16.mxu0 0
  %1937 = vmatpush1.bf16.msra.mxu0 %v330
  %1938 = vmatprep.subr.bf16.mxu0 0
  %1939 = vmatpush1.bf16.msra.mxu0 %v331
  %1940 = vmatprep.subr.bf16.mxu0 0
  %1941 = vmatpush1.bf16.msra.mxu0 %v332
  %1942 = vmatprep.subr.bf16.mxu0 0
  %1943 = vmatpush1.bf16.msra.mxu0 %v333
  %1944 = vmatprep.subr.bf16.mxu0 0
  %1945 = vmatpush1.bf16.msra.mxu0 %v334
  %1946 = vmatprep.subr.bf16.mxu0 0
  %1947 = vmatpush1.bf16.msra.mxu0 %v335
  %1948 = vmatprep.subr.bf16.mxu0 0
  %1949 = vmatpush1.bf16.msra.mxu0 %v336
  %1950 = vmatprep.subr.bf16.mxu0 0
  %1951 = vmatpush1.bf16.msra.mxu0 %v337
  %1952 = vmatprep.subr.bf16.mxu0 0
  %1953 = vmatpush1.bf16.msra.mxu0 %v338
  %1954 = vmatprep.subr.bf16.mxu0 0
  %1955 = vmatpush1.bf16.msra.mxu0 0
  %1956 = vmatprep.subr.bf16.mxu0 0
  %1957 = vmatpush1.bf16.msra.mxu0 0
  %1958 = vmatprep.subr.bf16.mxu0 0
  %1959 = vmatpush1.bf16.msra.mxu0 0
  %1960 = vmatprep.subr.bf16.mxu0 0
  %1961 = vmatpush1.bf16.msra.mxu0 0
  %1962 = vmatprep.subr.bf16.mxu0 0
  %1963 = vmatpush1.bf16.msra.mxu0 0
  %1964 = vmatprep.subr.bf16.mxu0 0
  %1965 = vmatpush1.bf16.msra.mxu0 0
  %1966 = vmatprep.subr.bf16.mxu0 0
  %1967 = vmatpush1.bf16.msra.mxu0 0
  %1968 = vmatprep.mubr.bf16.mxu0 %v1934
  %1969 = vmatmul.mubr.bf16.gmra.mrb[0].mxu0 %v1931
  %v1970 = vpop.f32.mrb[0].mxu0
  %v1971 = vadd.f32 0.0, %v1970
  %v1972 = vpop.f32.mrb[0].mxu0
  %v1973 = vpop.f32.mrb[0].mxu0
  %v1974 = vpop.f32.mrb[0].mxu0
  %1975 = vdwg.mxu0
  %1976 = vmatprep.subr.bf16.mxu0 0
  %1977 = vmatpush1.bf16.msra.mxu0 %v446
  %1978 = vmatprep.subr.bf16.mxu0 0
  %1979 = vmatpush1.bf16.msra.mxu0 %v447
  %1980 = vmatprep.subr.bf16.mxu0 0
  %1981 = vmatpush1.bf16.msra.mxu0 %v448
  %1982 = vmatprep.subr.bf16.mxu0 0
  %1983 = vmatpush1.bf16.msra.mxu0 %v449
  %1984 = vmatprep.subr.bf16.mxu0 0
  %1985 = vmatpush1.bf16.msra.mxu0 %v450
  %1986 = vmatprep.subr.bf16.mxu0 0
  %1987 = vmatpush1.bf16.msra.mxu0 %v451
  %1988 = vmatprep.subr.bf16.mxu0 0
  %1989 = vmatpush1.bf16.msra.mxu0 %v452
  %1990 = vmatprep.subr.bf16.mxu0 0
  %1991 = vmatpush1.bf16.msra.mxu0 %v453
  %1992 = vmatprep.subr.bf16.mxu0 0
  %1993 = vmatpush1.bf16.msra.mxu0 %v454
  %1994 = vmatprep.subr.bf16.mxu0 0
  %1995 = vmatpush1.bf16.msra.mxu0 0
  %1996 = vmatprep.subr.bf16.mxu0 0
  %1997 = vmatpush1.bf16.msra.mxu0 0
  %1998 = vmatprep.subr.bf16.mxu0 0
  %1999 = vmatpush1.bf16.msra.mxu0 0
  %2000 = vmatprep.subr.bf16.mxu0 0
  %2001 = vmatpush1.bf16.msra.mxu0 0
  %2002 = vmatprep.subr.bf16.mxu0 0
  %2003 = vmatpush1.bf16.msra.mxu0 0
  %2004 = vmatprep.subr.bf16.mxu0 0
  %2005 = vmatpush1.bf16.msra.mxu0 0
  %2006 = vmatprep.subr.bf16.mxu0 0
  %2007 = vmatpush1.bf16.msra.mxu0 0
  %2008 = vmatprep.mubr.bf16.mxu0 %v1934
  %2009 = vmatmul.mubr.bf16.gmra.mrb[0].mxu0 %v1931
  %v2010 = vpop.f32.mrb[0].mxu0
  %v2011 = vadd.f32 0.0, %v2010
  %v2012 = vpop.f32.mrb[0].mxu0
  %v2013 = vpop.f32.mrb[0].mxu0
  %v2014 = vpop.f32.mrb[0].mxu0
  %2015 = vdwg.mxu0
  %v2016 = vmax.f32 %v1971, %v2011
  %v2017 = vpack.c.bf16 %v2016, %v2016
  %s2018 = scalar_lea.vmem %s5, 320
  %v2019 = vld [vmem:[%s2018] sm:$0xf]
  %v2020 = vld [vmem:[%s2018 + $0x4] sm:$0xf]
  %v2021 = vld [vmem:[%s2018 + $0x8] sm:$0xf]
  %v2022 = vld [vmem:[%s2018 + $0xc] sm:$0xf]
  %v2023 = vld [vmem:[%s2018 + $0x10] sm:$0xf]
  %v2024 = vld [vmem:[%s2018 + $0x14] sm:$0xf]
  %v2025 = vld [vmem:[%s2018 + $0x18] sm:$0xf]
  %v2026 = vld [vmem:[%s2018 + $0x1c] sm:$0xf]
  %v2027 = vld [vmem:[%s2018 + $0x20] sm:$0xf]
  %v2028 = vld [vmem:[%s2018 + $0x24] sm:$0xf]
  %v2029 = vld [vmem:[%s2018 + $0x28] sm:$0xf]
  %v2030 = vld [vmem:[%s2018 + $0x2c] sm:$0xf]
  %v2031 = vld [vmem:[%s2018 + $0x30] sm:$0xf]
  %v2032 = vld [vmem:[%s2018 + $0x34] sm:$0xf]
  %v2033 = vld [vmem:[%s2018 + $0x38] sm:$0xf]
  %v2034 = vld [vmem:[%s2018 + $0x3c] sm:$0xf]
  %v2051 = vunpack.c.l.b16 %v2019
  %v2052 = vunpack.c.l.b16 %v2020
  %v2053 = vunpack.c.l.b16 %v2021
  %v2054 = vunpack.c.l.b16 %v2022
  %v2055 = vunpack.c.l.b16 %v2023
  %v2056 = vunpack.c.l.b16 %v2024
  %v2057 = vunpack.c.l.b16 %v2025
  %v2058 = vunpack.c.l.b16 %v2026
  %v2059 = vunpack.c.l.b16 %v2027
  %v2060 = vunpack.c.l.b16 %v2028
  %v2061 = vunpack.c.l.b16 %v2029
  %v2062 = vunpack.c.l.b16 %v2030
  %v2063 = vunpack.c.l.b16 %v2031
  %v2064 = vunpack.c.l.b16 %v2032
  %v2065 = vunpack.c.l.b16 %v2033
  %v2066 = vunpack.c.l.b16 %v2034
  %v2067 = vpack.c.b16 %v2052, %v2051
  %v2068 = vpack.c.b16 %v2054, %v2053
  %v2069 = vpack.c.b16 %v2056, %v2055
  %v2070 = vpack.c.b16 %v2058, %v2057
  %v2071 = vpack.c.b16 %v2060, %v2059
  %v2072 = vpack.c.b16 %v2062, %v2061
  %v2073 = vpack.c.b16 %v2064, %v2063
  %v2074 = vpack.c.b16 %v2066, %v2065
  %2083 = vmatprep.subr.bf16.mxu0 0
  %2084 = vmatpush1.bf16.msra.mxu0 %v2067
  %2085 = vmatprep.subr.bf16.mxu0 0
  %2086 = vmatpush1.bf16.msra.mxu0 %v2068
  %2087 = vmatprep.subr.bf16.mxu0 0
  %2088 = vmatpush1.bf16.msra.mxu0 %v2069
  %2089 = vmatprep.subr.bf16.mxu0 0
  %2090 = vmatpush1.bf16.msra.mxu0 %v2070
  %2091 = vmatprep.subr.bf16.mxu0 0
  %2092 = vmatpush1.bf16.msra.mxu0 %v2071
  %2093 = vmatprep.subr.bf16.mxu0 0
  %2094 = vmatpush1.bf16.msra.mxu0 %v2072
  %2095 = vmatprep.subr.bf16.mxu0 0
  %2096 = vmatpush1.bf16.msra.mxu0 %v2073
  %2097 = vmatprep.subr.bf16.mxu0 0
  %2098 = vmatpush1.bf16.msra.mxu0 %v2074
  %2099 = vmatprep.subr.bf16.mxu0 0
  %2100 = vmatpush1.bf16.msra.mxu0 0
  %2101 = vmatprep.subr.bf16.mxu0 0
  %2102 = vmatpush1.bf16.msra.mxu0 0
  %2103 = vmatprep.subr.bf16.mxu0 0
  %2104 = vmatpush1.bf16.msra.mxu0 0
  %2105 = vmatprep.subr.bf16.mxu0 0
  %2106 = vmatpush1.bf16.msra.mxu0 0
  %2107 = vmatprep.subr.bf16.mxu0 0
  %2108 = vmatpush1.bf16.msra.mxu0 0
  %2109 = vmatprep.subr.bf16.mxu0 0
  %2110 = vmatpush1.bf16.msra.mxu0 0
  %2111 = vmatprep.subr.bf16.mxu0 0
  %2112 = vmatpush1.bf16.msra.mxu0 0
  %2113 = vmatprep.subr.bf16.mxu0 0
  %2114 = vmatpush1.bf16.msra.mxu0 0
  %2115 = vmatprep.mubr.bf16.mxu0 0
  %2116 = vmatmul.mubr.bf16.gmra.mrb[0].mxu0 %v2017
  %v2117 = vpop.f32.mrb[0].mxu0
  %v2118 = vadd.f32 0.0, %v2117
  %v2119 = vpop.f32.mrb[0].mxu0
  %v2120 = vpop.f32.mrb[0].mxu0
  %v2121 = vpop.f32.mrb[0].mxu0
  %2122 = vdwg.mxu0
  %v2123 = vadd.f32 %v1820, %v2118
  %s2124 = scalar_lea.vmem %s0, 96
  %v2125 = vld [vmem:[%s2124] sm:$0xff]
  %s2126 = scalar_lea.vmem %s0, 104
  %v2127 = vld [vmem:[%s2126] sm:$0xff]
  %v2129 = vunpack.c.l.b16 %v2125
  %v2130 = vunpack.c.h.b16 %v2125
  %v2131 = vpack.c.b16 %v2129, %v2129
  %v2132 = vpack.c.b16 %v2130, %v2130
  %v2135 = vsel %vm166, %v2132, 0
  %2137 = vmatprep.subr.bf16.mxu0 %v133
  %2138 = vmatpush1.bf16.msra.mxu0 %v132
  %2139 = vmatprep.subr.bf16.mxu0 %v135
  %2140 = vmatpush1.bf16.msra.mxu0 %v134
  %2141 = vmatprep.subr.bf16.mxu0 %v137
  %2142 = vmatpush1.bf16.msra.mxu0 %v136
  %2143 = vmatprep.subr.bf16.mxu0 %v139
  %2144 = vmatpush1.bf16.msra.mxu0 %v138
  %2145 = vmatprep.subr.bf16.mxu0 %v141
  %2146 = vmatpush1.bf16.msra.mxu0 %v140
  %2147 = vmatprep.subr.bf16.mxu0 %v143
  %2148 = vmatpush1.bf16.msra.mxu0 %v142
  %2149 = vmatprep.subr.bf16.mxu0 %v145
  %2150 = vmatpush1.bf16.msra.mxu0 %v144
  %2151 = vmatprep.subr.bf16.mxu0 %v147
  %2152 = vmatpush1.bf16.msra.mxu0 %v146
  %2153 = vmatprep.subr.bf16.mxu0 %v175
  %2154 = vmatpush1.bf16.msra.mxu0 %v172
  %2155 = vmatprep.subr.bf16.mxu0 0
  %2156 = vmatpush1.bf16.msra.mxu0 0
  %2157 = vmatprep.subr.bf16.mxu0 0
  %2158 = vmatpush1.bf16.msra.mxu0 0
  %2159 = vmatprep.subr.bf16.mxu0 0
  %2160 = vmatpush1.bf16.msra.mxu0 0
  %2161 = vmatprep.subr.bf16.mxu0 0
  %2162 = vmatpush1.bf16.msra.mxu0 0
  %2163 = vmatprep.subr.bf16.mxu0 0
  %2164 = vmatpush1.bf16.msra.mxu0 0
  %2165 = vmatprep.subr.bf16.mxu0 0
  %2166 = vmatpush1.bf16.msra.mxu0 0
  %2167 = vmatprep.subr.bf16.mxu0 0
  %2168 = vmatpush1.bf16.msra.mxu0 0
  %2169 = vmatprep.mubr.bf16.mxu0 %v2135
  %2170 = vmatmul.mubr.bf16.gmra.mrb[0].mxu0 %v2131
  %v2171 = vpop.f32.mrb[0].mxu0
  %v2172 = vadd.f32 %v65, %v2171
  %v2173 = vpop.f32.mrb[0].mxu0
  %v2174 = vadd.f32 %v69, %v2173
  %v2175 = vpop.f32.mrb[0].mxu0
  %v2176 = vpop.f32.mrb[0].mxu0
  %2177 = vdwg.mxu0
  %v2178 = vmax.f32 %v2172, 0.0
  %v2179 = vmax.f32 %v2174, 0.0
  %v2181 = vunpack.c.l.b16 %v2127
  %v2182 = vunpack.c.h.b16 %v2127
  %v2183 = vpack.c.b16 %v2181, %v2181
  %v2184 = vpack.c.b16 %v2182, %v2182
  %v2187 = vsel %vm166, %v2184, 0
  %2189 = vmatprep.subr.bf16.mxu0 %v133
  %2190 = vmatpush1.bf16.msra.mxu0 %v132
  %2191 = vmatprep.subr.bf16.mxu0 %v135
  %2192 = vmatpush1.bf16.msra.mxu0 %v134
  %2193 = vmatprep.subr.bf16.mxu0 %v137
  %2194 = vmatpush1.bf16.msra.mxu0 %v136
  %2195 = vmatprep.subr.bf16.mxu0 %v139
  %2196 = vmatpush1.bf16.msra.mxu0 %v138
  %2197 = vmatprep.subr.bf16.mxu0 %v141
  %2198 = vmatpush1.bf16.msra.mxu0 %v140
  %2199 = vmatprep.subr.bf16.mxu0 %v143
  %2200 = vmatpush1.bf16.msra.mxu0 %v142
  %2201 = vmatprep.subr.bf16.mxu0 %v145
  %2202 = vmatpush1.bf16.msra.mxu0 %v144
  %2203 = vmatprep.subr.bf16.mxu0 %v147
  %2204 = vmatpush1.bf16.msra.mxu0 %v146
  %2205 = vmatprep.subr.bf16.mxu0 %v175
  %2206 = vmatpush1.bf16.msra.mxu0 %v172
  %2207 = vmatprep.subr.bf16.mxu0 0
  %2208 = vmatpush1.bf16.msra.mxu0 0
  %2209 = vmatprep.subr.bf16.mxu0 0
  %2210 = vmatpush1.bf16.msra.mxu0 0
  %2211 = vmatprep.subr.bf16.mxu0 0
  %2212 = vmatpush1.bf16.msra.mxu0 0
  %2213 = vmatprep.subr.bf16.mxu0 0
  %2214 = vmatpush1.bf16.msra.mxu0 0
  %2215 = vmatprep.subr.bf16.mxu0 0
  %2216 = vmatpush1.bf16.msra.mxu0 0
  %2217 = vmatprep.subr.bf16.mxu0 0
  %2218 = vmatpush1.bf16.msra.mxu0 0
  %2219 = vmatprep.subr.bf16.mxu0 0
  %2220 = vmatpush1.bf16.msra.mxu0 0
  %2221 = vmatprep.mubr.bf16.mxu0 %v2187
  %2222 = vmatmul.mubr.bf16.gmra.mrb[0].mxu0 %v2183
  %v2223 = vpop.f32.mrb[0].mxu0
  %v2224 = vadd.f32 %v65, %v2223
  %v2225 = vpop.f32.mrb[0].mxu0
  %v2226 = vadd.f32 %v69, %v2225
  %v2227 = vpop.f32.mrb[0].mxu0
  %v2228 = vpop.f32.mrb[0].mxu0
  %2229 = vdwg.mxu0
  %v2230 = vmax.f32 %v2224, 0.0
  %v2231 = vmax.f32 %v2226, 0.0
  %v2232 = vmax.f32 %v2178, %v2230
  %v2233 = vmax.f32 %v2179, %v2231
  %v2234 = vpack.c.bf16 %v2232, %v2232
  %v2235 = vpack.c.bf16 %v2233, %v2233
  %v2237 = vsel %vm348, %v2235, 0
  %2239 = vmatprep.subr.bf16.mxu0 0
  %2240 = vmatpush1.bf16.msra.mxu0 %v330
  %2241 = vmatprep.subr.bf16.mxu0 0
  %2242 = vmatpush1.bf16.msra.mxu0 %v331
  %2243 = vmatprep.subr.bf16.mxu0 0
  %2244 = vmatpush1.bf16.msra.mxu0 %v332
  %2245 = vmatprep.subr.bf16.mxu0 0
  %2246 = vmatpush1.bf16.msra.mxu0 %v333
  %2247 = vmatprep.subr.bf16.mxu0 0
  %2248 = vmatpush1.bf16.msra.mxu0 %v334
  %2249 = vmatprep.subr.bf16.mxu0 0
  %2250 = vmatpush1.bf16.msra.mxu0 %v335
  %2251 = vmatprep.subr.bf16.mxu0 0
  %2252 = vmatpush1.bf16.msra.mxu0 %v336
  %2253 = vmatprep.subr.bf16.mxu0 0
  %2254 = vmatpush1.bf16.msra.mxu0 %v337
  %2255 = vmatprep.subr.bf16.mxu0 0
  %2256 = vmatpush1.bf16.msra.mxu0 %v338
  %2257 = vmatprep.subr.bf16.mxu0 0
  %2258 = vmatpush1.bf16.msra.mxu0 0
  %2259 = vmatprep.subr.bf16.mxu0 0
  %2260 = vmatpush1.bf16.msra.mxu0 0
  %2261 = vmatprep.subr.bf16.mxu0 0
  %2262 = vmatpush1.bf16.msra.mxu0 0
  %2263 = vmatprep.subr.bf16.mxu0 0
  %2264 = vmatpush1.bf16.msra.mxu0 0
  %2265 = vmatprep.subr.bf16.mxu0 0
  %2266 = vmatpush1.bf16.msra.mxu0 0
  %2267 = vmatprep.subr.bf16.mxu0 0
  %2268 = vmatpush1.bf16.msra.mxu0 0
  %2269 = vmatprep.subr.bf16.mxu0 0
  %2270 = vmatpush1.bf16.msra.mxu0 0
  %2271 = vmatprep.mubr.bf16.mxu0 %v2237
  %2272 = vmatmul.mubr.bf16.gmra.mrb[0].mxu0 %v2234
  %v2273 = vpop.f32.mrb[0].mxu0
  %v2274 = vadd.f32 0.0, %v2273
  %v2275 = vpop.f32.mrb[0].mxu0
  %v2276 = vpop.f32.mrb[0].mxu0
  %v2277 = vpop.f32.mrb[0].mxu0
  %2278 = vdwg.mxu0
  %2279 = vmatprep.subr.bf16.mxu0 0
  %2280 = vmatpush1.bf16.msra.mxu0 %v446
  %2281 = vmatprep.subr.bf16.mxu0 0
  %2282 = vmatpush1.bf16.msra.mxu0 %v447
  %2283 = vmatprep.subr.bf16.mxu0 0
  %2284 = vmatpush1.bf16.msra.mxu0 %v448
  %2285 = vmatprep.subr.bf16.mxu0 0
  %2286 = vmatpush1.bf16.msra.mxu0 %v449
  %2287 = vmatprep.subr.bf16.mxu0 0
  %2288 = vmatpush1.bf16.msra.mxu0 %v450
  %2289 = vmatprep.subr.bf16.mxu0 0
  %2290 = vmatpush1.bf16.msra.mxu0 %v451
  %2291 = vmatprep.subr.bf16.mxu0 0
  %2292 = vmatpush1.bf16.msra.mxu0 %v452
  %2293 = vmatprep.subr.bf16.mxu0 0
  %2294 = vmatpush1.bf16.msra.mxu0 %v453
  %2295 = vmatprep.subr.bf16.mxu0 0
  %2296 = vmatpush1.bf16.msra.mxu0 %v454
  %2297 = vmatprep.subr.bf16.mxu0 0
  %2298 = vmatpush1.bf16.msra.mxu0 0
  %2299 = vmatprep.subr.bf16.mxu0 0
  %2300 = vmatpush1.bf16.msra.mxu0 0
  %2301 = vmatprep.subr.bf16.mxu0 0
  %2302 = vmatpush1.bf16.msra.mxu0 0
  %2303 = vmatprep.subr.bf16.mxu0 0
  %2304 = vmatpush1.bf16.msra.mxu0 0
  %2305 = vmatprep.subr.bf16.mxu0 0
  %2306 = vmatpush1.bf16.msra.mxu0 0
  %2307 = vmatprep.subr.bf16.mxu0 0
  %2308 = vmatpush1.bf16.msra.mxu0 0
  %2309 = vmatprep.subr.bf16.mxu0 0
  %2310 = vmatpush1.bf16.msra.mxu0 0
  %2311 = vmatprep.mubr.bf16.mxu0 %v2237
  %2312 = vmatmul.mubr.bf16.gmra.mrb[0].mxu0 %v2234
  %v2313 = vpop.f32.mrb[0].mxu0
  %v2314 = vadd.f32 0.0, %v2313
  %v2315 = vpop.f32.mrb[0].mxu0
  %v2316 = vpop.f32.mrb[0].mxu0
  %v2317 = vpop.f32.mrb[0].mxu0
  %2318 = vdwg.mxu0
  %v2319 = vmax.f32 %v2274, %v2314
  %v2320 = vpack.c.bf16 %v2319, %v2319
  %s2321 = scalar_lea.vmem %s5, 384
  %v2322 = vld [vmem:[%s2321] sm:$0xf]
  %v2323 = vld [vmem:[%s2321 + $0x4] sm:$0xf]
  %v2324 = vld [vmem:[%s2321 + $0x8] sm:$0xf]
  %v2325 = vld [vmem:[%s2321 + $0xc] sm:$0xf]
  %v2326 = vld [vmem:[%s2321 + $0x10] sm:$0xf]
  %v2327 = vld [vmem:[%s2321 + $0x14] sm:$0xf]
  %v2328 = vld [vmem:[%s2321 + $0x18] sm:$0xf]
  %v2329 = vld [vmem:[%s2321 + $0x1c] sm:$0xf]
  %v2330 = vld [vmem:[%s2321 + $0x20] sm:$0xf]
  %v2331 = vld [vmem:[%s2321 + $0x24] sm:$0xf]
  %v2332 = vld [vmem:[%s2321 + $0x28] sm:$0xf]
  %v2333 = vld [vmem:[%s2321 + $0x2c] sm:$0xf]
  %v2334 = vld [vmem:[%s2321 + $0x30] sm:$0xf]
  %v2335 = vld [vmem:[%s2321 + $0x34] sm:$0xf]
  %v2336 = vld [vmem:[%s2321 + $0x38] sm:$0xf]
  %v2337 = vld [vmem:[%s2321 + $0x3c] sm:$0xf]
  %v2354 = vunpack.c.l.b16 %v2322
  %v2355 = vunpack.c.l.b16 %v2323
  %v2356 = vunpack.c.l.b16 %v2324
  %v2357 = vunpack.c.l.b16 %v2325
  %v2358 = vunpack.c.l.b16 %v2326
  %v2359 = vunpack.c.l.b16 %v2327
  %v2360 = vunpack.c.l.b16 %v2328
  %v2361 = vunpack.c.l.b16 %v2329
  %v2362 = vunpack.c.l.b16 %v2330
  %v2363 = vunpack.c.l.b16 %v2331
  %v2364 = vunpack.c.l.b16 %v2332
  %v2365 = vunpack.c.l.b16 %v2333
  %v2366 = vunpack.c.l.b16 %v2334
  %v2367 = vunpack.c.l.b16 %v2335
  %v2368 = vunpack.c.l.b16 %v2336
  %v2369 = vunpack.c.l.b16 %v2337
  %v2370 = vpack.c.b16 %v2355, %v2354
  %v2371 = vpack.c.b16 %v2357, %v2356
  %v2372 = vpack.c.b16 %v2359, %v2358
  %v2373 = vpack.c.b16 %v2361, %v2360
  %v2374 = vpack.c.b16 %v2363, %v2362
  %v2375 = vpack.c.b16 %v2365, %v2364
  %v2376 = vpack.c.b16 %v2367, %v2366
  %v2377 = vpack.c.b16 %v2369, %v2368
  %2386 = vmatprep.subr.bf16.mxu0 0
  %2387 = vmatpush1.bf16.msra.mxu0 %v2370
  %2388 = vmatprep.subr.bf16.mxu0 0
  %2389 = vmatpush1.bf16.msra.mxu0 %v2371
  %2390 = vmatprep.subr.bf16.mxu0 0
  %2391 = vmatpush1.bf16.msra.mxu0 %v2372
  %2392 = vmatprep.subr.bf16.mxu0 0
  %2393 = vmatpush1.bf16.msra.mxu0 %v2373
  %2394 = vmatprep.subr.bf16.mxu0 0
  %2395 = vmatpush1.bf16.msra.mxu0 %v2374
  %2396 = vmatprep.subr.bf16.mxu0 0
  %2397 = vmatpush1.bf16.msra.mxu0 %v2375
  %2398 = vmatprep.subr.bf16.mxu0 0
  %2399 = vmatpush1.bf16.msra.mxu0 %v2376
  %2400 = vmatprep.subr.bf16.mxu0 0
  %2401 = vmatpush1.bf16.msra.mxu0 %v2377
  %2402 = vmatprep.subr.bf16.mxu0 0
  %2403 = vmatpush1.bf16.msra.mxu0 0
  %2404 = vmatprep.subr.bf16.mxu0 0
  %2405 = vmatpush1.bf16.msra.mxu0 0
  %2406 = vmatprep.subr.bf16.mxu0 0
  %2407 = vmatpush1.bf16.msra.mxu0 0
  %2408 = vmatprep.subr.bf16.mxu0 0
  %2409 = vmatpush1.bf16.msra.mxu0 0
  %2410 = vmatprep.subr.bf16.mxu0 0
  %2411 = vmatpush1.bf16.msra.mxu0 0
  %2412 = vmatprep.subr.bf16.mxu0 0
  %2413 = vmatpush1.bf16.msra.mxu0 0
  %2414 = vmatprep.subr.bf16.mxu0 0
  %2415 = vmatpush1.bf16.msra.mxu0 0
  %2416 = vmatprep.subr.bf16.mxu0 0
  %2417 = vmatpush1.bf16.msra.mxu0 0
  %2418 = vmatprep.mubr.bf16.mxu0 0
  %2419 = vmatmul.mubr.bf16.gmra.mrb[0].mxu0 %v2320
  %v2420 = vpop.f32.mrb[0].mxu0
  %v2421 = vadd.f32 0.0, %v2420
  %v2422 = vpop.f32.mrb[0].mxu0
  %v2423 = vpop.f32.mrb[0].mxu0
  %v2424 = vpop.f32.mrb[0].mxu0
  %2425 = vdwg.mxu0
  %v2426 = vadd.f32 %v2123, %v2421
  %s2427 = scalar_lea.vmem %s0, 112
  %v2428 = vld [vmem:[%s2427] sm:$0xff]
  %s2429 = scalar_lea.vmem %s0, 120
  %v2430 = vld [vmem:[%s2429] sm:$0xff]
  %v2432 = vunpack.c.l.b16 %v2428
  %v2433 = vunpack.c.h.b16 %v2428
  %v2434 = vpack.c.b16 %v2432, %v2432
  %v2435 = vpack.c.b16 %v2433, %v2433
  %v2438 = vsel %vm166, %v2435, 0
  %2440 = vmatprep.subr.bf16.mxu0 %v133
  %2441 = vmatpush1.bf16.msra.mxu0 %v132
  %2442 = vmatprep.subr.bf16.mxu0 %v135
  %2443 = vmatpush1.bf16.msra.mxu0 %v134
  %2444 = vmatprep.subr.bf16.mxu0 %v137
  %2445 = vmatpush1.bf16.msra.mxu0 %v136
  %2446 = vmatprep.subr.bf16.mxu0 %v139
  %2447 = vmatpush1.bf16.msra.mxu0 %v138
  %2448 = vmatprep.subr.bf16.mxu0 %v141
  %2449 = vmatpush1.bf16.msra.mxu0 %v140
  %2450 = vmatprep.subr.bf16.mxu0 %v143
  %2451 = vmatpush1.bf16.msra.mxu0 %v142
  %2452 = vmatprep.subr.bf16.mxu0 %v145
  %2453 = vmatpush1.bf16.msra.mxu0 %v144
  %2454 = vmatprep.subr.bf16.mxu0 %v147
  %2455 = vmatpush1.bf16.msra.mxu0 %v146
  %2456 = vmatprep.subr.bf16.mxu0 %v175
  %2457 = vmatpush1.bf16.msra.mxu0 %v172
  %2458 = vmatprep.subr.bf16.mxu0 0
  %2459 = vmatpush1.bf16.msra.mxu0 0
  %2460 = vmatprep.subr.bf16.mxu0 0
  %2461 = vmatpush1.bf16.msra.mxu0 0
  %2462 = vmatprep.subr.bf16.mxu0 0
  %2463 = vmatpush1.bf16.msra.mxu0 0
  %2464 = vmatprep.subr.bf16.mxu0 0
  %2465 = vmatpush1.bf16.msra.mxu0 0
  %2466 = vmatprep.subr.bf16.mxu0 0
  %2467 = vmatpush1.bf16.msra.mxu0 0
  %2468 = vmatprep.subr.bf16.mxu0 0
  %2469 = vmatpush1.bf16.msra.mxu0 0
  %2470 = vmatprep.subr.bf16.mxu0 0
  %2471 = vmatpush1.bf16.msra.mxu0 0
  %2472 = vmatprep.mubr.bf16.mxu0 %v2438
  %2473 = vmatmul.mubr.bf16.gmra.mrb[0].mxu0 %v2434
  %v2474 = vpop.f32.mrb[0].mxu0
  %v2475 = vadd.f32 %v65, %v2474
  %v2476 = vpop.f32.mrb[0].mxu0
  %v2477 = vadd.f32 %v69, %v2476
  %v2478 = vpop.f32.mrb[0].mxu0
  %v2479 = vpop.f32.mrb[0].mxu0
  %2480 = vdwg.mxu0
  %v2481 = vmax.f32 %v2475, 0.0
  %v2482 = vmax.f32 %v2477, 0.0
  %v2484 = vunpack.c.l.b16 %v2430
  %v2485 = vunpack.c.h.b16 %v2430
  %v2486 = vpack.c.b16 %v2484, %v2484
  %v2487 = vpack.c.b16 %v2485, %v2485
  %v2490 = vsel %vm166, %v2487, 0
  %2492 = vmatprep.subr.bf16.mxu0 %v133
  %2493 = vmatpush1.bf16.msra.mxu0 %v132
  %2494 = vmatprep.subr.bf16.mxu0 %v135
  %2495 = vmatpush1.bf16.msra.mxu0 %v134
  %2496 = vmatprep.subr.bf16.mxu0 %v137
  %2497 = vmatpush1.bf16.msra.mxu0 %v136
  %2498 = vmatprep.subr.bf16.mxu0 %v139
  %2499 = vmatpush1.bf16.msra.mxu0 %v138
  %2500 = vmatprep.subr.bf16.mxu0 %v141
  %2501 = vmatpush1.bf16.msra.mxu0 %v140
  %2502 = vmatprep.subr.bf16.mxu0 %v143
  %2503 = vmatpush1.bf16.msra.mxu0 %v142
  %2504 = vmatprep.subr.bf16.mxu0 %v145
  %2505 = vmatpush1.bf16.msra.mxu0 %v144
  %2506 = vmatprep.subr.bf16.mxu0 %v147
  %2507 = vmatpush1.bf16.msra.mxu0 %v146
  %2508 = vmatprep.subr.bf16.mxu0 %v175
  %2509 = vmatpush1.bf16.msra.mxu0 %v172
  %2510 = vmatprep.subr.bf16.mxu0 0
  %2511 = vmatpush1.bf16.msra.mxu0 0
  %2512 = vmatprep.subr.bf16.mxu0 0
  %2513 = vmatpush1.bf16.msra.mxu0 0
  %2514 = vmatprep.subr.bf16.mxu0 0
  %2515 = vmatpush1.bf16.msra.mxu0 0
  %2516 = vmatprep.subr.bf16.mxu0 0
  %2517 = vmatpush1.bf16.msra.mxu0 0
  %2518 = vmatprep.subr.bf16.mxu0 0
  %2519 = vmatpush1.bf16.msra.mxu0 0
  %2520 = vmatprep.subr.bf16.mxu0 0
  %2521 = vmatpush1.bf16.msra.mxu0 0
  %2522 = vmatprep.subr.bf16.mxu0 0
  %2523 = vmatpush1.bf16.msra.mxu0 0
  %2524 = vmatprep.mubr.bf16.mxu0 %v2490
  %2525 = vmatmul.mubr.bf16.gmra.mrb[0].mxu0 %v2486
  %v2526 = vpop.f32.mrb[0].mxu0
  %v2527 = vadd.f32 %v65, %v2526
  %v2528 = vpop.f32.mrb[0].mxu0
  %v2529 = vadd.f32 %v69, %v2528
  %v2530 = vpop.f32.mrb[0].mxu0
  %v2531 = vpop.f32.mrb[0].mxu0
  %2532 = vdwg.mxu0
  %v2533 = vmax.f32 %v2527, 0.0
  %v2534 = vmax.f32 %v2529, 0.0
  %v2535 = vmax.f32 %v2481, %v2533
  %v2536 = vmax.f32 %v2482, %v2534
  %v2537 = vpack.c.bf16 %v2535, %v2535
  %v2538 = vpack.c.bf16 %v2536, %v2536
  %v2540 = vsel %vm348, %v2538, 0
  %2542 = vmatprep.subr.bf16.mxu0 0
  %2543 = vmatpush1.bf16.msra.mxu0 %v330
  %2544 = vmatprep.subr.bf16.mxu0 0
  %2545 = vmatpush1.bf16.msra.mxu0 %v331
  %2546 = vmatprep.subr.bf16.mxu0 0
  %2547 = vmatpush1.bf16.msra.mxu0 %v332
  %2548 = vmatprep.subr.bf16.mxu0 0
  %2549 = vmatpush1.bf16.msra.mxu0 %v333
  %2550 = vmatprep.subr.bf16.mxu0 0
  %2551 = vmatpush1.bf16.msra.mxu0 %v334
  %2552 = vmatprep.subr.bf16.mxu0 0
  %2553 = vmatpush1.bf16.msra.mxu0 %v335
  %2554 = vmatprep.subr.bf16.mxu0 0
  %2555 = vmatpush1.bf16.msra.mxu0 %v336
  %2556 = vmatprep.subr.bf16.mxu0 0
  %2557 = vmatpush1.bf16.msra.mxu0 %v337
  %2558 = vmatprep.subr.bf16.mxu0 0
  %2559 = vmatpush1.bf16.msra.mxu0 %v338
  %2560 = vmatprep.subr.bf16.mxu0 0
  %2561 = vmatpush1.bf16.msra.mxu0 0
  %2562 = vmatprep.subr.bf16.mxu0 0
  %2563 = vmatpush1.bf16.msra.mxu0 0
  %2564 = vmatprep.subr.bf16.mxu0 0
  %2565 = vmatpush1.bf16.msra.mxu0 0
  %2566 = vmatprep.subr.bf16.mxu0 0
  %2567 = vmatpush1.bf16.msra.mxu0 0
  %2568 = vmatprep.subr.bf16.mxu0 0
  %2569 = vmatpush1.bf16.msra.mxu0 0
  %2570 = vmatprep.subr.bf16.mxu0 0
  %2571 = vmatpush1.bf16.msra.mxu0 0
  %2572 = vmatprep.subr.bf16.mxu0 0
  %2573 = vmatpush1.bf16.msra.mxu0 0
  %2574 = vmatprep.mubr.bf16.mxu0 %v2540
  %2575 = vmatmul.mubr.bf16.gmra.mrb[0].mxu0 %v2537
  %v2576 = vpop.f32.mrb[0].mxu0
  %v2577 = vadd.f32 0.0, %v2576
  %v2578 = vpop.f32.mrb[0].mxu0
  %v2579 = vpop.f32.mrb[0].mxu0
  %v2580 = vpop.f32.mrb[0].mxu0
  %2581 = vdwg.mxu0
  %2582 = vmatprep.subr.bf16.mxu0 0
  %2583 = vmatpush1.bf16.msra.mxu0 %v446
  %2584 = vmatprep.subr.bf16.mxu0 0
  %2585 = vmatpush1.bf16.msra.mxu0 %v447
  %2586 = vmatprep.subr.bf16.mxu0 0
  %2587 = vmatpush1.bf16.msra.mxu0 %v448
  %2588 = vmatprep.subr.bf16.mxu0 0
  %2589 = vmatpush1.bf16.msra.mxu0 %v449
  %2590 = vmatprep.subr.bf16.mxu0 0
  %2591 = vmatpush1.bf16.msra.mxu0 %v450
  %2592 = vmatprep.subr.bf16.mxu0 0
  %2593 = vmatpush1.bf16.msra.mxu0 %v451
  %2594 = vmatprep.subr.bf16.mxu0 0
  %2595 = vmatpush1.bf16.msra.mxu0 %v452
  %2596 = vmatprep.subr.bf16.mxu0 0
  %2597 = vmatpush1.bf16.msra.mxu0 %v453
  %2598 = vmatprep.subr.bf16.mxu0 0
  %2599 = vmatpush1.bf16.msra.mxu0 %v454
  %2600 = vmatprep.subr.bf16.mxu0 0
  %2601 = vmatpush1.bf16.msra.mxu0 0
  %2602 = vmatprep.subr.bf16.mxu0 0
  %2603 = vmatpush1.bf16.msra.mxu0 0
  %2604 = vmatprep.subr.bf16.mxu0 0
  %2605 = vmatpush1.bf16.msra.mxu0 0
  %2606 = vmatprep.subr.bf16.mxu0 0
  %2607 = vmatpush1.bf16.msra.mxu0 0
  %2608 = vmatprep.subr.bf16.mxu0 0
  %2609 = vmatpush1.bf16.msra.mxu0 0
  %2610 = vmatprep.subr.bf16.mxu0 0
  %2611 = vmatpush1.bf16.msra.mxu0 0
  %2612 = vmatprep.subr.bf16.mxu0 0
  %2613 = vmatpush1.bf16.msra.mxu0 0
  %2614 = vmatprep.mubr.bf16.mxu0 %v2540
  %2615 = vmatmul.mubr.bf16.gmra.mrb[0].mxu0 %v2537
  %v2616 = vpop.f32.mrb[0].mxu0
  %v2617 = vadd.f32 0.0, %v2616
  %v2618 = vpop.f32.mrb[0].mxu0
  %v2619 = vpop.f32.mrb[0].mxu0
  %v2620 = vpop.f32.mrb[0].mxu0
  %2621 = vdwg.mxu0
  %v2622 = vmax.f32 %v2577, %v2617
  %v2623 = vpack.c.bf16 %v2622, %v2622
  %s2624 = scalar_lea.vmem %s5, 448
  %v2625 = vld [vmem:[%s2624] sm:$0xf]
  %v2626 = vld [vmem:[%s2624 + $0x4] sm:$0xf]
  %v2627 = vld [vmem:[%s2624 + $0x8] sm:$0xf]
  %v2628 = vld [vmem:[%s2624 + $0xc] sm:$0xf]
  %v2629 = vld [vmem:[%s2624 + $0x10] sm:$0xf]
  %v2630 = vld [vmem:[%s2624 + $0x14] sm:$0xf]
  %v2631 = vld [vmem:[%s2624 + $0x18] sm:$0xf]
  %v2632 = vld [vmem:[%s2624 + $0x1c] sm:$0xf]
  %v2633 = vld [vmem:[%s2624 + $0x20] sm:$0xf]
  %v2634 = vld [vmem:[%s2624 + $0x24] sm:$0xf]
  %v2635 = vld [vmem:[%s2624 + $0x28] sm:$0xf]
  %v2636 = vld [vmem:[%s2624 + $0x2c] sm:$0xf]
  %v2637 = vld [vmem:[%s2624 + $0x30] sm:$0xf]
  %v2638 = vld [vmem:[%s2624 + $0x34] sm:$0xf]
  %v2639 = vld [vmem:[%s2624 + $0x38] sm:$0xf]
  %v2640 = vld [vmem:[%s2624 + $0x3c] sm:$0xf]
  %v2657 = vunpack.c.l.b16 %v2625
  %v2658 = vunpack.c.l.b16 %v2626
  %v2659 = vunpack.c.l.b16 %v2627
  %v2660 = vunpack.c.l.b16 %v2628
  %v2661 = vunpack.c.l.b16 %v2629
  %v2662 = vunpack.c.l.b16 %v2630
  %v2663 = vunpack.c.l.b16 %v2631
  %v2664 = vunpack.c.l.b16 %v2632
  %v2665 = vunpack.c.l.b16 %v2633
  %v2666 = vunpack.c.l.b16 %v2634
  %v2667 = vunpack.c.l.b16 %v2635
  %v2668 = vunpack.c.l.b16 %v2636
  %v2669 = vunpack.c.l.b16 %v2637
  %v2670 = vunpack.c.l.b16 %v2638
  %v2671 = vunpack.c.l.b16 %v2639
  %v2672 = vunpack.c.l.b16 %v2640
  %v2673 = vpack.c.b16 %v2658, %v2657
  %v2674 = vpack.c.b16 %v2660, %v2659
  %v2675 = vpack.c.b16 %v2662, %v2661
  %v2676 = vpack.c.b16 %v2664, %v2663
  %v2677 = vpack.c.b16 %v2666, %v2665
  %v2678 = vpack.c.b16 %v2668, %v2667
  %v2679 = vpack.c.b16 %v2670, %v2669
  %v2680 = vpack.c.b16 %v2672, %v2671
  %2689 = vmatprep.subr.bf16.mxu0 0
  %2690 = vmatpush1.bf16.msra.mxu0 %v2673
  %2691 = vmatprep.subr.bf16.mxu0 0
  %2692 = vmatpush1.bf16.msra.mxu0 %v2674
  %2693 = vmatprep.subr.bf16.mxu0 0
  %2694 = vmatpush1.bf16.msra.mxu0 %v2675
  %2695 = vmatprep.subr.bf16.mxu0 0
  %2696 = vmatpush1.bf16.msra.mxu0 %v2676
  %2697 = vmatprep.subr.bf16.mxu0 0
  %2698 = vmatpush1.bf16.msra.mxu0 %v2677
  %2699 = vmatprep.subr.bf16.mxu0 0
  %2700 = vmatpush1.bf16.msra.mxu0 %v2678
  %2701 = vmatprep.subr.bf16.mxu0 0
  %2702 = vmatpush1.bf16.msra.mxu0 %v2679
  %2703 = vmatprep.subr.bf16.mxu0 0
  %2704 = vmatpush1.bf16.msra.mxu0 %v2680
  %2705 = vmatprep.subr.bf16.mxu0 0
  %2706 = vmatpush1.bf16.msra.mxu0 0
  %2707 = vmatprep.subr.bf16.mxu0 0
  %2708 = vmatpush1.bf16.msra.mxu0 0
  %2709 = vmatprep.subr.bf16.mxu0 0
  %2710 = vmatpush1.bf16.msra.mxu0 0
  %2711 = vmatprep.subr.bf16.mxu0 0
  %2712 = vmatpush1.bf16.msra.mxu0 0
  %2713 = vmatprep.subr.bf16.mxu0 0
  %2714 = vmatpush1.bf16.msra.mxu0 0
  %2715 = vmatprep.subr.bf16.mxu0 0
  %2716 = vmatpush1.bf16.msra.mxu0 0
  %2717 = vmatprep.subr.bf16.mxu0 0
  %2718 = vmatpush1.bf16.msra.mxu0 0
  %2719 = vmatprep.subr.bf16.mxu0 0
  %2720 = vmatpush1.bf16.msra.mxu0 0
  %2721 = vmatprep.mubr.bf16.mxu0 0
  %2722 = vmatmul.mubr.bf16.gmra.mrb[0].mxu0 %v2623
  %v2723 = vpop.f32.mrb[0].mxu0
  %v2724 = vadd.f32 0.0, %v2723
  %v2725 = vpop.f32.mrb[0].mxu0
  %v2726 = vpop.f32.mrb[0].mxu0
  %v2727 = vpop.f32.mrb[0].mxu0
  %2728 = vdwg.mxu0
  %v2729 = vadd.f32 %v2426, %v2724
  %s2730 = scalar_lea.vmem %s0, 128
  %v2731 = vld [vmem:[%s2730] sm:$0xff]
  %s2732 = scalar_lea.vmem %s0, 136
  %v2733 = vld [vmem:[%s2732] sm:$0xff]
  %v2735 = vunpack.c.l.b16 %v2731
  %v2736 = vunpack.c.h.b16 %v2731
  %v2737 = vpack.c.b16 %v2735, %v2735
  %v2738 = vpack.c.b16 %v2736, %v2736
  %v2741 = vsel %vm166, %v2738, 0
  %2743 = vmatprep.subr.bf16.mxu0 %v133
  %2744 = vmatpush1.bf16.msra.mxu0 %v132
  %2745 = vmatprep.subr.bf16.mxu0 %v135
  %2746 = vmatpush1.bf16.msra.mxu0 %v134
  %2747 = vmatprep.subr.bf16.mxu0 %v137
  %2748 = vmatpush1.bf16.msra.mxu0 %v136
  %2749 = vmatprep.subr.bf16.mxu0 %v139
  %2750 = vmatpush1.bf16.msra.mxu0 %v138
  %2751 = vmatprep.subr.bf16.mxu0 %v141
  %2752 = vmatpush1.bf16.msra.mxu0 %v140
  %2753 = vmatprep.subr.bf16.mxu0 %v143
  %2754 = vmatpush1.bf16.msra.mxu0 %v142
  %2755 = vmatprep.subr.bf16.mxu0 %v145
  %2756 = vmatpush1.bf16.msra.mxu0 %v144
  %2757 = vmatprep.subr.bf16.mxu0 %v147
  %2758 = vmatpush1.bf16.msra.mxu0 %v146
  %2759 = vmatprep.subr.bf16.mxu0 %v175
  %2760 = vmatpush1.bf16.msra.mxu0 %v172
  %2761 = vmatprep.subr.bf16.mxu0 0
  %2762 = vmatpush1.bf16.msra.mxu0 0
  %2763 = vmatprep.subr.bf16.mxu0 0
  %2764 = vmatpush1.bf16.msra.mxu0 0
  %2765 = vmatprep.subr.bf16.mxu0 0
  %2766 = vmatpush1.bf16.msra.mxu0 0
  %2767 = vmatprep.subr.bf16.mxu0 0
  %2768 = vmatpush1.bf16.msra.mxu0 0
  %2769 = vmatprep.subr.bf16.mxu0 0
  %2770 = vmatpush1.bf16.msra.mxu0 0
  %2771 = vmatprep.subr.bf16.mxu0 0
  %2772 = vmatpush1.bf16.msra.mxu0 0
  %2773 = vmatprep.subr.bf16.mxu0 0
  %2774 = vmatpush1.bf16.msra.mxu0 0
  %2775 = vmatprep.mubr.bf16.mxu0 %v2741
  %2776 = vmatmul.mubr.bf16.gmra.mrb[0].mxu0 %v2737
  %v2777 = vpop.f32.mrb[0].mxu0
  %v2778 = vadd.f32 %v65, %v2777
  %v2779 = vpop.f32.mrb[0].mxu0
  %v2780 = vadd.f32 %v69, %v2779
  %v2781 = vpop.f32.mrb[0].mxu0
  %v2782 = vpop.f32.mrb[0].mxu0
  %2783 = vdwg.mxu0
  %v2784 = vmax.f32 %v2778, 0.0
  %v2785 = vmax.f32 %v2780, 0.0
  %v2787 = vunpack.c.l.b16 %v2733
  %v2788 = vunpack.c.h.b16 %v2733
  %v2789 = vpack.c.b16 %v2787, %v2787
  %v2790 = vpack.c.b16 %v2788, %v2788
  %v2793 = vsel %vm166, %v2790, 0
  %2795 = vmatprep.subr.bf16.mxu0 %v133
  %2796 = vmatpush1.bf16.msra.mxu0 %v132
  %2797 = vmatprep.subr.bf16.mxu0 %v135
  %2798 = vmatpush1.bf16.msra.mxu0 %v134
  %2799 = vmatprep.subr.bf16.mxu0 %v137
  %2800 = vmatpush1.bf16.msra.mxu0 %v136
  %2801 = vmatprep.subr.bf16.mxu0 %v139
  %2802 = vmatpush1.bf16.msra.mxu0 %v138
  %2803 = vmatprep.subr.bf16.mxu0 %v141
  %2804 = vmatpush1.bf16.msra.mxu0 %v140
  %2805 = vmatprep.subr.bf16.mxu0 %v143
  %2806 = vmatpush1.bf16.msra.mxu0 %v142
  %2807 = vmatprep.subr.bf16.mxu0 %v145
  %2808 = vmatpush1.bf16.msra.mxu0 %v144
  %2809 = vmatprep.subr.bf16.mxu0 %v147
  %2810 = vmatpush1.bf16.msra.mxu0 %v146
  %2811 = vmatprep.subr.bf16.mxu0 %v175
  %2812 = vmatpush1.bf16.msra.mxu0 %v172
  %2813 = vmatprep.subr.bf16.mxu0 0
  %2814 = vmatpush1.bf16.msra.mxu0 0
  %2815 = vmatprep.subr.bf16.mxu0 0
  %2816 = vmatpush1.bf16.msra.mxu0 0
  %2817 = vmatprep.subr.bf16.mxu0 0
  %2818 = vmatpush1.bf16.msra.mxu0 0
  %2819 = vmatprep.subr.bf16.mxu0 0
  %2820 = vmatpush1.bf16.msra.mxu0 0
  %2821 = vmatprep.subr.bf16.mxu0 0
  %2822 = vmatpush1.bf16.msra.mxu0 0
  %2823 = vmatprep.subr.bf16.mxu0 0
  %2824 = vmatpush1.bf16.msra.mxu0 0
  %2825 = vmatprep.subr.bf16.mxu0 0
  %2826 = vmatpush1.bf16.msra.mxu0 0
  %2827 = vmatprep.mubr.bf16.mxu0 %v2793
  %2828 = vmatmul.mubr.bf16.gmra.mrb[0].mxu0 %v2789
  %v2829 = vpop.f32.mrb[0].mxu0
  %v2830 = vadd.f32 %v65, %v2829
  %v2831 = vpop.f32.mrb[0].mxu0
  %v2832 = vadd.f32 %v69, %v2831
  %v2833 = vpop.f32.mrb[0].mxu0
  %v2834 = vpop.f32.mrb[0].mxu0
  %2835 = vdwg.mxu0
  %v2836 = vmax.f32 %v2830, 0.0
  %v2837 = vmax.f32 %v2832, 0.0
  %v2838 = vmax.f32 %v2784, %v2836
  %v2839 = vmax.f32 %v2785, %v2837
  %v2840 = vpack.c.bf16 %v2838, %v2838
  %v2841 = vpack.c.bf16 %v2839, %v2839
  %v2843 = vsel %vm348, %v2841, 0
  %2845 = vmatprep.subr.bf16.mxu0 0
  %2846 = vmatpush1.bf16.msra.mxu0 %v330
  %2847 = vmatprep.subr.bf16.mxu0 0
  %2848 = vmatpush1.bf16.msra.mxu0 %v331
  %2849 = vmatprep.subr.bf16.mxu0 0
  %2850 = vmatpush1.bf16.msra.mxu0 %v332
  %2851 = vmatprep.subr.bf16.mxu0 0
  %2852 = vmatpush1.bf16.msra.mxu0 %v333
  %2853 = vmatprep.subr.bf16.mxu0 0
  %2854 = vmatpush1.bf16.msra.mxu0 %v334
  %2855 = vmatprep.subr.bf16.mxu0 0
  %2856 = vmatpush1.bf16.msra.mxu0 %v335
  %2857 = vmatprep.subr.bf16.mxu0 0
  %2858 = vmatpush1.bf16.msra.mxu0 %v336
  %2859 = vmatprep.subr.bf16.mxu0 0
  %2860 = vmatpush1.bf16.msra.mxu0 %v337
  %2861 = vmatprep.subr.bf16.mxu0 0
  %2862 = vmatpush1.bf16.msra.mxu0 %v338
  %2863 = vmatprep.subr.bf16.mxu0 0
  %2864 = vmatpush1.bf16.msra.mxu0 0
  %2865 = vmatprep.subr.bf16.mxu0 0
  %2866 = vmatpush1.bf16.msra.mxu0 0
  %2867 = vmatprep.subr.bf16.mxu0 0
  %2868 = vmatpush1.bf16.msra.mxu0 0
  %2869 = vmatprep.subr.bf16.mxu0 0
  %2870 = vmatpush1.bf16.msra.mxu0 0
  %2871 = vmatprep.subr.bf16.mxu0 0
  %2872 = vmatpush1.bf16.msra.mxu0 0
  %2873 = vmatprep.subr.bf16.mxu0 0
  %2874 = vmatpush1.bf16.msra.mxu0 0
  %2875 = vmatprep.subr.bf16.mxu0 0
  %2876 = vmatpush1.bf16.msra.mxu0 0
  %2877 = vmatprep.mubr.bf16.mxu0 %v2843
  %2878 = vmatmul.mubr.bf16.gmra.mrb[0].mxu0 %v2840
  %v2879 = vpop.f32.mrb[0].mxu0
  %v2880 = vadd.f32 0.0, %v2879
  %v2881 = vpop.f32.mrb[0].mxu0
  %v2882 = vpop.f32.mrb[0].mxu0
  %v2883 = vpop.f32.mrb[0].mxu0
  %2884 = vdwg.mxu0
  %2885 = vmatprep.subr.bf16.mxu0 0
  %2886 = vmatpush1.bf16.msra.mxu0 %v446
  %2887 = vmatprep.subr.bf16.mxu0 0
  %2888 = vmatpush1.bf16.msra.mxu0 %v447
  %2889 = vmatprep.subr.bf16.mxu0 0
  %2890 = vmatpush1.bf16.msra.mxu0 %v448
  %2891 = vmatprep.subr.bf16.mxu0 0
  %2892 = vmatpush1.bf16.msra.mxu0 %v449
  %2893 = vmatprep.subr.bf16.mxu0 0
  %2894 = vmatpush1.bf16.msra.mxu0 %v450
  %2895 = vmatprep.subr.bf16.mxu0 0
  %2896 = vmatpush1.bf16.msra.mxu0 %v451
  %2897 = vmatprep.subr.bf16.mxu0 0
  %2898 = vmatpush1.bf16.msra.mxu0 %v452
  %2899 = vmatprep.subr.bf16.mxu0 0
  %2900 = vmatpush1.bf16.msra.mxu0 %v453
  %2901 = vmatprep.subr.bf16.mxu0 0
  %2902 = vmatpush1.bf16.msra.mxu0 %v454
  %2903 = vmatprep.subr.bf16.mxu0 0
  %2904 = vmatpush1.bf16.msra.mxu0 0
  %2905 = vmatprep.subr.bf16.mxu0 0
  %2906 = vmatpush1.bf16.msra.mxu0 0
  %2907 = vmatprep.subr.bf16.mxu0 0
  %2908 = vmatpush1.bf16.msra.mxu0 0
  %2909 = vmatprep.subr.bf16.mxu0 0
  %2910 = vmatpush1.bf16.msra.mxu0 0
  %2911 = vmatprep.subr.bf16.mxu0 0
  %2912 = vmatpush1.bf16.msra.mxu0 0
  %2913 = vmatprep.subr.bf16.mxu0 0
  %2914 = vmatpush1.bf16.msra.mxu0 0
  %2915 = vmatprep.subr.bf16.mxu0 0
  %2916 = vmatpush1.bf16.msra.mxu0 0
  %2917 = vmatprep.mubr.bf16.mxu0 %v2843
  %2918 = vmatmul.mubr.bf16.gmra.mrb[0].mxu0 %v2840
  %v2919 = vpop.f32.mrb[0].mxu0
  %v2920 = vadd.f32 0.0, %v2919
  %v2921 = vpop.f32.mrb[0].mxu0
  %v2922 = vpop.f32.mrb[0].mxu0
  %v2923 = vpop.f32.mrb[0].mxu0
  %2924 = vdwg.mxu0
  %v2925 = vmax.f32 %v2880, %v2920
  %v2926 = vpack.c.bf16 %v2925, %v2925
  %s2927 = scalar_lea.vmem %s5, 512
  %v2928 = vld [vmem:[%s2927] sm:$0xf]
  %v2929 = vld [vmem:[%s2927 + $0x4] sm:$0xf]
  %v2930 = vld [vmem:[%s2927 + $0x8] sm:$0xf]
  %v2931 = vld [vmem:[%s2927 + $0xc] sm:$0xf]
  %v2932 = vld [vmem:[%s2927 + $0x10] sm:$0xf]
  %v2933 = vld [vmem:[%s2927 + $0x14] sm:$0xf]
  %v2934 = vld [vmem:[%s2927 + $0x18] sm:$0xf]
  %v2935 = vld [vmem:[%s2927 + $0x1c] sm:$0xf]
  %v2936 = vld [vmem:[%s2927 + $0x20] sm:$0xf]
  %v2937 = vld [vmem:[%s2927 + $0x24] sm:$0xf]
  %v2938 = vld [vmem:[%s2927 + $0x28] sm:$0xf]
  %v2939 = vld [vmem:[%s2927 + $0x2c] sm:$0xf]
  %v2940 = vld [vmem:[%s2927 + $0x30] sm:$0xf]
  %v2941 = vld [vmem:[%s2927 + $0x34] sm:$0xf]
  %v2942 = vld [vmem:[%s2927 + $0x38] sm:$0xf]
  %v2943 = vld [vmem:[%s2927 + $0x3c] sm:$0xf]
  %v2960 = vunpack.c.l.b16 %v2928
  %v2961 = vunpack.c.l.b16 %v2929
  %v2962 = vunpack.c.l.b16 %v2930
  %v2963 = vunpack.c.l.b16 %v2931
  %v2964 = vunpack.c.l.b16 %v2932
  %v2965 = vunpack.c.l.b16 %v2933
  %v2966 = vunpack.c.l.b16 %v2934
  %v2967 = vunpack.c.l.b16 %v2935
  %v2968 = vunpack.c.l.b16 %v2936
  %v2969 = vunpack.c.l.b16 %v2937
  %v2970 = vunpack.c.l.b16 %v2938
  %v2971 = vunpack.c.l.b16 %v2939
  %v2972 = vunpack.c.l.b16 %v2940
  %v2973 = vunpack.c.l.b16 %v2941
  %v2974 = vunpack.c.l.b16 %v2942
  %v2975 = vunpack.c.l.b16 %v2943
  %v2976 = vpack.c.b16 %v2961, %v2960
  %v2977 = vpack.c.b16 %v2963, %v2962
  %v2978 = vpack.c.b16 %v2965, %v2964
  %v2979 = vpack.c.b16 %v2967, %v2966
  %v2980 = vpack.c.b16 %v2969, %v2968
  %v2981 = vpack.c.b16 %v2971, %v2970
  %v2982 = vpack.c.b16 %v2973, %v2972
  %v2983 = vpack.c.b16 %v2975, %v2974
  %2992 = vmatprep.subr.bf16.mxu0 0
  %2993 = vmatpush1.bf16.msra.mxu0 %v2976
  %2994 = vmatprep.subr.bf16.mxu0 0
  %2995 = vmatpush1.bf16.msra.mxu0 %v2977
  %2996 = vmatprep.subr.bf16.mxu0 0
  %2997 = vmatpush1.bf16.msra.mxu0 %v2978
  %2998 = vmatprep.subr.bf16.mxu0 0
  %2999 = vmatpush1.bf16.msra.mxu0 %v2979
  %3000 = vmatprep.subr.bf16.mxu0 0
  %3001 = vmatpush1.bf16.msra.mxu0 %v2980
  %3002 = vmatprep.subr.bf16.mxu0 0
  %3003 = vmatpush1.bf16.msra.mxu0 %v2981
  %3004 = vmatprep.subr.bf16.mxu0 0
  %3005 = vmatpush1.bf16.msra.mxu0 %v2982
  %3006 = vmatprep.subr.bf16.mxu0 0
  %3007 = vmatpush1.bf16.msra.mxu0 %v2983
  %3008 = vmatprep.subr.bf16.mxu0 0
  %3009 = vmatpush1.bf16.msra.mxu0 0
  %3010 = vmatprep.subr.bf16.mxu0 0
  %3011 = vmatpush1.bf16.msra.mxu0 0
  %3012 = vmatprep.subr.bf16.mxu0 0
  %3013 = vmatpush1.bf16.msra.mxu0 0
  %3014 = vmatprep.subr.bf16.mxu0 0
  %3015 = vmatpush1.bf16.msra.mxu0 0
  %3016 = vmatprep.subr.bf16.mxu0 0
  %3017 = vmatpush1.bf16.msra.mxu0 0
  %3018 = vmatprep.subr.bf16.mxu0 0
  %3019 = vmatpush1.bf16.msra.mxu0 0
  %3020 = vmatprep.subr.bf16.mxu0 0
  %3021 = vmatpush1.bf16.msra.mxu0 0
  %3022 = vmatprep.subr.bf16.mxu0 0
  %3023 = vmatpush1.bf16.msra.mxu0 0
  %3024 = vmatprep.mubr.bf16.mxu0 0
  %3025 = vmatmul.mubr.bf16.gmra.mrb[0].mxu0 %v2926
  %v3026 = vpop.f32.mrb[0].mxu0
  %v3027 = vadd.f32 0.0, %v3026
  %v3028 = vpop.f32.mrb[0].mxu0
  %v3029 = vpop.f32.mrb[0].mxu0
  %v3030 = vpop.f32.mrb[0].mxu0
  %3031 = vdwg.mxu0
  %v3032 = vadd.f32 %v2729, %v3027
  %s3033 = scalar_lea.vmem %s0, 144
  %v3034 = vld [vmem:[%s3033] sm:$0xff]
  %s3035 = scalar_lea.vmem %s0, 152
  %v3036 = vld [vmem:[%s3035] sm:$0xff]
  %v3038 = vunpack.c.l.b16 %v3034
  %v3039 = vunpack.c.h.b16 %v3034
  %v3040 = vpack.c.b16 %v3038, %v3038
  %v3041 = vpack.c.b16 %v3039, %v3039
  %v3044 = vsel %vm166, %v3041, 0
  %3046 = vmatprep.subr.bf16.mxu0 %v133
  %3047 = vmatpush1.bf16.msra.mxu0 %v132
  %3048 = vmatprep.subr.bf16.mxu0 %v135
  %3049 = vmatpush1.bf16.msra.mxu0 %v134
  %3050 = vmatprep.subr.bf16.mxu0 %v137
  %3051 = vmatpush1.bf16.msra.mxu0 %v136
  %3052 = vmatprep.subr.bf16.mxu0 %v139
  %3053 = vmatpush1.bf16.msra.mxu0 %v138
  %3054 = vmatprep.subr.bf16.mxu0 %v141
  %3055 = vmatpush1.bf16.msra.mxu0 %v140
  %3056 = vmatprep.subr.bf16.mxu0 %v143
  %3057 = vmatpush1.bf16.msra.mxu0 %v142
  %3058 = vmatprep.subr.bf16.mxu0 %v145
  %3059 = vmatpush1.bf16.msra.mxu0 %v144
  %3060 = vmatprep.subr.bf16.mxu0 %v147
  %3061 = vmatpush1.bf16.msra.mxu0 %v146
  %3062 = vmatprep.subr.bf16.mxu0 %v175
  %3063 = vmatpush1.bf16.msra.mxu0 %v172
  %3064 = vmatprep.subr.bf16.mxu0 0
  %3065 = vmatpush1.bf16.msra.mxu0 0
  %3066 = vmatprep.subr.bf16.mxu0 0
  %3067 = vmatpush1.bf16.msra.mxu0 0
  %3068 = vmatprep.subr.bf16.mxu0 0
  %3069 = vmatpush1.bf16.msra.mxu0 0
  %3070 = vmatprep.subr.bf16.mxu0 0
  %3071 = vmatpush1.bf16.msra.mxu0 0
  %3072 = vmatprep.subr.bf16.mxu0 0
  %3073 = vmatpush1.bf16.msra.mxu0 0
  %3074 = vmatprep.subr.bf16.mxu0 0
  %3075 = vmatpush1.bf16.msra.mxu0 0
  %3076 = vmatprep.subr.bf16.mxu0 0
  %3077 = vmatpush1.bf16.msra.mxu0 0
  %3078 = vmatprep.mubr.bf16.mxu0 %v3044
  %3079 = vmatmul.mubr.bf16.gmra.mrb[0].mxu0 %v3040
  %v3080 = vpop.f32.mrb[0].mxu0
  %v3081 = vadd.f32 %v65, %v3080
  %v3082 = vpop.f32.mrb[0].mxu0
  %v3083 = vadd.f32 %v69, %v3082
  %v3084 = vpop.f32.mrb[0].mxu0
  %v3085 = vpop.f32.mrb[0].mxu0
  %3086 = vdwg.mxu0
  %v3087 = vmax.f32 %v3081, 0.0
  %v3088 = vmax.f32 %v3083, 0.0
  %v3090 = vunpack.c.l.b16 %v3036
  %v3091 = vunpack.c.h.b16 %v3036
  %v3092 = vpack.c.b16 %v3090, %v3090
  %v3093 = vpack.c.b16 %v3091, %v3091
  %v3096 = vsel %vm166, %v3093, 0
  %3098 = vmatprep.subr.bf16.mxu0 %v133
  %3099 = vmatpush1.bf16.msra.mxu0 %v132
  %3100 = vmatprep.subr.bf16.mxu0 %v135
  %3101 = vmatpush1.bf16.msra.mxu0 %v134
  %3102 = vmatprep.subr.bf16.mxu0 %v137
  %3103 = vmatpush1.bf16.msra.mxu0 %v136
  %3104 = vmatprep.subr.bf16.mxu0 %v139
  %3105 = vmatpush1.bf16.msra.mxu0 %v138
  %3106 = vmatprep.subr.bf16.mxu0 %v141
  %3107 = vmatpush1.bf16.msra.mxu0 %v140
  %3108 = vmatprep.subr.bf16.mxu0 %v143
  %3109 = vmatpush1.bf16.msra.mxu0 %v142
  %3110 = vmatprep.subr.bf16.mxu0 %v145
  %3111 = vmatpush1.bf16.msra.mxu0 %v144
  %3112 = vmatprep.subr.bf16.mxu0 %v147
  %3113 = vmatpush1.bf16.msra.mxu0 %v146
  %3114 = vmatprep.subr.bf16.mxu0 %v175
  %3115 = vmatpush1.bf16.msra.mxu0 %v172
  %3116 = vmatprep.subr.bf16.mxu0 0
  %3117 = vmatpush1.bf16.msra.mxu0 0
  %3118 = vmatprep.subr.bf16.mxu0 0
  %3119 = vmatpush1.bf16.msra.mxu0 0
  %3120 = vmatprep.subr.bf16.mxu0 0
  %3121 = vmatpush1.bf16.msra.mxu0 0
  %3122 = vmatprep.subr.bf16.mxu0 0
  %3123 = vmatpush1.bf16.msra.mxu0 0
  %3124 = vmatprep.subr.bf16.mxu0 0
  %3125 = vmatpush1.bf16.msra.mxu0 0
  %3126 = vmatprep.subr.bf16.mxu0 0
  %3127 = vmatpush1.bf16.msra.mxu0 0
  %3128 = vmatprep.subr.bf16.mxu0 0
  %3129 = vmatpush1.bf16.msra.mxu0 0
  %3130 = vmatprep.mubr.bf16.mxu0 %v3096
  %3131 = vmatmul.mubr.bf16.gmra.mrb[0].mxu0 %v3092
  %v3132 = vpop.f32.mrb[0].mxu0
  %v3133 = vadd.f32 %v65, %v3132
  %v3134 = vpop.f32.mrb[0].mxu0
  %v3135 = vadd.f32 %v69, %v3134
  %v3136 = vpop.f32.mrb[0].mxu0
  %v3137 = vpop.f32.mrb[0].mxu0
  %3138 = vdwg.mxu0
  %v3139 = vmax.f32 %v3133, 0.0
  %v3140 = vmax.f32 %v3135, 0.0
  %v3141 = vmax.f32 %v3087, %v3139
  %v3142 = vmax.f32 %v3088, %v3140
  %v3143 = vpack.c.bf16 %v3141, %v3141
  %v3144 = vpack.c.bf16 %v3142, %v3142
  %v3146 = vsel %vm348, %v3144, 0
  %3148 = vmatprep.subr.bf16.mxu0 0
  %3149 = vmatpush1.bf16.msra.mxu0 %v330
  %3150 = vmatprep.subr.bf16.mxu0 0
  %3151 = vmatpush1.bf16.msra.mxu0 %v331
  %3152 = vmatprep.subr.bf16.mxu0 0
  %3153 = vmatpush1.bf16.msra.mxu0 %v332
  %3154 = vmatprep.subr.bf16.mxu0 0
  %3155 = vmatpush1.bf16.msra.mxu0 %v333
  %3156 = vmatprep.subr.bf16.mxu0 0
  %3157 = vmatpush1.bf16.msra.mxu0 %v334
  %3158 = vmatprep.subr.bf16.mxu0 0
  %3159 = vmatpush1.bf16.msra.mxu0 %v335
  %3160 = vmatprep.subr.bf16.mxu0 0
  %3161 = vmatpush1.bf16.msra.mxu0 %v336
  %3162 = vmatprep.subr.bf16.mxu0 0
  %3163 = vmatpush1.bf16.msra.mxu0 %v337
  %3164 = vmatprep.subr.bf16.mxu0 0
  %3165 = vmatpush1.bf16.msra.mxu0 %v338
  %3166 = vmatprep.subr.bf16.mxu0 0
  %3167 = vmatpush1.bf16.msra.mxu0 0
  %3168 = vmatprep.subr.bf16.mxu0 0
  %3169 = vmatpush1.bf16.msra.mxu0 0
  %3170 = vmatprep.subr.bf16.mxu0 0
  %3171 = vmatpush1.bf16.msra.mxu0 0
  %3172 = vmatprep.subr.bf16.mxu0 0
  %3173 = vmatpush1.bf16.msra.mxu0 0
  %3174 = vmatprep.subr.bf16.mxu0 0
  %3175 = vmatpush1.bf16.msra.mxu0 0
  %3176 = vmatprep.subr.bf16.mxu0 0
  %3177 = vmatpush1.bf16.msra.mxu0 0
  %3178 = vmatprep.subr.bf16.mxu0 0
  %3179 = vmatpush1.bf16.msra.mxu0 0
  %3180 = vmatprep.mubr.bf16.mxu0 %v3146
  %3181 = vmatmul.mubr.bf16.gmra.mrb[0].mxu0 %v3143
  %v3182 = vpop.f32.mrb[0].mxu0
  %v3183 = vadd.f32 0.0, %v3182
  %v3184 = vpop.f32.mrb[0].mxu0
  %v3185 = vpop.f32.mrb[0].mxu0
  %v3186 = vpop.f32.mrb[0].mxu0
  %3187 = vdwg.mxu0
  %3188 = vmatprep.subr.bf16.mxu0 0
  %3189 = vmatpush1.bf16.msra.mxu0 %v446
  %3190 = vmatprep.subr.bf16.mxu0 0
  %3191 = vmatpush1.bf16.msra.mxu0 %v447
  %3192 = vmatprep.subr.bf16.mxu0 0
  %3193 = vmatpush1.bf16.msra.mxu0 %v448
  %3194 = vmatprep.subr.bf16.mxu0 0
  %3195 = vmatpush1.bf16.msra.mxu0 %v449
  %3196 = vmatprep.subr.bf16.mxu0 0
  %3197 = vmatpush1.bf16.msra.mxu0 %v450
  %3198 = vmatprep.subr.bf16.mxu0 0
  %3199 = vmatpush1.bf16.msra.mxu0 %v451
  %3200 = vmatprep.subr.bf16.mxu0 0
  %3201 = vmatpush1.bf16.msra.mxu0 %v452
  %3202 = vmatprep.subr.bf16.mxu0 0
  %3203 = vmatpush1.bf16.msra.mxu0 %v453
  %3204 = vmatprep.subr.bf16.mxu0 0
  %3205 = vmatpush1.bf16.msra.mxu0 %v454
  %3206 = vmatprep.subr.bf16.mxu0 0
  %3207 = vmatpush1.bf16.msra.mxu0 0
  %3208 = vmatprep.subr.bf16.mxu0 0
  %3209 = vmatpush1.bf16.msra.mxu0 0
  %3210 = vmatprep.subr.bf16.mxu0 0
  %3211 = vmatpush1.bf16.msra.mxu0 0
  %3212 = vmatprep.subr.bf16.mxu0 0
  %3213 = vmatpush1.bf16.msra.mxu0 0
  %3214 = vmatprep.subr.bf16.mxu0 0
  %3215 = vmatpush1.bf16.msra.mxu0 0
  %3216 = vmatprep.subr.bf16.mxu0 0
  %3217 = vmatpush1.bf16.msra.mxu0 0
  %3218 = vmatprep.subr.bf16.mxu0 0
  %3219 = vmatpush1.bf16.msra.mxu0 0
  %3220 = vmatprep.mubr.bf16.mxu0 %v3146
  %3221 = vmatmul.mubr.bf16.gmra.mrb[0].mxu0 %v3143
  %v3222 = vpop.f32.mrb[0].mxu0
  %v3223 = vadd.f32 0.0, %v3222
  %v3224 = vpop.f32.mrb[0].mxu0
  %v3225 = vpop.f32.mrb[0].mxu0
  %v3226 = vpop.f32.mrb[0].mxu0
  %3227 = vdwg.mxu0
  %v3228 = vmax.f32 %v3183, %v3223
  %v3229 = vpack.c.bf16 %v3228, %v3228
  %s3230 = scalar_lea.vmem %s5, 576
  %v3231 = vld [vmem:[%s3230] sm:$0xf]
  %v3232 = vld [vmem:[%s3230 + $0x4] sm:$0xf]
  %v3233 = vld [vmem:[%s3230 + $0x8] sm:$0xf]
  %v3234 = vld [vmem:[%s3230 + $0xc] sm:$0xf]
  %v3235 = vld [vmem:[%s3230 + $0x10] sm:$0xf]
  %v3236 = vld [vmem:[%s3230 + $0x14] sm:$0xf]
  %v3237 = vld [vmem:[%s3230 + $0x18] sm:$0xf]
  %v3238 = vld [vmem:[%s3230 + $0x1c] sm:$0xf]
  %v3239 = vld [vmem:[%s3230 + $0x20] sm:$0xf]
  %v3240 = vld [vmem:[%s3230 + $0x24] sm:$0xf]
  %v3241 = vld [vmem:[%s3230 + $0x28] sm:$0xf]
  %v3242 = vld [vmem:[%s3230 + $0x2c] sm:$0xf]
  %v3243 = vld [vmem:[%s3230 + $0x30] sm:$0xf]
  %v3244 = vld [vmem:[%s3230 + $0x34] sm:$0xf]
  %v3245 = vld [vmem:[%s3230 + $0x38] sm:$0xf]
  %v3246 = vld [vmem:[%s3230 + $0x3c] sm:$0xf]
  %v3263 = vunpack.c.l.b16 %v3231
  %v3264 = vunpack.c.l.b16 %v3232
  %v3265 = vunpack.c.l.b16 %v3233
  %v3266 = vunpack.c.l.b16 %v3234
  %v3267 = vunpack.c.l.b16 %v3235
  %v3268 = vunpack.c.l.b16 %v3236
  %v3269 = vunpack.c.l.b16 %v3237
  %v3270 = vunpack.c.l.b16 %v3238
  %v3271 = vunpack.c.l.b16 %v3239
  %v3272 = vunpack.c.l.b16 %v3240
  %v3273 = vunpack.c.l.b16 %v3241
  %v3274 = vunpack.c.l.b16 %v3242
  %v3275 = vunpack.c.l.b16 %v3243
  %v3276 = vunpack.c.l.b16 %v3244
  %v3277 = vunpack.c.l.b16 %v3245
  %v3278 = vunpack.c.l.b16 %v3246
  %v3279 = vpack.c.b16 %v3264, %v3263
  %v3280 = vpack.c.b16 %v3266, %v3265
  %v3281 = vpack.c.b16 %v3268, %v3267
  %v3282 = vpack.c.b16 %v3270, %v3269
  %v3283 = vpack.c.b16 %v3272, %v3271
  %v3284 = vpack.c.b16 %v3274, %v3273
  %v3285 = vpack.c.b16 %v3276, %v3275
  %v3286 = vpack.c.b16 %v3278, %v3277
  %3295 = vmatprep.subr.bf16.mxu0 0
  %3296 = vmatpush1.bf16.msra.mxu0 %v3279
  %3297 = vmatprep.subr.bf16.mxu0 0
  %3298 = vmatpush1.bf16.msra.mxu0 %v3280
  %3299 = vmatprep.subr.bf16.mxu0 0
  %3300 = vmatpush1.bf16.msra.mxu0 %v3281
  %3301 = vmatprep.subr.bf16.mxu0 0
  %3302 = vmatpush1.bf16.msra.mxu0 %v3282
  %3303 = vmatprep.subr.bf16.mxu0 0
  %3304 = vmatpush1.bf16.msra.mxu0 %v3283
  %3305 = vmatprep.subr.bf16.mxu0 0
  %3306 = vmatpush1.bf16.msra.mxu0 %v3284
  %3307 = vmatprep.subr.bf16.mxu0 0
  %3308 = vmatpush1.bf16.msra.mxu0 %v3285
  %3309 = vmatprep.subr.bf16.mxu0 0
  %3310 = vmatpush1.bf16.msra.mxu0 %v3286
  %3311 = vmatprep.subr.bf16.mxu0 0
  %3312 = vmatpush1.bf16.msra.mxu0 0
  %3313 = vmatprep.subr.bf16.mxu0 0
  %3314 = vmatpush1.bf16.msra.mxu0 0
  %3315 = vmatprep.subr.bf16.mxu0 0
  %3316 = vmatpush1.bf16.msra.mxu0 0
  %3317 = vmatprep.subr.bf16.mxu0 0
  %3318 = vmatpush1.bf16.msra.mxu0 0
  %3319 = vmatprep.subr.bf16.mxu0 0
  %3320 = vmatpush1.bf16.msra.mxu0 0
  %3321 = vmatprep.subr.bf16.mxu0 0
  %3322 = vmatpush1.bf16.msra.mxu0 0
  %3323 = vmatprep.subr.bf16.mxu0 0
  %3324 = vmatpush1.bf16.msra.mxu0 0
  %3325 = vmatprep.subr.bf16.mxu0 0
  %3326 = vmatpush1.bf16.msra.mxu0 0
  %3327 = vmatprep.mubr.bf16.mxu0 0
  %3328 = vmatmul.mubr.bf16.gmra.mrb[0].mxu0 %v3229
  %v3329 = vpop.f32.mrb[0].mxu0
  %v3330 = vadd.f32 0.0, %v3329
  %v3331 = vpop.f32.mrb[0].mxu0
  %v3332 = vpop.f32.mrb[0].mxu0
  %v3333 = vpop.f32.mrb[0].mxu0
  %3334 = vdwg.mxu0
  %v3335 = vadd.f32 %v3032, %v3330
  %s3336 = scalar_lea.vmem %s0, 160
  %v3337 = vld [vmem:[%s3336] sm:$0xff]
  %s3338 = scalar_lea.vmem %s0, 168
  %v3339 = vld [vmem:[%s3338] sm:$0xff]
  %v3341 = vunpack.c.l.b16 %v3337
  %v3342 = vunpack.c.h.b16 %v3337
  %v3343 = vpack.c.b16 %v3341, %v3341
  %v3344 = vpack.c.b16 %v3342, %v3342
  %v3347 = vsel %vm166, %v3344, 0
  %3349 = vmatprep.subr.bf16.mxu0 %v133
  %3350 = vmatpush1.bf16.msra.mxu0 %v132
  %3351 = vmatprep.subr.bf16.mxu0 %v135
  %3352 = vmatpush1.bf16.msra.mxu0 %v134
  %3353 = vmatprep.subr.bf16.mxu0 %v137
  %3354 = vmatpush1.bf16.msra.mxu0 %v136
  %3355 = vmatprep.subr.bf16.mxu0 %v139
  %3356 = vmatpush1.bf16.msra.mxu0 %v138
  %3357 = vmatprep.subr.bf16.mxu0 %v141
  %3358 = vmatpush1.bf16.msra.mxu0 %v140
  %3359 = vmatprep.subr.bf16.mxu0 %v143
  %3360 = vmatpush1.bf16.msra.mxu0 %v142
  %3361 = vmatprep.subr.bf16.mxu0 %v145
  %3362 = vmatpush1.bf16.msra.mxu0 %v144
  %3363 = vmatprep.subr.bf16.mxu0 %v147
  %3364 = vmatpush1.bf16.msra.mxu0 %v146
  %3365 = vmatprep.subr.bf16.mxu0 %v175
  %3366 = vmatpush1.bf16.msra.mxu0 %v172
  %3367 = vmatprep.subr.bf16.mxu0 0
  %3368 = vmatpush1.bf16.msra.mxu0 0
  %3369 = vmatprep.subr.bf16.mxu0 0
  %3370 = vmatpush1.bf16.msra.mxu0 0
  %3371 = vmatprep.subr.bf16.mxu0 0
  %3372 = vmatpush1.bf16.msra.mxu0 0
  %3373 = vmatprep.subr.bf16.mxu0 0
  %3374 = vmatpush1.bf16.msra.mxu0 0
  %3375 = vmatprep.subr.bf16.mxu0 0
  %3376 = vmatpush1.bf16.msra.mxu0 0
  %3377 = vmatprep.subr.bf16.mxu0 0
  %3378 = vmatpush1.bf16.msra.mxu0 0
  %3379 = vmatprep.subr.bf16.mxu0 0
  %3380 = vmatpush1.bf16.msra.mxu0 0
  %3381 = vmatprep.mubr.bf16.mxu0 %v3347
  %3382 = vmatmul.mubr.bf16.gmra.mrb[0].mxu0 %v3343
  %v3383 = vpop.f32.mrb[0].mxu0
  %v3384 = vadd.f32 %v65, %v3383
  %v3385 = vpop.f32.mrb[0].mxu0
  %v3386 = vadd.f32 %v69, %v3385
  %v3387 = vpop.f32.mrb[0].mxu0
  %v3388 = vpop.f32.mrb[0].mxu0
  %3389 = vdwg.mxu0
  %v3390 = vmax.f32 %v3384, 0.0
  %v3391 = vmax.f32 %v3386, 0.0
  %v3393 = vunpack.c.l.b16 %v3339
  %v3394 = vunpack.c.h.b16 %v3339
  %v3395 = vpack.c.b16 %v3393, %v3393
  %v3396 = vpack.c.b16 %v3394, %v3394
  %v3399 = vsel %vm166, %v3396, 0
  %3401 = vmatprep.subr.bf16.mxu0 %v133
  %3402 = vmatpush1.bf16.msra.mxu0 %v132
  %3403 = vmatprep.subr.bf16.mxu0 %v135
  %3404 = vmatpush1.bf16.msra.mxu0 %v134
  %3405 = vmatprep.subr.bf16.mxu0 %v137
  %3406 = vmatpush1.bf16.msra.mxu0 %v136
  %3407 = vmatprep.subr.bf16.mxu0 %v139
  %3408 = vmatpush1.bf16.msra.mxu0 %v138
  %3409 = vmatprep.subr.bf16.mxu0 %v141
  %3410 = vmatpush1.bf16.msra.mxu0 %v140
  %3411 = vmatprep.subr.bf16.mxu0 %v143
  %3412 = vmatpush1.bf16.msra.mxu0 %v142
  %3413 = vmatprep.subr.bf16.mxu0 %v145
  %3414 = vmatpush1.bf16.msra.mxu0 %v144
  %3415 = vmatprep.subr.bf16.mxu0 %v147
  %3416 = vmatpush1.bf16.msra.mxu0 %v146
  %3417 = vmatprep.subr.bf16.mxu0 %v175
  %3418 = vmatpush1.bf16.msra.mxu0 %v172
  %3419 = vmatprep.subr.bf16.mxu0 0
  %3420 = vmatpush1.bf16.msra.mxu0 0
  %3421 = vmatprep.subr.bf16.mxu0 0
  %3422 = vmatpush1.bf16.msra.mxu0 0
  %3423 = vmatprep.subr.bf16.mxu0 0
  %3424 = vmatpush1.bf16.msra.mxu0 0
  %3425 = vmatprep.subr.bf16.mxu0 0
  %3426 = vmatpush1.bf16.msra.mxu0 0
  %3427 = vmatprep.subr.bf16.mxu0 0
  %3428 = vmatpush1.bf16.msra.mxu0 0
  %3429 = vmatprep.subr.bf16.mxu0 0
  %3430 = vmatpush1.bf16.msra.mxu0 0
  %3431 = vmatprep.subr.bf16.mxu0 0
  %3432 = vmatpush1.bf16.msra.mxu0 0
  %3433 = vmatprep.mubr.bf16.mxu0 %v3399
  %3434 = vmatmul.mubr.bf16.gmra.mrb[0].mxu0 %v3395
  %v3435 = vpop.f32.mrb[0].mxu0
  %v3436 = vadd.f32 %v65, %v3435
  %v3437 = vpop.f32.mrb[0].mxu0
  %v3438 = vadd.f32 %v69, %v3437
  %v3439 = vpop.f32.mrb[0].mxu0
  %v3440 = vpop.f32.mrb[0].mxu0
  %3441 = vdwg.mxu0
  %v3442 = vmax.f32 %v3436, 0.0
  %v3443 = vmax.f32 %v3438, 0.0
  %v3444 = vmax.f32 %v3390, %v3442
  %v3445 = vmax.f32 %v3391, %v3443
  %v3446 = vpack.c.bf16 %v3444, %v3444
  %v3447 = vpack.c.bf16 %v3445, %v3445
  %v3449 = vsel %vm348, %v3447, 0
  %3451 = vmatprep.subr.bf16.mxu0 0
  %3452 = vmatpush1.bf16.msra.mxu0 %v330
  %3453 = vmatprep.subr.bf16.mxu0 0
  %3454 = vmatpush1.bf16.msra.mxu0 %v331
  %3455 = vmatprep.subr.bf16.mxu0 0
  %3456 = vmatpush1.bf16.msra.mxu0 %v332
  %3457 = vmatprep.subr.bf16.mxu0 0
  %3458 = vmatpush1.bf16.msra.mxu0 %v333
  %3459 = vmatprep.subr.bf16.mxu0 0
  %3460 = vmatpush1.bf16.msra.mxu0 %v334
  %3461 = vmatprep.subr.bf16.mxu0 0
  %3462 = vmatpush1.bf16.msra.mxu0 %v335
  %3463 = vmatprep.subr.bf16.mxu0 0
  %3464 = vmatpush1.bf16.msra.mxu0 %v336
  %3465 = vmatprep.subr.bf16.mxu0 0
  %3466 = vmatpush1.bf16.msra.mxu0 %v337
  %3467 = vmatprep.subr.bf16.mxu0 0
  %3468 = vmatpush1.bf16.msra.mxu0 %v338
  %3469 = vmatprep.subr.bf16.mxu0 0
  %3470 = vmatpush1.bf16.msra.mxu0 0
  %3471 = vmatprep.subr.bf16.mxu0 0
  %3472 = vmatpush1.bf16.msra.mxu0 0
  %3473 = vmatprep.subr.bf16.mxu0 0
  %3474 = vmatpush1.bf16.msra.mxu0 0
  %3475 = vmatprep.subr.bf16.mxu0 0
  %3476 = vmatpush1.bf16.msra.mxu0 0
  %3477 = vmatprep.subr.bf16.mxu0 0
  %3478 = vmatpush1.bf16.msra.mxu0 0
  %3479 = vmatprep.subr.bf16.mxu0 0
  %3480 = vmatpush1.bf16.msra.mxu0 0
  %3481 = vmatprep.subr.bf16.mxu0 0
  %3482 = vmatpush1.bf16.msra.mxu0 0
  %3483 = vmatprep.mubr.bf16.mxu0 %v3449
  %3484 = vmatmul.mubr.bf16.gmra.mrb[0].mxu0 %v3446
  %v3485 = vpop.f32.mrb[0].mxu0
  %v3486 = vadd.f32 0.0, %v3485
  %v3487 = vpop.f32.mrb[0].mxu0
  %v3488 = vpop.f32.mrb[0].mxu0
  %v3489 = vpop.f32.mrb[0].mxu0
  %3490 = vdwg.mxu0
  %3491 = vmatprep.subr.bf16.mxu0 0
  %3492 = vmatpush1.bf16.msra.mxu0 %v446
  %3493 = vmatprep.subr.bf16.mxu0 0
  %3494 = vmatpush1.bf16.msra.mxu0 %v447
  %3495 = vmatprep.subr.bf16.mxu0 0
  %3496 = vmatpush1.bf16.msra.mxu0 %v448
  %3497 = vmatprep.subr.bf16.mxu0 0
  %3498 = vmatpush1.bf16.msra.mxu0 %v449
  %3499 = vmatprep.subr.bf16.mxu0 0
  %3500 = vmatpush1.bf16.msra.mxu0 %v450
  %3501 = vmatprep.subr.bf16.mxu0 0
  %3502 = vmatpush1.bf16.msra.mxu0 %v451
  %3503 = vmatprep.subr.bf16.mxu0 0
  %3504 = vmatpush1.bf16.msra.mxu0 %v452
  %3505 = vmatprep.subr.bf16.mxu0 0
  %3506 = vmatpush1.bf16.msra.mxu0 %v453
  %3507 = vmatprep.subr.bf16.mxu0 0
  %3508 = vmatpush1.bf16.msra.mxu0 %v454
  %3509 = vmatprep.subr.bf16.mxu0 0
  %3510 = vmatpush1.bf16.msra.mxu0 0
  %3511 = vmatprep.subr.bf16.mxu0 0
  %3512 = vmatpush1.bf16.msra.mxu0 0
  %3513 = vmatprep.subr.bf16.mxu0 0
  %3514 = vmatpush1.bf16.msra.mxu0 0
  %3515 = vmatprep.subr.bf16.mxu0 0
  %3516 = vmatpush1.bf16.msra.mxu0 0
  %3517 = vmatprep.subr.bf16.mxu0 0
  %3518 = vmatpush1.bf16.msra.mxu0 0
  %3519 = vmatprep.subr.bf16.mxu0 0
  %3520 = vmatpush1.bf16.msra.mxu0 0
  %3521 = vmatprep.subr.bf16.mxu0 0
  %3522 = vmatpush1.bf16.msra.mxu0 0
  %3523 = vmatprep.mubr.bf16.mxu0 %v3449
  %3524 = vmatmul.mubr.bf16.gmra.mrb[0].mxu0 %v3446
  %v3525 = vpop.f32.mrb[0].mxu0
  %v3526 = vadd.f32 0.0, %v3525
  %v3527 = vpop.f32.mrb[0].mxu0
  %v3528 = vpop.f32.mrb[0].mxu0
  %v3529 = vpop.f32.mrb[0].mxu0
  %3530 = vdwg.mxu0
  %v3531 = vmax.f32 %v3486, %v3526
  %v3532 = vpack.c.bf16 %v3531, %v3531
  %s3533 = scalar_lea.vmem %s5, 640
  %v3534 = vld [vmem:[%s3533] sm:$0xf]
  %v3535 = vld [vmem:[%s3533 + $0x4] sm:$0xf]
  %v3536 = vld [vmem:[%s3533 + $0x8] sm:$0xf]
  %v3537 = vld [vmem:[%s3533 + $0xc] sm:$0xf]
  %v3538 = vld [vmem:[%s3533 + $0x10] sm:$0xf]
  %v3539 = vld [vmem:[%s3533 + $0x14] sm:$0xf]
  %v3540 = vld [vmem:[%s3533 + $0x18] sm:$0xf]
  %v3541 = vld [vmem:[%s3533 + $0x1c] sm:$0xf]
  %v3542 = vld [vmem:[%s3533 + $0x20] sm:$0xf]
  %v3543 = vld [vmem:[%s3533 + $0x24] sm:$0xf]
  %v3544 = vld [vmem:[%s3533 + $0x28] sm:$0xf]
  %v3545 = vld [vmem:[%s3533 + $0x2c] sm:$0xf]
  %v3546 = vld [vmem:[%s3533 + $0x30] sm:$0xf]
  %v3547 = vld [vmem:[%s3533 + $0x34] sm:$0xf]
  %v3548 = vld [vmem:[%s3533 + $0x38] sm:$0xf]
  %v3549 = vld [vmem:[%s3533 + $0x3c] sm:$0xf]
  %v3566 = vunpack.c.l.b16 %v3534
  %v3567 = vunpack.c.l.b16 %v3535
  %v3568 = vunpack.c.l.b16 %v3536
  %v3569 = vunpack.c.l.b16 %v3537
  %v3570 = vunpack.c.l.b16 %v3538
  %v3571 = vunpack.c.l.b16 %v3539
  %v3572 = vunpack.c.l.b16 %v3540
  %v3573 = vunpack.c.l.b16 %v3541
  %v3574 = vunpack.c.l.b16 %v3542
  %v3575 = vunpack.c.l.b16 %v3543
  %v3576 = vunpack.c.l.b16 %v3544
  %v3577 = vunpack.c.l.b16 %v3545
  %v3578 = vunpack.c.l.b16 %v3546
  %v3579 = vunpack.c.l.b16 %v3547
  %v3580 = vunpack.c.l.b16 %v3548
  %v3581 = vunpack.c.l.b16 %v3549
  %v3582 = vpack.c.b16 %v3567, %v3566
  %v3583 = vpack.c.b16 %v3569, %v3568
  %v3584 = vpack.c.b16 %v3571, %v3570
  %v3585 = vpack.c.b16 %v3573, %v3572
  %v3586 = vpack.c.b16 %v3575, %v3574
  %v3587 = vpack.c.b16 %v3577, %v3576
  %v3588 = vpack.c.b16 %v3579, %v3578
  %v3589 = vpack.c.b16 %v3581, %v3580
  %3598 = vmatprep.subr.bf16.mxu0 0
  %3599 = vmatpush1.bf16.msra.mxu0 %v3582
  %3600 = vmatprep.subr.bf16.mxu0 0
  %3601 = vmatpush1.bf16.msra.mxu0 %v3583
  %3602 = vmatprep.subr.bf16.mxu0 0
  %3603 = vmatpush1.bf16.msra.mxu0 %v3584
  %3604 = vmatprep.subr.bf16.mxu0 0
  %3605 = vmatpush1.bf16.msra.mxu0 %v3585
  %3606 = vmatprep.subr.bf16.mxu0 0
  %3607 = vmatpush1.bf16.msra.mxu0 %v3586
  %3608 = vmatprep.subr.bf16.mxu0 0
  %3609 = vmatpush1.bf16.msra.mxu0 %v3587
  %3610 = vmatprep.subr.bf16.mxu0 0
  %3611 = vmatpush1.bf16.msra.mxu0 %v3588
  %3612 = vmatprep.subr.bf16.mxu0 0
  %3613 = vmatpush1.bf16.msra.mxu0 %v3589
  %3614 = vmatprep.subr.bf16.mxu0 0
  %3615 = vmatpush1.bf16.msra.mxu0 0
  %3616 = vmatprep.subr.bf16.mxu0 0
  %3617 = vmatpush1.bf16.msra.mxu0 0
  %3618 = vmatprep.subr.bf16.mxu0 0
  %3619 = vmatpush1.bf16.msra.mxu0 0
  %3620 = vmatprep.subr.bf16.mxu0 0
  %3621 = vmatpush1.bf16.msra.mxu0 0
  %3622 = vmatprep.subr.bf16.mxu0 0
  %3623 = vmatpush1.bf16.msra.mxu0 0
  %3624 = vmatprep.subr.bf16.mxu0 0
  %3625 = vmatpush1.bf16.msra.mxu0 0
  %3626 = vmatprep.subr.bf16.mxu0 0
  %3627 = vmatpush1.bf16.msra.mxu0 0
  %3628 = vmatprep.subr.bf16.mxu0 0
  %3629 = vmatpush1.bf16.msra.mxu0 0
  %3630 = vmatprep.mubr.bf16.mxu0 0
  %3631 = vmatmul.mubr.bf16.gmra.mrb[0].mxu0 %v3532
  %v3632 = vpop.f32.mrb[0].mxu0
  %v3633 = vadd.f32 0.0, %v3632
  %v3634 = vpop.f32.mrb[0].mxu0
  %v3635 = vpop.f32.mrb[0].mxu0
  %v3636 = vpop.f32.mrb[0].mxu0
  %3637 = vdwg.mxu0
  %v3638 = vadd.f32 %v3335, %v3633
  %s3639 = scalar_lea.vmem %s0, 176
  %v3640 = vld [vmem:[%s3639] sm:$0xff]
  %s3641 = scalar_lea.vmem %s0, 184
  %v3642 = vld [vmem:[%s3641] sm:$0xff]
  %v3644 = vunpack.c.l.b16 %v3640
  %v3645 = vunpack.c.h.b16 %v3640
  %v3646 = vpack.c.b16 %v3644, %v3644
  %v3647 = vpack.c.b16 %v3645, %v3645
  %v3650 = vsel %vm166, %v3647, 0
  %3652 = vmatprep.subr.bf16.mxu0 %v133
  %3653 = vmatpush1.bf16.msra.mxu0 %v132
  %3654 = vmatprep.subr.bf16.mxu0 %v135
  %3655 = vmatpush1.bf16.msra.mxu0 %v134
  %3656 = vmatprep.subr.bf16.mxu0 %v137
  %3657 = vmatpush1.bf16.msra.mxu0 %v136
  %3658 = vmatprep.subr.bf16.mxu0 %v139
  %3659 = vmatpush1.bf16.msra.mxu0 %v138
  %3660 = vmatprep.subr.bf16.mxu0 %v141
  %3661 = vmatpush1.bf16.msra.mxu0 %v140
  %3662 = vmatprep.subr.bf16.mxu0 %v143
  %3663 = vmatpush1.bf16.msra.mxu0 %v142
  %3664 = vmatprep.subr.bf16.mxu0 %v145
  %3665 = vmatpush1.bf16.msra.mxu0 %v144
  %3666 = vmatprep.subr.bf16.mxu0 %v147
  %3667 = vmatpush1.bf16.msra.mxu0 %v146
  %3668 = vmatprep.subr.bf16.mxu0 %v175
  %3669 = vmatpush1.bf16.msra.mxu0 %v172
  %3670 = vmatprep.subr.bf16.mxu0 0
  %3671 = vmatpush1.bf16.msra.mxu0 0
  %3672 = vmatprep.subr.bf16.mxu0 0
  %3673 = vmatpush1.bf16.msra.mxu0 0
  %3674 = vmatprep.subr.bf16.mxu0 0
  %3675 = vmatpush1.bf16.msra.mxu0 0
  %3676 = vmatprep.subr.bf16.mxu0 0
  %3677 = vmatpush1.bf16.msra.mxu0 0
  %3678 = vmatprep.subr.bf16.mxu0 0
  %3679 = vmatpush1.bf16.msra.mxu0 0
  %3680 = vmatprep.subr.bf16.mxu0 0
  %3681 = vmatpush1.bf16.msra.mxu0 0
  %3682 = vmatprep.subr.bf16.mxu0 0
  %3683 = vmatpush1.bf16.msra.mxu0 0
  %3684 = vmatprep.mubr.bf16.mxu0 %v3650
  %3685 = vmatmul.mubr.bf16.gmra.mrb[0].mxu0 %v3646
  %v3686 = vpop.f32.mrb[0].mxu0
  %v3687 = vadd.f32 %v65, %v3686
  %v3688 = vpop.f32.mrb[0].mxu0
  %v3689 = vadd.f32 %v69, %v3688
  %v3690 = vpop.f32.mrb[0].mxu0
  %v3691 = vpop.f32.mrb[0].mxu0
  %3692 = vdwg.mxu0
  %v3693 = vmax.f32 %v3687, 0.0
  %v3694 = vmax.f32 %v3689, 0.0
  %v3696 = vunpack.c.l.b16 %v3642
  %v3697 = vunpack.c.h.b16 %v3642
  %v3698 = vpack.c.b16 %v3696, %v3696
  %v3699 = vpack.c.b16 %v3697, %v3697
  %v3702 = vsel %vm166, %v3699, 0
  %3704 = vmatprep.subr.bf16.mxu0 %v133
  %3705 = vmatpush1.bf16.msra.mxu0 %v132
  %3706 = vmatprep.subr.bf16.mxu0 %v135
  %3707 = vmatpush1.bf16.msra.mxu0 %v134
  %3708 = vmatprep.subr.bf16.mxu0 %v137
  %3709 = vmatpush1.bf16.msra.mxu0 %v136
  %3710 = vmatprep.subr.bf16.mxu0 %v139
  %3711 = vmatpush1.bf16.msra.mxu0 %v138
  %3712 = vmatprep.subr.bf16.mxu0 %v141
  %3713 = vmatpush1.bf16.msra.mxu0 %v140
  %3714 = vmatprep.subr.bf16.mxu0 %v143
  %3715 = vmatpush1.bf16.msra.mxu0 %v142
  %3716 = vmatprep.subr.bf16.mxu0 %v145
  %3717 = vmatpush1.bf16.msra.mxu0 %v144
  %3718 = vmatprep.subr.bf16.mxu0 %v147
  %3719 = vmatpush1.bf16.msra.mxu0 %v146
  %3720 = vmatprep.subr.bf16.mxu0 %v175
  %3721 = vmatpush1.bf16.msra.mxu0 %v172
  %3722 = vmatprep.subr.bf16.mxu0 0
  %3723 = vmatpush1.bf16.msra.mxu0 0
  %3724 = vmatprep.subr.bf16.mxu0 0
  %3725 = vmatpush1.bf16.msra.mxu0 0
  %3726 = vmatprep.subr.bf16.mxu0 0
  %3727 = vmatpush1.bf16.msra.mxu0 0
  %3728 = vmatprep.subr.bf16.mxu0 0
  %3729 = vmatpush1.bf16.msra.mxu0 0
  %3730 = vmatprep.subr.bf16.mxu0 0
  %3731 = vmatpush1.bf16.msra.mxu0 0
  %3732 = vmatprep.subr.bf16.mxu0 0
  %3733 = vmatpush1.bf16.msra.mxu0 0
  %3734 = vmatprep.subr.bf16.mxu0 0
  %3735 = vmatpush1.bf16.msra.mxu0 0
  %3736 = vmatprep.mubr.bf16.mxu0 %v3702
  %3737 = vmatmul.mubr.bf16.gmra.mrb[0].mxu0 %v3698
  %v3738 = vpop.f32.mrb[0].mxu0
  %v3739 = vadd.f32 %v65, %v3738
  %v3740 = vpop.f32.mrb[0].mxu0
  %v3741 = vadd.f32 %v69, %v3740
  %v3742 = vpop.f32.mrb[0].mxu0
  %v3743 = vpop.f32.mrb[0].mxu0
  %3744 = vdwg.mxu0
  %v3745 = vmax.f32 %v3739, 0.0
  %v3746 = vmax.f32 %v3741, 0.0
  %v3747 = vmax.f32 %v3693, %v3745
  %v3748 = vmax.f32 %v3694, %v3746
  %v3749 = vpack.c.bf16 %v3747, %v3747
  %v3750 = vpack.c.bf16 %v3748, %v3748
  %v3752 = vsel %vm348, %v3750, 0
  %3754 = vmatprep.subr.bf16.mxu0 0
  %3755 = vmatpush1.bf16.msra.mxu0 %v330
  %3756 = vmatprep.subr.bf16.mxu0 0
  %3757 = vmatpush1.bf16.msra.mxu0 %v331
  %3758 = vmatprep.subr.bf16.mxu0 0
  %3759 = vmatpush1.bf16.msra.mxu0 %v332
  %3760 = vmatprep.subr.bf16.mxu0 0
  %3761 = vmatpush1.bf16.msra.mxu0 %v333
  %3762 = vmatprep.subr.bf16.mxu0 0
  %3763 = vmatpush1.bf16.msra.mxu0 %v334
  %3764 = vmatprep.subr.bf16.mxu0 0
  %3765 = vmatpush1.bf16.msra.mxu0 %v335
  %3766 = vmatprep.subr.bf16.mxu0 0
  %3767 = vmatpush1.bf16.msra.mxu0 %v336
  %3768 = vmatprep.subr.bf16.mxu0 0
  %3769 = vmatpush1.bf16.msra.mxu0 %v337
  %3770 = vmatprep.subr.bf16.mxu0 0
  %3771 = vmatpush1.bf16.msra.mxu0 %v338
  %3772 = vmatprep.subr.bf16.mxu0 0
  %3773 = vmatpush1.bf16.msra.mxu0 0
  %3774 = vmatprep.subr.bf16.mxu0 0
  %3775 = vmatpush1.bf16.msra.mxu0 0
  %3776 = vmatprep.subr.bf16.mxu0 0
  %3777 = vmatpush1.bf16.msra.mxu0 0
  %3778 = vmatprep.subr.bf16.mxu0 0
  %3779 = vmatpush1.bf16.msra.mxu0 0
  %3780 = vmatprep.subr.bf16.mxu0 0
  %3781 = vmatpush1.bf16.msra.mxu0 0
  %3782 = vmatprep.subr.bf16.mxu0 0
  %3783 = vmatpush1.bf16.msra.mxu0 0
  %3784 = vmatprep.subr.bf16.mxu0 0
  %3785 = vmatpush1.bf16.msra.mxu0 0
  %3786 = vmatprep.mubr.bf16.mxu0 %v3752
  %3787 = vmatmul.mubr.bf16.gmra.mrb[0].mxu0 %v3749
  %v3788 = vpop.f32.mrb[0].mxu0
  %v3789 = vadd.f32 0.0, %v3788
  %v3790 = vpop.f32.mrb[0].mxu0
  %v3791 = vpop.f32.mrb[0].mxu0
  %v3792 = vpop.f32.mrb[0].mxu0
  %3793 = vdwg.mxu0
  %3794 = vmatprep.subr.bf16.mxu0 0
  %3795 = vmatpush1.bf16.msra.mxu0 %v446
  %3796 = vmatprep.subr.bf16.mxu0 0
  %3797 = vmatpush1.bf16.msra.mxu0 %v447
  %3798 = vmatprep.subr.bf16.mxu0 0
  %3799 = vmatpush1.bf16.msra.mxu0 %v448
  %3800 = vmatprep.subr.bf16.mxu0 0
  %3801 = vmatpush1.bf16.msra.mxu0 %v449
  %3802 = vmatprep.subr.bf16.mxu0 0
  %3803 = vmatpush1.bf16.msra.mxu0 %v450
  %3804 = vmatprep.subr.bf16.mxu0 0
  %3805 = vmatpush1.bf16.msra.mxu0 %v451
  %3806 = vmatprep.subr.bf16.mxu0 0
  %3807 = vmatpush1.bf16.msra.mxu0 %v452
  %3808 = vmatprep.subr.bf16.mxu0 0
  %3809 = vmatpush1.bf16.msra.mxu0 %v453
  %3810 = vmatprep.subr.bf16.mxu0 0
  %3811 = vmatpush1.bf16.msra.mxu0 %v454
  %3812 = vmatprep.subr.bf16.mxu0 0
  %3813 = vmatpush1.bf16.msra.mxu0 0
  %3814 = vmatprep.subr.bf16.mxu0 0
  %3815 = vmatpush1.bf16.msra.mxu0 0
  %3816 = vmatprep.subr.bf16.mxu0 0
  %3817 = vmatpush1.bf16.msra.mxu0 0
  %3818 = vmatprep.subr.bf16.mxu0 0
  %3819 = vmatpush1.bf16.msra.mxu0 0
  %3820 = vmatprep.subr.bf16.mxu0 0
  %3821 = vmatpush1.bf16.msra.mxu0 0
  %3822 = vmatprep.subr.bf16.mxu0 0
  %3823 = vmatpush1.bf16.msra.mxu0 0
  %3824 = vmatprep.subr.bf16.mxu0 0
  %3825 = vmatpush1.bf16.msra.mxu0 0
  %3826 = vmatprep.mubr.bf16.mxu0 %v3752
  %3827 = vmatmul.mubr.bf16.gmra.mrb[0].mxu0 %v3749
  %v3828 = vpop.f32.mrb[0].mxu0
  %v3829 = vadd.f32 0.0, %v3828
  %v3830 = vpop.f32.mrb[0].mxu0
  %v3831 = vpop.f32.mrb[0].mxu0
  %v3832 = vpop.f32.mrb[0].mxu0
  %3833 = vdwg.mxu0
  %v3834 = vmax.f32 %v3789, %v3829
  %v3835 = vpack.c.bf16 %v3834, %v3834
  %s3836 = scalar_lea.vmem %s5, 704
  %v3837 = vld [vmem:[%s3836] sm:$0xf]
  %v3838 = vld [vmem:[%s3836 + $0x4] sm:$0xf]
  %v3839 = vld [vmem:[%s3836 + $0x8] sm:$0xf]
  %v3840 = vld [vmem:[%s3836 + $0xc] sm:$0xf]
  %v3841 = vld [vmem:[%s3836 + $0x10] sm:$0xf]
  %v3842 = vld [vmem:[%s3836 + $0x14] sm:$0xf]
  %v3843 = vld [vmem:[%s3836 + $0x18] sm:$0xf]
  %v3844 = vld [vmem:[%s3836 + $0x1c] sm:$0xf]
  %v3845 = vld [vmem:[%s3836 + $0x20] sm:$0xf]
  %v3846 = vld [vmem:[%s3836 + $0x24] sm:$0xf]
  %v3847 = vld [vmem:[%s3836 + $0x28] sm:$0xf]
  %v3848 = vld [vmem:[%s3836 + $0x2c] sm:$0xf]
  %v3849 = vld [vmem:[%s3836 + $0x30] sm:$0xf]
  %v3850 = vld [vmem:[%s3836 + $0x34] sm:$0xf]
  %v3851 = vld [vmem:[%s3836 + $0x38] sm:$0xf]
  %v3852 = vld [vmem:[%s3836 + $0x3c] sm:$0xf]
  %v3869 = vunpack.c.l.b16 %v3837
  %v3870 = vunpack.c.l.b16 %v3838
  %v3871 = vunpack.c.l.b16 %v3839
  %v3872 = vunpack.c.l.b16 %v3840
  %v3873 = vunpack.c.l.b16 %v3841
  %v3874 = vunpack.c.l.b16 %v3842
  %v3875 = vunpack.c.l.b16 %v3843
  %v3876 = vunpack.c.l.b16 %v3844
  %v3877 = vunpack.c.l.b16 %v3845
  %v3878 = vunpack.c.l.b16 %v3846
  %v3879 = vunpack.c.l.b16 %v3847
  %v3880 = vunpack.c.l.b16 %v3848
  %v3881 = vunpack.c.l.b16 %v3849
  %v3882 = vunpack.c.l.b16 %v3850
  %v3883 = vunpack.c.l.b16 %v3851
  %v3884 = vunpack.c.l.b16 %v3852
  %v3885 = vpack.c.b16 %v3870, %v3869
  %v3886 = vpack.c.b16 %v3872, %v3871
  %v3887 = vpack.c.b16 %v3874, %v3873
  %v3888 = vpack.c.b16 %v3876, %v3875
  %v3889 = vpack.c.b16 %v3878, %v3877
  %v3890 = vpack.c.b16 %v3880, %v3879
  %v3891 = vpack.c.b16 %v3882, %v3881
  %v3892 = vpack.c.b16 %v3884, %v3883
  %3901 = vmatprep.subr.bf16.mxu0 0
  %3902 = vmatpush1.bf16.msra.mxu0 %v3885
  %3903 = vmatprep.subr.bf16.mxu0 0
  %3904 = vmatpush1.bf16.msra.mxu0 %v3886
  %3905 = vmatprep.subr.bf16.mxu0 0
  %3906 = vmatpush1.bf16.msra.mxu0 %v3887
  %3907 = vmatprep.subr.bf16.mxu0 0
  %3908 = vmatpush1.bf16.msra.mxu0 %v3888
  %3909 = vmatprep.subr.bf16.mxu0 0
  %3910 = vmatpush1.bf16.msra.mxu0 %v3889
  %3911 = vmatprep.subr.bf16.mxu0 0
  %3912 = vmatpush1.bf16.msra.mxu0 %v3890
  %3913 = vmatprep.subr.bf16.mxu0 0
  %3914 = vmatpush1.bf16.msra.mxu0 %v3891
  %3915 = vmatprep.subr.bf16.mxu0 0
  %3916 = vmatpush1.bf16.msra.mxu0 %v3892
  %3917 = vmatprep.subr.bf16.mxu0 0
  %3918 = vmatpush1.bf16.msra.mxu0 0
  %3919 = vmatprep.subr.bf16.mxu0 0
  %3920 = vmatpush1.bf16.msra.mxu0 0
  %3921 = vmatprep.subr.bf16.mxu0 0
  %3922 = vmatpush1.bf16.msra.mxu0 0
  %3923 = vmatprep.subr.bf16.mxu0 0
  %3924 = vmatpush1.bf16.msra.mxu0 0
  %3925 = vmatprep.subr.bf16.mxu0 0
  %3926 = vmatpush1.bf16.msra.mxu0 0
  %3927 = vmatprep.subr.bf16.mxu0 0
  %3928 = vmatpush1.bf16.msra.mxu0 0
  %3929 = vmatprep.subr.bf16.mxu0 0
  %3930 = vmatpush1.bf16.msra.mxu0 0
  %3931 = vmatprep.subr.bf16.mxu0 0
  %3932 = vmatpush1.bf16.msra.mxu0 0
  %3933 = vmatprep.mubr.bf16.mxu0 0
  %3934 = vmatmul.mubr.bf16.gmra.mrb[0].mxu0 %v3835
  %v3935 = vpop.f32.mrb[0].mxu0
  %v3936 = vadd.f32 0.0, %v3935
  %v3937 = vpop.f32.mrb[0].mxu0
  %v3938 = vpop.f32.mrb[0].mxu0
  %v3939 = vpop.f32.mrb[0].mxu0
  %3940 = vdwg.mxu0
  %v3941 = vadd.f32 %v3638, %v3936
  %v3942 = vld [vmem:[%s6] sm:$0x1]
  %v3944 = vlaneseq
  %v3945 = vshrl.u32 %v3944, 7
  %v3946 = vsub.s32 0, %v3945
  %v3947 = vrot.slane %v3942, %v3946
  %v3949 = vadd.f32 %v3941, %v3947
  %v3950 = vmax.f32 %v3949, 0.0
  %v3951 = vpack.c.bf16 %v3950, %v3950
  %v3952 = vld [vmem:[%s7] sm:$0xf]
  %v3953 = vld [vmem:[%s7 + $0x4] sm:$0xf]
  %v3954 = vld [vmem:[%s7 + $0x8] sm:$0xf]
  %v3955 = vld [vmem:[%s7 + $0xc] sm:$0xf]
  %v3956 = vld [vmem:[%s7 + $0x10] sm:$0xf]
  %v3957 = vld [vmem:[%s7 + $0x14] sm:$0xf]
  %v3958 = vld [vmem:[%s7 + $0x18] sm:$0xf]
  %v3959 = vld [vmem:[%s7 + $0x1c] sm:$0xf]
  %v3960 = vld [vmem:[%s7 + $0x20] sm:$0xf]
  %v3961 = vld [vmem:[%s7 + $0x24] sm:$0xf]
  %v3962 = vld [vmem:[%s7 + $0x28] sm:$0xf]
  %v3963 = vld [vmem:[%s7 + $0x2c] sm:$0xf]
  %v3964 = vld [vmem:[%s7 + $0x30] sm:$0xf]
  %v3965 = vld [vmem:[%s7 + $0x34] sm:$0xf]
  %v3966 = vld [vmem:[%s7 + $0x38] sm:$0xf]
  %v3967 = vld [vmem:[%s7 + $0x3c] sm:$0xf]
  %v3968 = vld [vmem:[%s8] sm:$0x1]
  %v3970 = vlaneseq
  %v3971 = vshrl.u32 %v3970, 7
  %v3972 = vsub.s32 0, %v3971
  %v3973 = vrot.slane %v3968, %v3972
  %v3991 = vunpack.c.l.b16 %v3952
  %v3992 = vunpack.c.l.b16 %v3953
  %v3993 = vunpack.c.l.b16 %v3954
  %v3994 = vunpack.c.l.b16 %v3955
  %v3995 = vunpack.c.l.b16 %v3956
  %v3996 = vunpack.c.l.b16 %v3957
  %v3997 = vunpack.c.l.b16 %v3958
  %v3998 = vunpack.c.l.b16 %v3959
  %v3999 = vunpack.c.l.b16 %v3960
  %v4000 = vunpack.c.l.b16 %v3961
  %v4001 = vunpack.c.l.b16 %v3962
  %v4002 = vunpack.c.l.b16 %v3963
  %v4003 = vunpack.c.l.b16 %v3964
  %v4004 = vunpack.c.l.b16 %v3965
  %v4005 = vunpack.c.l.b16 %v3966
  %v4006 = vunpack.c.l.b16 %v3967
  %v4007 = vpack.c.b16 %v3992, %v3991
  %v4008 = vpack.c.b16 %v3994, %v3993
  %v4009 = vpack.c.b16 %v3996, %v3995
  %v4010 = vpack.c.b16 %v3998, %v3997
  %v4011 = vpack.c.b16 %v4000, %v3999
  %v4012 = vpack.c.b16 %v4002, %v4001
  %v4013 = vpack.c.b16 %v4004, %v4003
  %v4014 = vpack.c.b16 %v4006, %v4005
  %4023 = vmatprep.subr.bf16.mxu0 0
  %4024 = vmatpush1.bf16.msra.mxu0 %v4007
  %4025 = vmatprep.subr.bf16.mxu0 0
  %4026 = vmatpush1.bf16.msra.mxu0 %v4008
  %4027 = vmatprep.subr.bf16.mxu0 0
  %4028 = vmatpush1.bf16.msra.mxu0 %v4009
  %4029 = vmatprep.subr.bf16.mxu0 0
  %4030 = vmatpush1.bf16.msra.mxu0 %v4010
  %4031 = vmatprep.subr.bf16.mxu0 0
  %4032 = vmatpush1.bf16.msra.mxu0 %v4011
  %4033 = vmatprep.subr.bf16.mxu0 0
  %4034 = vmatpush1.bf16.msra.mxu0 %v4012
  %4035 = vmatprep.subr.bf16.mxu0 0
  %4036 = vmatpush1.bf16.msra.mxu0 %v4013
  %4037 = vmatprep.subr.bf16.mxu0 0
  %4038 = vmatpush1.bf16.msra.mxu0 %v4014
  %4039 = vmatprep.subr.bf16.mxu0 0
  %4040 = vmatpush1.bf16.msra.mxu0 0
  %4041 = vmatprep.subr.bf16.mxu0 0
  %4042 = vmatpush1.bf16.msra.mxu0 0
  %4043 = vmatprep.subr.bf16.mxu0 0
  %4044 = vmatpush1.bf16.msra.mxu0 0
  %4045 = vmatprep.subr.bf16.mxu0 0
  %4046 = vmatpush1.bf16.msra.mxu0 0
  %4047 = vmatprep.subr.bf16.mxu0 0
  %4048 = vmatpush1.bf16.msra.mxu0 0
  %4049 = vmatprep.subr.bf16.mxu0 0
  %4050 = vmatpush1.bf16.msra.mxu0 0
  %4051 = vmatprep.subr.bf16.mxu0 0
  %4052 = vmatpush1.bf16.msra.mxu0 0
  %4053 = vmatprep.subr.bf16.mxu0 0
  %4054 = vmatpush1.bf16.msra.mxu0 0
  %4055 = vmatprep.mubr.bf16.mxu0 0
  %4056 = vmatmul.mubr.bf16.gmra.mrb[0].mxu0 %v3951
  %v4057 = vpop.f32.mrb[0].mxu0
  %v4058 = vadd.f32 %v3973, %v4057
  %v4059 = vpop.f32.mrb[0].mxu0
  %v4060 = vpop.f32.mrb[0].mxu0
  %v4061 = vpop.f32.mrb[0].mxu0
  %4062 = vdwg.mxu0
  %v4063 = vmax.f32 %v4058, 0.0
  %v4064 = vpack.c.bf16 %v4063, %v4063
  %v4065 = vld [vmem:[%s9] sm:$0xf]
  %v4066 = vld [vmem:[%s9 + $0x4] sm:$0xf]
  %v4067 = vld [vmem:[%s9 + $0x8] sm:$0xf]
  %v4068 = vld [vmem:[%s9 + $0xc] sm:$0xf]
  %v4069 = vld [vmem:[%s9 + $0x10] sm:$0xf]
  %v4070 = vld [vmem:[%s9 + $0x14] sm:$0xf]
  %v4071 = vld [vmem:[%s9 + $0x18] sm:$0xf]
  %v4072 = vld [vmem:[%s9 + $0x1c] sm:$0xf]
  %v4073 = vld [vmem:[%s9 + $0x20] sm:$0xf]
  %v4074 = vld [vmem:[%s9 + $0x24] sm:$0xf]
  %v4075 = vld [vmem:[%s9 + $0x28] sm:$0xf]
  %v4076 = vld [vmem:[%s9 + $0x2c] sm:$0xf]
  %v4077 = vld [vmem:[%s9 + $0x30] sm:$0xf]
  %v4078 = vld [vmem:[%s9 + $0x34] sm:$0xf]
  %v4079 = vld [vmem:[%s9 + $0x38] sm:$0xf]
  %v4080 = vld [vmem:[%s9 + $0x3c] sm:$0xf]
  %v4081 = vld [vmem:[%s10] sm:$0x1]
  %v4083 = vlaneseq
  %v4084 = vshrl.u32 %v4083, 7
  %v4085 = vsub.s32 0, %v4084
  %v4086 = vrot.slane %v4081, %v4085
  %v4104 = vunpack.c.l.b16 %v4065
  %v4105 = vunpack.c.l.b16 %v4066
  %v4106 = vunpack.c.l.b16 %v4067
  %v4107 = vunpack.c.l.b16 %v4068
  %v4108 = vunpack.c.l.b16 %v4069
  %v4109 = vunpack.c.l.b16 %v4070
  %v4110 = vunpack.c.l.b16 %v4071
  %v4111 = vunpack.c.l.b16 %v4072
  %v4112 = vunpack.c.l.b16 %v4073
  %v4113 = vunpack.c.l.b16 %v4074
  %v4114 = vunpack.c.l.b16 %v4075
  %v4115 = vunpack.c.l.b16 %v4076
  %v4116 = vunpack.c.l.b16 %v4077
  %v4117 = vunpack.c.l.b16 %v4078
  %v4118 = vunpack.c.l.b16 %v4079
  %v4119 = vunpack.c.l.b16 %v4080
  %v4120 = vpack.c.b16 %v4105, %v4104
  %v4121 = vpack.c.b16 %v4107, %v4106
  %v4122 = vpack.c.b16 %v4109, %v4108
  %v4123 = vpack.c.b16 %v4111, %v4110
  %v4124 = vpack.c.b16 %v4113, %v4112
  %v4125 = vpack.c.b16 %v4115, %v4114
  %v4126 = vpack.c.b16 %v4117, %v4116
  %v4127 = vpack.c.b16 %v4119, %v4118
  %4136 = vmatprep.subr.bf16.mxu0 0
  %4137 = vmatpush1.bf16.msra.mxu0 %v4120
  %4138 = vmatprep.subr.bf16.mxu0 0
  %4139 = vmatpush1.bf16.msra.mxu0 %v4121
  %4140 = vmatprep.subr.bf16.mxu0 0
  %4141 = vmatpush1.bf16.msra.mxu0 %v4122
  %4142 = vmatprep.subr.bf16.mxu0 0
  %4143 = vmatpush1.bf16.msra.mxu0 %v4123
  %4144 = vmatprep.subr.bf16.mxu0 0
  %4145 = vmatpush1.bf16.msra.mxu0 %v4124
  %4146 = vmatprep.subr.bf16.mxu0 0
  %4147 = vmatpush1.bf16.msra.mxu0 %v4125
  %4148 = vmatprep.subr.bf16.mxu0 0
  %4149 = vmatpush1.bf16.msra.mxu0 %v4126
  %4150 = vmatprep.subr.bf16.mxu0 0
  %4151 = vmatpush1.bf16.msra.mxu0 %v4127
  %4152 = vmatprep.subr.bf16.mxu0 0
  %4153 = vmatpush1.bf16.msra.mxu0 0
  %4154 = vmatprep.subr.bf16.mxu0 0
  %4155 = vmatpush1.bf16.msra.mxu0 0
  %4156 = vmatprep.subr.bf16.mxu0 0
  %4157 = vmatpush1.bf16.msra.mxu0 0
  %4158 = vmatprep.subr.bf16.mxu0 0
  %4159 = vmatpush1.bf16.msra.mxu0 0
  %4160 = vmatprep.subr.bf16.mxu0 0
  %4161 = vmatpush1.bf16.msra.mxu0 0
  %4162 = vmatprep.subr.bf16.mxu0 0
  %4163 = vmatpush1.bf16.msra.mxu0 0
  %4164 = vmatprep.subr.bf16.mxu0 0
  %4165 = vmatpush1.bf16.msra.mxu0 0
  %4166 = vmatprep.subr.bf16.mxu0 0
  %4167 = vmatpush1.bf16.msra.mxu0 0
  %4168 = vmatprep.mubr.bf16.mxu0 0
  %4169 = vmatmul.mubr.bf16.gmra.mrb[0].mxu0 %v4064
  %v4170 = vpop.f32.mrb[0].mxu0
  %v4171 = vadd.f32 %v4086, %v4170
  %v4172 = vpop.f32.mrb[0].mxu0
  %v4173 = vpop.f32.mrb[0].mxu0
  %v4174 = vpop.f32.mrb[0].mxu0
  %4175 = vdwg.mxu0
  %4176 = vst [vmem:[%s11] sm:$0xff] %v4171
  // Predicated region
  $region46: #{cnn_forward.1} parent=0 // pred_check
    _
  $region47: #{cnn_forward.1} parent=0 // pred_check_branch
    %4178 = sbr.rel (0) target = $region49
  $region48: #{cnn_forward.1} parent=0 // pred_region
    _
  $region49: #{cnn_forward.1} parent=0 // pred_fallthru
    _
  // Predicated region
  $region50: #{cnn_forward.1} parent=0 // pred_check
    _
  $region51: #{cnn_forward.1} parent=0 // pred_check_branch
    %4180 = sbr.rel (0) target = $region53
  $region52: #{cnn_forward.1} parent=0 // pred_region
    _
  $region53: #{cnn_forward.1} parent=0 // pred_fallthru
    _

</llo_original>
